<compile_context>
chip_gen: v5e
topology: v5e:2x2
jax: 0.10.0
libtpu: 0.0.40
codegen_flags: <defaults>
</compile_context>

<pallas_src>
import math
import functools

import jax
import jax.numpy as jnp
from jax import lax
from jax.experimental import pallas as pl
from jax.experimental.pallas import tpu as pltpu

NEG_SLOPE = 0.1   # nn.LeakyReLU(negative_slope=0.1)
BN_EPS = 1e-5     # PyTorch BatchNorm2d default eps


def _leaky_relu(y):
    return jnp.where(y >= 0, y, NEG_SLOPE * y)


# ------------------------------ fused kernel --------------------------------

def fused_block_kernel(*refs, stride, H, W, ho, wo,
                       apply_bn1, bn1_on_shortcut, equal):
    """bn1+LeakyReLU -> conv1(3x3,s) -> bn2+LeakyReLU -> conv2(3x3,1) + residual.

    refs (in order):
      xph_ref : (s*s, Hq, Wq, Cin)   stride-phase-split, zero-padded input
      w1_ref  : (9, Cin, Cout)       conv1 weights, tap-major (ky*3+kx)
      w2_ref  : (9, Cout, Cout)      conv2 weights, tap-major
      [ws_ref]: (Cin, Cout)          1x1 shortcut weights (only when not equal)
      s1,b1   : (1, Cin)  f32        folded bn1 affine
      s2,b2   : (1, Cout) f32        folded bn2 affine
      o_ref   : (ho*wo, Cout)        block output (flattened spatial)
      h1_ref  : VMEM (ho+2, wo+2, Cout) scratch — conv1 branch output + zero ring
      [xact_ref]: VMEM (s*s, Hq, Wq, Cin) scratch — bn1-activated conv1 input
    """
    it = iter(refs)
    xph_ref = next(it)
    w1_ref = next(it)
    w2_ref = next(it)
    ws_ref = None if equal else next(it)
    s1_ref = next(it); b1_ref = next(it)
    s2_ref = next(it); b2_ref = next(it)
    o_ref = next(it)
    h1_ref = next(it)
    xact_ref = next(it) if apply_bn1 else None

    s = stride
    nph, hq, wq, cin = xph_ref.shape
    cout = h1_ref.shape[-1]
    cdt = xph_ref.dtype

    # ---- prologue: conv1 input = LeakyReLU(bn1(x)) (or raw x).
    # Full-slab compute + iota ring mask => only whole-slab (unmasked) stores;
    # the conv zero-padding ring stays exactly zero.
    if apply_bn1:
        s1b = jnp.broadcast_to(s1_ref[...].reshape(1, 1, cin), (hq, wq, cin))
        b1b = jnp.broadcast_to(b1_ref[...].reshape(1, 1, cin), (hq, wq, cin))
        ui = lax.broadcasted_iota(jnp.int32, (hq, wq, cin), 0)   # hoisted: phase-independent
        vi = lax.broadcasted_iota(jnp.int32, (hq, wq, cin), 1)
        for p in range(nph):
            a, b = p // s, p % s
            ru = ui * s + a                       # padded row coord of this element
            rv = vi * s + b                       # padded col coord
            valid = (ru >= 1) & (ru <= H) & (rv >= 1) & (rv <= W)
            act = _leaky_relu(xph_ref[p].astype(jnp.float32) * s1b + b1b)
            xact_ref[p] = jnp.where(valid, act, 0.0).astype(cdt)
        src = xact_ref
    else:
        src = xph_ref        # raw x (already correctly zero-padded by the wrapper)

    # ---- conv1: 9 unrolled taps of (ho*wo, Cin) @ (Cin, Cout), f32 accumulation.
    acc1 = jnp.zeros((ho * wo, cout), jnp.float32)
    for t in range(9):
        ky, kx = t // 3, t % 3
        p = (ky % s) * s + (kx % s)
        du, dv = ky // s, kx // s
        slab = src[p, du:du + ho, dv:dv + wo, :]                  # (ho, wo, Cin)
        acc1 = acc1 + jnp.dot(slab.reshape(ho * wo, cin), w1_ref[t],
                              preferred_element_type=jnp.float32)

    # ---- bn2 + LeakyReLU epilogue; store h1 into VMEM scratch with its zero ring.
    h1v = _leaky_relu(acc1 * s2_ref[...] + b2_ref[...]).reshape(ho, wo, cout).astype(cdt)
    zrow = jnp.zeros((1, wo + 2, cout), cdt)
    zcol = jnp.zeros((ho, 1, cout), cdt)
    h1_ref[0:1, :, :] = zrow                       # re-zero only the thin ring
    h1_ref[ho + 1:ho + 2, :, :] = zrow             # (safe under megacore splitting)
    h1_ref[1:ho + 1, 0:1, :] = zcol
    h1_ref[1:ho + 1, wo + 1:wo + 2, :] = zcol
    h1_ref[1:ho + 1, 1:wo + 1, :] = h1v

    # ---- residual / shortcut branch: only the single needed stride phase is read.
    p_sc = (1 % s) * s + (1 % s)
    d_sc = 1 // s
    sc_src = xact_ref if bn1_on_shortcut else xph_ref
    xs2d = sc_src[p_sc, d_sc:d_sc + ho, d_sc:d_sc + wo, :].reshape(ho * wo, cin)
    if equal:
        acc2 = xs2d.astype(jnp.float32)            # identity residual
    else:
        acc2 = jnp.dot(xs2d, ws_ref[...],
                       preferred_element_type=jnp.float32)        # 1x1 convShortcut

    # ---- conv2 accumulated directly on top of the residual (h1 never leaves VMEM).
    for t in range(9):
        ky, kx = t // 3, t % 3
        slab = h1_ref[ky:ky + ho, kx:kx + wo, :]                  # (ho, wo, Cout)
        acc2 = acc2 + jnp.dot(slab.reshape(ho * wo, cout), w2_ref[t],
                              preferred_element_type=jnp.float32)

    o_ref[...] = acc2.astype(o_ref.dtype)


# ----------------------------- wrapper (layout only) ------------------------

def _bn_affine(gamma, beta, mean, var):
    scale = gamma / jnp.sqrt(var + BN_EPS)
    shift = beta - mean * scale
    return scale[None, :].astype(jnp.float32), shift[None, :].astype(jnp.float32)


def _tap_major(w_oihw):
    # PyTorch OIHW -> (Kh*Kw, I, O), tap-major (ky*K + kx) matching the in-kernel loop.
    o, i, kh, kw = w_oihw.shape
    return jnp.transpose(w_oihw, (2, 3, 1, 0)).reshape(kh * kw, i, o)


def basic_block_forward(x_nchw, params, *, stride, activate_before_residual=False,
                        drop_rate=0.0, compute_dtype=jnp.bfloat16):
    n, in_c, H, W = x_nchw.shape
    out_c = params["conv1_w"].shape[0]
    equal = in_c == out_c
    s = stride
    ho = (H + 2 - 3) // s + 1
    wo = (W + 2 - 3) // s + 1

    # Layout-only prep: NCHW -> NHWC, zero-pad by 1, split into s*s stride phases so
    # every 3x3 tap inside the kernel is a unit-stride static slice.  Byte count ==
    # padded input (not a 9x im2col matrix).
    x = jnp.transpose(x_nchw, (0, 2, 3, 1)).astype(jnp.float32)
    hp, wp = H + 2, W + 2
    hr, wr = (-hp) % s, (-wp) % s
    xp = jnp.pad(x, ((0, 0), (1, 1 + hr), (1, 1 + wr), (0, 0)))
    hq, wq = (hp + hr) // s, (wp + wr) // s
    xph = (xp.reshape(n, hq, s, wq, s, in_c)
             .transpose(0, 2, 4, 1, 3, 5)
             .reshape(n, s * s, hq, wq, in_c)
             .astype(compute_dtype))

    w1 = _tap_major(params["conv1_w"]).astype(compute_dtype)
    w2 = _tap_major(params["conv2_w"]).astype(compute_dtype)
    s1, b1 = _bn_affine(params["bn1_gamma"], params["bn1_beta"],
                        params["bn1_mean"], params["bn1_var"])
    s2, b2 = _bn_affine(params["bn2_gamma"], params["bn2_beta"],
                        params["bn2_mean"], params["bn2_var"])

    # conv1 input is LeakyReLU(bn1(x)) unless (not equal and not activate_before_residual),
    # where the PyTorch module feeds the RAW x into conv1 (bn1's output is dead there).
    apply_bn1 = equal or activate_before_residual
    # shortcut input is LeakyReLU(bn1(x)) only when the module overwrote x
    # (not equal and activate_before_residual); otherwise it is the raw x.
    bn1_on_shortcut = (not equal) and activate_before_residual

    args = [xph, w1, w2]
    in_specs = [
        pl.BlockSpec((None, s * s, hq, wq, in_c), lambda i: (i, 0, 0, 0, 0)),
        pl.BlockSpec((9, in_c, out_c), lambda i: (0, 0, 0)),
        pl.BlockSpec((9, out_c, out_c), lambda i: (0, 0, 0)),
    ]
    if not equal:
        ws = jnp.transpose(params["shortcut_w"].reshape(out_c, in_c)).astype(compute_dtype)
        args.append(ws)
        in_specs.append(pl.BlockSpec((in_c, out_c), lambda i: (0, 0)))
    args += [s1, b1, s2, b2]
    in_specs += [
        pl.BlockSpec((1, in_c), lambda i: (0, 0)),
        pl.BlockSpec((1, in_c), lambda i: (0, 0)),
        pl.BlockSpec((1, out_c), lambda i: (0, 0)),
        pl.BlockSpec((1, out_c), lambda i: (0, 0)),
    ]

    scratch_shapes = [pltpu.VMEM((ho + 2, wo + 2, out_c), compute_dtype)]   # h1 + ring
    if apply_bn1:
        scratch_shapes.append(pltpu.VMEM((s * s, hq, wq, in_c), compute_dtype))  # xact

    kern = functools.partial(
        fused_block_kernel, stride=s, H=H, W=W, ho=ho, wo=wo,
        apply_bn1=apply_bn1, bn1_on_shortcut=bn1_on_shortcut, equal=equal)

    be = jnp.dtype(compute_dtype).itemsize
    flops_per_img = (2 * ho * wo * out_c * (9 * in_c + 9 * out_c
                                            + (0 if equal else in_c))
                     + 8 * ho * wo * out_c + 8 * H * W * in_c)
    cost = pl.CostEstimate(
        flops=n * flops_per_img,
        transcendentals=0,
        bytes_accessed=(xph.size + w1.size + w2.size
                        + (0 if equal else in_c * out_c)) * be
                       + 8 * (in_c + out_c)
                       + n * ho * wo * out_c * 4,
    )

    out = pl.pallas_call(
        kern,
        out_shape=jax.ShapeDtypeStruct((n, ho * wo, out_c), jnp.float32),
        grid=(n,),
        in_specs=in_specs,
        out_specs=pl.BlockSpec((None, ho * wo, out_c), lambda i: (i, 0, 0)),
        scratch_shapes=scratch_shapes,
        compiler_params=pltpu.CompilerParams(dimension_semantics=("parallel",)),
        cost_estimate=cost,
    )(*args)

    if drop_rate > 0:
        # TODO(synk): training-mode dropout between conv1 and conv2 not implemented.
        pass

    out = out.reshape(n, ho, wo, out_c)
    return jnp.transpose(out, (0, 3, 1, 2))                       # NHWC -> NCHW


# ----------------------------- pure-JAX reference ---------------------------

def _ref_forward(x, params, *, stride, activate_before_residual=False):
    def bn(z, g, b, m, v):
        inv = g / jnp.sqrt(v + BN_EPS)
        return z * inv[None, :, None, None] + (b - m * inv)[None, :, None, None]

    def conv(z, w, s, p):
        return lax.conv_general_dilated(
            z, w, (s, s), [(p, p), (p, p)],
            dimension_numbers=("NCHW", "OIHW", "NCHW"))

    in_c = x.shape[1]
    out_c = params["conv1_w"].shape[0]
    equal = in_c == out_c

    if (not equal) and activate_before_residual:
        x = _leaky_relu(bn(x, params["bn1_gamma"], params["bn1_beta"],
                           params["bn1_mean"], params["bn1_var"]))
        out = x
    else:
        out = _leaky_relu(bn(x, params["bn1_gamma"], params["bn1_beta"],
                             params["bn1_mean"], params["bn1_var"]))
    out = conv(out if equal else x, params["conv1_w"], stride, 1)
    out = _leaky_relu(bn(out, params["bn2_gamma"], params["bn2_beta"],
                         params["bn2_mean"], params["bn2_var"]))
    out = conv(out, params["conv2_w"], 1, 1)
    short = x if equal else conv(x, params["shortcut_w"], stride, 0)
    return short + out


# ----------------------------- main -----------------------------------------

def make_params(key, in_c, out_c, equal):
    ks = jax.random.split(key, 12)
    p = dict(
        bn1_gamma=1.0 + 0.1 * jax.random.normal(ks[0], (in_c,), jnp.float32),
        bn1_beta=0.1 * jax.random.normal(ks[1], (in_c,), jnp.float32),
        bn1_mean=0.05 * jax.random.normal(ks[2], (in_c,), jnp.float32),
        bn1_var=1.0 + 0.1 * jnp.abs(jax.random.normal(ks[3], (in_c,), jnp.float32)),
        conv1_w=jax.random.normal(ks[4], (out_c, in_c, 3, 3), jnp.float32)
                / math.sqrt(9 * in_c),
        bn2_gamma=1.0 + 0.1 * jax.random.normal(ks[5], (out_c,), jnp.float32),
        bn2_beta=0.1 * jax.random.normal(ks[6], (out_c,), jnp.float32),
        bn2_mean=0.05 * jax.random.normal(ks[7], (out_c,), jnp.float32),
        bn2_var=1.0 + 0.1 * jnp.abs(jax.random.normal(ks[8], (out_c,), jnp.float32)),
        conv2_w=jax.random.normal(ks[9], (out_c, out_c, 3, 3), jnp.float32)
                / math.sqrt(9 * out_c),
    )
    if not equal:
        p["shortcut_w"] = (jax.random.normal(ks[10], (out_c, in_c, 1, 1), jnp.float32)
                           / math.sqrt(in_c))
    return p


if __name__ == "__main__":
    key = jax.random.PRNGKey(0)
    kx, kp, kp2 = jax.random.split(key, 3)

    # Config 1: BasicBlock(4 -> 8, stride=2, activate_before_residual=True)
    in_c, out_c, stride = 4, 8, 2
    x = jax.random.normal(kx, (2, in_c, 16, 16), jnp.float32)        # NCHW
    params = make_params(kp, in_c, out_c, equal=(in_c == out_c))
    y_ref = _ref_forward(x, params, stride=stride, activate_before_residual=True)

    # float32 mode: tight check of the fused-kernel structure.
    fwd_f32 = functools.partial(basic_block_forward, stride=stride,
                                activate_before_residual=True, drop_rate=0.0,
                                compute_dtype=jnp.float32)
    y32 = jax.block_until_ready(jax.jit(fwd_f32)(x, params))
    assert y32.shape == y_ref.shape == (2, out_c, 8, 8), (y32.shape, y_ref.shape)
    assert jnp.allclose(y32, y_ref, atol=1e-3, rtol=1e-3), \
        float(jnp.max(jnp.abs(y32 - y_ref)))

    # bfloat16 mode (default fast path): bf16 MXU operands, f32 accumulation/epilogues.
    fwd_bf16 = functools.partial(basic_block_forward, stride=stride,
                                 activate_before_residual=True, drop_rate=0.0)
    y16 = jax.block_until_ready(jax.jit(fwd_bf16)(x, params))
    assert jnp.allclose(y16, y_ref, atol=1e-1, rtol=1e-1), \
        float(jnp.max(jnp.abs(y16 - y_ref)))

    # Config 2: identity-residual block (equal in/out channels, stride 1).
    x2 = jax.random.normal(kx, (2, 8, 16, 16), jnp.float32)
    params2 = make_params(kp2, 8, 8, equal=True)
    y2_ref = _ref_forward(x2, params2, stride=1, activate_before_residual=False)
    fwd2 = functools.partial(basic_block_forward, stride=1,
                             activate_before_residual=False, compute_dtype=jnp.float32)
    y2 = jax.block_until_ready(jax.jit(fwd2)(x2, params2))
    assert y2.shape == y2_ref.shape == (2, 8, 16, 16), (y2.shape, y2_ref.shape)
    assert jnp.allclose(y2, y2_ref, atol=1e-3, rtol=1e-3), \
        float(jnp.max(jnp.abs(y2 - y2_ref)))

    # Config 3: channel-changing block WITHOUT activate_before_residual
    # (conv1 and shortcut both consume the raw x; bn1 scratch path disabled).
    y3_ref = _ref_forward(x, params, stride=stride, activate_before_residual=False)
    fwd3 = functools.partial(basic_block_forward, stride=stride,
                             activate_before_residual=False, compute_dtype=jnp.float32)
    y3 = jax.block_until_ready(jax.jit(fwd3)(x, params))
    assert jnp.allclose(y3, y3_ref, atol=1e-3, rtol=1e-3), \
        float(jnp.max(jnp.abs(y3 - y3_ref)))

    print("KERNEL_OK")
</pallas_src>

<mosaic_0001>
module attributes {stable_mosaic.version = 11 : i64} {
  func.func @fused_block_kernel(%arg0: i32, %arg1: memref<1x4x9x9x4xf32, #tpu.memory_space<vmem>>, %arg2: memref<9x4x8xf32, #tpu.memory_space<vmem>>, %arg3: memref<9x8x8xf32, #tpu.memory_space<vmem>>, %arg4: memref<4x8xf32, #tpu.memory_space<vmem>>, %arg5: memref<1x4xf32, #tpu.memory_space<vmem>>, %arg6: memref<1x4xf32, #tpu.memory_space<vmem>>, %arg7: memref<1x8xf32, #tpu.memory_space<vmem>>, %arg8: memref<1x8xf32, #tpu.memory_space<vmem>>, %arg9: memref<1x64x8xf32, #tpu.memory_space<vmem>>, %arg10: memref<10x10x8xf32, #tpu.memory_space<vmem>>, %arg11: memref<4x9x9x4xf32, #tpu.memory_space<vmem>>) attributes {dimension_semantics = [#tpu.dimension_semantics<parallel>], iteration_bounds = array<i64: 2>, scalar_prefetch = 0 : i64, scratch_operands = 2 : i64, tpu.core_type = #tpu.core_type<tc>, window_params = [{transform_indices = @transform_0, window_bounds = array<i64: 1, 4, 9, 9, 4>}, {pipeline_mode = #tpu.pipeline_mode<synchronous>, transform_indices = @transform_1, window_bounds = array<i64: 9, 4, 8>}, {pipeline_mode = #tpu.pipeline_mode<synchronous>, transform_indices = @transform_2, window_bounds = array<i64: 9, 8, 8>}, {pipeline_mode = #tpu.pipeline_mode<synchronous>, transform_indices = @transform_3, window_bounds = array<i64: 4, 8>}, {pipeline_mode = #tpu.pipeline_mode<synchronous>, transform_indices = @transform_4, window_bounds = array<i64: 1, 4>}, {pipeline_mode = #tpu.pipeline_mode<synchronous>, transform_indices = @transform_5, window_bounds = array<i64: 1, 4>}, {pipeline_mode = #tpu.pipeline_mode<synchronous>, transform_indices = @transform_6, window_bounds = array<i64: 1, 8>}, {pipeline_mode = #tpu.pipeline_mode<synchronous>, transform_indices = @transform_7, window_bounds = array<i64: 1, 8>}, {transform_indices = @transform_8, window_bounds = array<i64: 1, 64, 8>}]} {
    %c0 = arith.constant 0 : index
    %c0_0 = arith.constant 0 : index
    %0 = vector.load %arg5[%c0, %c0_0] : memref<1x4xf32, #tpu.memory_space<vmem>>, vector<1x4xf32>
    %1 = vector.shape_cast %0 : vector<1x4xf32> to vector<1x1x4xf32>
    %2 = vector.shape_cast %1 : vector<1x1x4xf32> to vector<1x1x4xf32>
    %3 = vector.broadcast %2 : vector<1x1x4xf32> to vector<9x9x4xf32>
    %c0_1 = arith.constant 0 : index
    %c0_2 = arith.constant 0 : index
    %4 = vector.load %arg6[%c0_1, %c0_2] : memref<1x4xf32, #tpu.memory_space<vmem>>, vector<1x4xf32>
    %5 = vector.shape_cast %4 : vector<1x4xf32> to vector<1x1x4xf32>
    %6 = vector.shape_cast %5 : vector<1x1x4xf32> to vector<1x1x4xf32>
    %7 = vector.broadcast %6 : vector<1x1x4xf32> to vector<9x9x4xf32>
    %8 = tpu.iota {dimensions = array<i32: 0>} : vector<9x9x4xi32>
    %9 = tpu.iota {dimensions = array<i32: 1>} : vector<9x9x4xi32>
    %c2_i32 = arith.constant 2 : i32
    %10 = vector.broadcast %c2_i32 : i32 to vector<9x9x4xi32>
    %11 = arith.muli %8, %10 : vector<9x9x4xi32>
    %c0_i32 = arith.constant 0 : i32
    %12 = vector.broadcast %c0_i32 : i32 to vector<9x9x4xi32>
    %13 = arith.addi %11, %12 : vector<9x9x4xi32>
    %c2_i32_3 = arith.constant 2 : i32
    %14 = vector.broadcast %c2_i32_3 : i32 to vector<9x9x4xi32>
    %15 = arith.muli %9, %14 : vector<9x9x4xi32>
    %c0_i32_4 = arith.constant 0 : i32
    %16 = vector.broadcast %c0_i32_4 : i32 to vector<9x9x4xi32>
    %17 = arith.addi %15, %16 : vector<9x9x4xi32>
    %c1_i32 = arith.constant 1 : i32
    %18 = vector.broadcast %c1_i32 : i32 to vector<9x9x4xi32>
    %19 = arith.cmpi sge, %13, %18 : vector<9x9x4xi32>
    %c16_i32 = arith.constant 16 : i32
    %20 = vector.broadcast %c16_i32 : i32 to vector<9x9x4xi32>
    %21 = arith.cmpi sle, %13, %20 : vector<9x9x4xi32>
    %22 = arith.andi %19, %21 : vector<9x9x4xi1>
    %c1_i32_5 = arith.constant 1 : i32
    %23 = vector.broadcast %c1_i32_5 : i32 to vector<9x9x4xi32>
    %24 = arith.cmpi sge, %17, %23 : vector<9x9x4xi32>
    %25 = arith.andi %22, %24 : vector<9x9x4xi1>
    %c16_i32_6 = arith.constant 16 : i32
    %26 = vector.broadcast %c16_i32_6 : i32 to vector<9x9x4xi32>
    %27 = arith.cmpi sle, %17, %26 : vector<9x9x4xi32>
    %28 = arith.andi %25, %27 : vector<9x9x4xi1>
    %c0_7 = arith.constant 0 : index
    %c0_8 = arith.constant 0 : index
    %c0_9 = arith.constant 0 : index
    %c0_10 = arith.constant 0 : index
    %c0_11 = arith.constant 0 : index
    %29 = vector.load %arg1[%c0_7, %c0_8, %c0_9, %c0_10, %c0_11] : memref<1x4x9x9x4xf32, #tpu.memory_space<vmem>>, vector<1x1x9x9x4xf32>
    %30 = vector.shape_cast %29 : vector<1x1x9x9x4xf32> to vector<9x9x4xf32>
    %31 = arith.mulf %30, %3 : vector<9x9x4xf32>
    %32 = arith.addf %31, %7 : vector<9x9x4xf32>
    %cst = arith.constant 0.000000e+00 : f32
    %33 = vector.broadcast %cst : f32 to vector<9x9x4xf32>
    %34 = arith.cmpf oge, %32, %33 : vector<9x9x4xf32>
    %cst_12 = arith.constant 1.000000e-01 : f32
    %35 = vector.broadcast %cst_12 : f32 to vector<9x9x4xf32>
    %36 = arith.mulf %35, %32 : vector<9x9x4xf32>
    %37 = arith.select %34, %32, %36 : vector<9x9x4xi1>, vector<9x9x4xf32>
    %cst_13 = arith.constant 0.000000e+00 : f32
    %38 = vector.broadcast %cst_13 : f32 to vector<9x9x4xf32>
    %39 = arith.select %28, %37, %38 : vector<9x9x4xi1>, vector<9x9x4xf32>
    %c0_14 = arith.constant 0 : index
    %c0_15 = arith.constant 0 : index
    %c0_16 = arith.constant 0 : index
    %c0_17 = arith.constant 0 : index
    %40 = vector.load %arg11[%c0_14, %c0_15, %c0_16, %c0_17] : memref<4x9x9x4xf32, #tpu.memory_space<vmem>>, vector<1x9x9x4xf32>
    %41 = vector.shape_cast %40 : vector<1x9x9x4xf32> to vector<9x9x4xf32>
    %42 = vector.shape_cast %39 : vector<9x9x4xf32> to vector<1x9x9x4xf32>
    tpu.vector_store %arg11[%c0_14, %c0_15, %c0_16, %c0_17], %42 {strides = array<i32>} : memref<4x9x9x4xf32, #tpu.memory_space<vmem>>, vector<1x9x9x4xf32>,
    %c2_i32_18 = arith.constant 2 : i32
    %43 = vector.broadcast %c2_i32_18 : i32 to vector<9x9x4xi32>
    %44 = arith.muli %8, %43 : vector<9x9x4xi32>
    %c0_i32_19 = arith.constant 0 : i32
    %45 = vector.broadcast %c0_i32_19 : i32 to vector<9x9x4xi32>
    %46 = arith.addi %44, %45 : vector<9x9x4xi32>
    %c2_i32_20 = arith.constant 2 : i32
    %47 = vector.broadcast %c2_i32_20 : i32 to vector<9x9x4xi32>
    %48 = arith.muli %9, %47 : vector<9x9x4xi32>
    %c1_i32_21 = arith.constant 1 : i32
    %49 = vector.broadcast %c1_i32_21 : i32 to vector<9x9x4xi32>
    %50 = arith.addi %48, %49 : vector<9x9x4xi32>
    %c1_i32_22 = arith.constant 1 : i32
    %51 = vector.broadcast %c1_i32_22 : i32 to vector<9x9x4xi32>
    %52 = arith.cmpi sge, %46, %51 : vector<9x9x4xi32>
    %c16_i32_23 = arith.constant 16 : i32
    %53 = vector.broadcast %c16_i32_23 : i32 to vector<9x9x4xi32>
    %54 = arith.cmpi sle, %46, %53 : vector<9x9x4xi32>
    %55 = arith.andi %52, %54 : vector<9x9x4xi1>
    %c1_i32_24 = arith.constant 1 : i32
    %56 = vector.broadcast %c1_i32_24 : i32 to vector<9x9x4xi32>
    %57 = arith.cmpi sge, %50, %56 : vector<9x9x4xi32>
    %58 = arith.andi %55, %57 : vector<9x9x4xi1>
    %c16_i32_25 = arith.constant 16 : i32
    %59 = vector.broadcast %c16_i32_25 : i32 to vector<9x9x4xi32>
    %60 = arith.cmpi sle, %50, %59 : vector<9x9x4xi32>
    %61 = arith.andi %58, %60 : vector<9x9x4xi1>
    %c0_26 = arith.constant 0 : index
    %c1 = arith.constant 1 : index
    %c0_27 = arith.constant 0 : index
    %c0_28 = arith.constant 0 : index
    %c0_29 = arith.constant 0 : index
    %62 = vector.load %arg1[%c0_26, %c1, %c0_27, %c0_28, %c0_29] : memref<1x4x9x9x4xf32, #tpu.memory_space<vmem>>, vector<1x1x9x9x4xf32>
    %63 = vector.shape_cast %62 : vector<1x1x9x9x4xf32> to vector<9x9x4xf32>
    %64 = arith.mulf %63, %3 : vector<9x9x4xf32>
    %65 = arith.addf %64, %7 : vector<9x9x4xf32>
    %cst_30 = arith.constant 0.000000e+00 : f32
    %66 = vector.broadcast %cst_30 : f32 to vector<9x9x4xf32>
    %67 = arith.cmpf oge, %65, %66 : vector<9x9x4xf32>
    %cst_31 = arith.constant 1.000000e-01 : f32
    %68 = vector.broadcast %cst_31 : f32 to vector<9x9x4xf32>
    %69 = arith.mulf %68, %65 : vector<9x9x4xf32>
    %70 = arith.select %67, %65, %69 : vector<9x9x4xi1>, vector<9x9x4xf32>
    %cst_32 = arith.constant 0.000000e+00 : f32
    %71 = vector.broadcast %cst_32 : f32 to vector<9x9x4xf32>
    %72 = arith.select %61, %70, %71 : vector<9x9x4xi1>, vector<9x9x4xf32>
    %c1_33 = arith.constant 1 : index
    %c0_34 = arith.constant 0 : index
    %c0_35 = arith.constant 0 : index
    %c0_36 = arith.constant 0 : index
    %73 = vector.load %arg11[%c1_33, %c0_34, %c0_35, %c0_36] : memref<4x9x9x4xf32, #tpu.memory_space<vmem>>, vector<1x9x9x4xf32>
    %74 = vector.shape_cast %73 : vector<1x9x9x4xf32> to vector<9x9x4xf32>
    %75 = vector.shape_cast %72 : vector<9x9x4xf32> to vector<1x9x9x4xf32>
    tpu.vector_store %arg11[%c1_33, %c0_34, %c0_35, %c0_36], %75 {strides = array<i32>} : memref<4x9x9x4xf32, #tpu.memory_space<vmem>>, vector<1x9x9x4xf32>,
    %c2_i32_37 = arith.constant 2 : i32
    %76 = vector.broadcast %c2_i32_37 : i32 to vector<9x9x4xi32>
    %77 = arith.muli %8, %76 : vector<9x9x4xi32>
    %c1_i32_38 = arith.constant 1 : i32
    %78 = vector.broadcast %c1_i32_38 : i32 to vector<9x9x4xi32>
    %79 = arith.addi %77, %78 : vector<9x9x4xi32>
    %c2_i32_39 = arith.constant 2 : i32
    %80 = vector.broadcast %c2_i32_39 : i32 to vector<9x9x4xi32>
    %81 = arith.muli %9, %80 : vector<9x9x4xi32>
    %c0_i32_40 = arith.constant 0 : i32
    %82 = vector.broadcast %c0_i32_40 : i32 to vector<9x9x4xi32>
    %83 = arith.addi %81, %82 : vector<9x9x4xi32>
    %c1_i32_41 = arith.constant 1 : i32
    %84 = vector.broadcast %c1_i32_41 : i32 to vector<9x9x4xi32>
    %85 = arith.cmpi sge, %79, %84 : vector<9x9x4xi32>
    %c16_i32_42 = arith.constant 16 : i32
    %86 = vector.broadcast %c16_i32_42 : i32 to vector<9x9x4xi32>
    %87 = arith.cmpi sle, %79, %86 : vector<9x9x4xi32>
    %88 = arith.andi %85, %87 : vector<9x9x4xi1>
    %c1_i32_43 = arith.constant 1 : i32
    %89 = vector.broadcast %c1_i32_43 : i32 to vector<9x9x4xi32>
    %90 = arith.cmpi sge, %83, %89 : vector<9x9x4xi32>
    %91 = arith.andi %88, %90 : vector<9x9x4xi1>
    %c16_i32_44 = arith.constant 16 : i32
    %92 = vector.broadcast %c16_i32_44 : i32 to vector<9x9x4xi32>
    %93 = arith.cmpi sle, %83, %92 : vector<9x9x4xi32>
    %94 = arith.andi %91, %93 : vector<9x9x4xi1>
    %c0_45 = arith.constant 0 : index
    %c2 = arith.constant 2 : index
    %c0_46 = arith.constant 0 : index
    %c0_47 = arith.constant 0 : index
    %c0_48 = arith.constant 0 : index
    %95 = vector.load %arg1[%c0_45, %c2, %c0_46, %c0_47, %c0_48] : memref<1x4x9x9x4xf32, #tpu.memory_space<vmem>>, vector<1x1x9x9x4xf32>
    %96 = vector.shape_cast %95 : vector<1x1x9x9x4xf32> to vector<9x9x4xf32>
    %97 = arith.mulf %96, %3 : vector<9x9x4xf32>
    %98 = arith.addf %97, %7 : vector<9x9x4xf32>
    %cst_49 = arith.constant 0.000000e+00 : f32
    %99 = vector.broadcast %cst_49 : f32 to vector<9x9x4xf32>
    %100 = arith.cmpf oge, %98, %99 : vector<9x9x4xf32>
    %cst_50 = arith.constant 1.000000e-01 : f32
    %101 = vector.broadcast %cst_50 : f32 to vector<9x9x4xf32>
    %102 = arith.mulf %101, %98 : vector<9x9x4xf32>
    %103 = arith.select %100, %98, %102 : vector<9x9x4xi1>, vector<9x9x4xf32>
    %cst_51 = arith.constant 0.000000e+00 : f32
    %104 = vector.broadcast %cst_51 : f32 to vector<9x9x4xf32>
    %105 = arith.select %94, %103, %104 : vector<9x9x4xi1>, vector<9x9x4xf32>
    %c2_52 = arith.constant 2 : index
    %c0_53 = arith.constant 0 : index
    %c0_54 = arith.constant 0 : index
    %c0_55 = arith.constant 0 : index
    %106 = vector.load %arg11[%c2_52, %c0_53, %c0_54, %c0_55] : memref<4x9x9x4xf32, #tpu.memory_space<vmem>>, vector<1x9x9x4xf32>
    %107 = vector.shape_cast %106 : vector<1x9x9x4xf32> to vector<9x9x4xf32>
    %108 = vector.shape_cast %105 : vector<9x9x4xf32> to vector<1x9x9x4xf32>
    tpu.vector_store %arg11[%c2_52, %c0_53, %c0_54, %c0_55], %108 {strides = array<i32>} : memref<4x9x9x4xf32, #tpu.memory_space<vmem>>, vector<1x9x9x4xf32>,
    %c2_i32_56 = arith.constant 2 : i32
    %109 = vector.broadcast %c2_i32_56 : i32 to vector<9x9x4xi32>
    %110 = arith.muli %8, %109 : vector<9x9x4xi32>
    %c1_i32_57 = arith.constant 1 : i32
    %111 = vector.broadcast %c1_i32_57 : i32 to vector<9x9x4xi32>
    %112 = arith.addi %110, %111 : vector<9x9x4xi32>
    %c2_i32_58 = arith.constant 2 : i32
    %113 = vector.broadcast %c2_i32_58 : i32 to vector<9x9x4xi32>
    %114 = arith.muli %9, %113 : vector<9x9x4xi32>
    %c1_i32_59 = arith.constant 1 : i32
    %115 = vector.broadcast %c1_i32_59 : i32 to vector<9x9x4xi32>
    %116 = arith.addi %114, %115 : vector<9x9x4xi32>
    %c1_i32_60 = arith.constant 1 : i32
    %117 = vector.broadcast %c1_i32_60 : i32 to vector<9x9x4xi32>
    %118 = arith.cmpi sge, %112, %117 : vector<9x9x4xi32>
    %c16_i32_61 = arith.constant 16 : i32
    %119 = vector.broadcast %c16_i32_61 : i32 to vector<9x9x4xi32>
    %120 = arith.cmpi sle, %112, %119 : vector<9x9x4xi32>
    %121 = arith.andi %118, %120 : vector<9x9x4xi1>
    %c1_i32_62 = arith.constant 1 : i32
    %122 = vector.broadcast %c1_i32_62 : i32 to vector<9x9x4xi32>
    %123 = arith.cmpi sge, %116, %122 : vector<9x9x4xi32>
    %124 = arith.andi %121, %123 : vector<9x9x4xi1>
    %c16_i32_63 = arith.constant 16 : i32
    %125 = vector.broadcast %c16_i32_63 : i32 to vector<9x9x4xi32>
    %126 = arith.cmpi sle, %116, %125 : vector<9x9x4xi32>
    %127 = arith.andi %124, %126 : vector<9x9x4xi1>
    %c0_64 = arith.constant 0 : index
    %c3 = arith.constant 3 : index
    %c0_65 = arith.constant 0 : index
    %c0_66 = arith.constant 0 : index
    %c0_67 = arith.constant 0 : index
    %128 = vector.load %arg1[%c0_64, %c3, %c0_65, %c0_66, %c0_67] : memref<1x4x9x9x4xf32, #tpu.memory_space<vmem>>, vector<1x1x9x9x4xf32>
    %129 = vector.shape_cast %128 : vector<1x1x9x9x4xf32> to vector<9x9x4xf32>
    %130 = arith.mulf %129, %3 : vector<9x9x4xf32>
    %131 = arith.addf %130, %7 : vector<9x9x4xf32>
    %cst_68 = arith.constant 0.000000e+00 : f32
    %132 = vector.broadcast %cst_68 : f32 to vector<9x9x4xf32>
    %133 = arith.cmpf oge, %131, %132 : vector<9x9x4xf32>
    %cst_69 = arith.constant 1.000000e-01 : f32
    %134 = vector.broadcast %cst_69 : f32 to vector<9x9x4xf32>
    %135 = arith.mulf %134, %131 : vector<9x9x4xf32>
    %136 = arith.select %133, %131, %135 : vector<9x9x4xi1>, vector<9x9x4xf32>
    %cst_70 = arith.constant 0.000000e+00 : f32
    %137 = vector.broadcast %cst_70 : f32 to vector<9x9x4xf32>
    %138 = arith.select %127, %136, %137 : vector<9x9x4xi1>, vector<9x9x4xf32>
    %c3_71 = arith.constant 3 : index
    %c0_72 = arith.constant 0 : index
    %c0_73 = arith.constant 0 : index
    %c0_74 = arith.constant 0 : index
    %139 = vector.load %arg11[%c3_71, %c0_72, %c0_73, %c0_74] : memref<4x9x9x4xf32, #tpu.memory_space<vmem>>, vector<1x9x9x4xf32>
    %140 = vector.shape_cast %139 : vector<1x9x9x4xf32> to vector<9x9x4xf32>
    %141 = vector.shape_cast %138 : vector<9x9x4xf32> to vector<1x9x9x4xf32>
    tpu.vector_store %arg11[%c3_71, %c0_72, %c0_73, %c0_74], %141 {strides = array<i32>} : memref<4x9x9x4xf32, #tpu.memory_space<vmem>>, vector<1x9x9x4xf32>,
    %cst_75 = arith.constant 0.000000e+00 : f32
    %142 = vector.broadcast %cst_75 : f32 to vector<64x8xf32>
    %c0_76 = arith.constant 0 : index
    %c0_77 = arith.constant 0 : index
    %c0_78 = arith.constant 0 : index
    %c0_79 = arith.constant 0 : index
    %143 = vector.load %arg11[%c0_76, %c0_77, %c0_78, %c0_79] : memref<4x9x9x4xf32, #tpu.memory_space<vmem>>, vector<1x8x8x4xf32>
    %144 = vector.shape_cast %143 : vector<1x8x8x4xf32> to vector<8x8x4xf32>
    %145 = vector.shape_cast %144 : vector<8x8x4xf32> to vector<64x4xf32>
    %c0_80 = arith.constant 0 : index
    %c0_81 = arith.constant 0 : index
    %c0_82 = arith.constant 0 : index
    %146 = vector.load %arg2[%c0_80, %c0_81, %c0_82] : memref<9x4x8xf32, #tpu.memory_space<vmem>>, vector<1x4x8xf32>
    %147 = vector.shape_cast %146 : vector<1x4x8xf32> to vector<4x8xf32>
    %cst_83 = arith.constant dense<0.000000e+00> : vector<64x8xf32>
    %148 = tpu.matmul %145, %147, %cst_83 {dimension_numbers = #tpu.dot_dimension_numbers<[1], [0], [0], [1], [0, 0, 1, 1], [], []>} : vector<64x4xf32>, vector<4x8xf32>, vector<64x8xf32> -> vector<64x8xf32>
    %149 = arith.addf %142, %148 : vector<64x8xf32>
    %c1_84 = arith.constant 1 : index
    %c0_85 = arith.constant 0 : index
    %c0_86 = arith.constant 0 : index
    %c0_87 = arith.constant 0 : index
    %150 = vector.load %arg11[%c1_84, %c0_85, %c0_86, %c0_87] : memref<4x9x9x4xf32, #tpu.memory_space<vmem>>, vector<1x8x8x4xf32>
    %151 = vector.shape_cast %150 : vector<1x8x8x4xf32> to vector<8x8x4xf32>
    %152 = vector.shape_cast %151 : vector<8x8x4xf32> to vector<64x4xf32>
    %c1_88 = arith.constant 1 : index
    %c0_89 = arith.constant 0 : index
    %c0_90 = arith.constant 0 : index
    %153 = vector.load %arg2[%c1_88, %c0_89, %c0_90] : memref<9x4x8xf32, #tpu.memory_space<vmem>>, vector<1x4x8xf32>
    %154 = vector.shape_cast %153 : vector<1x4x8xf32> to vector<4x8xf32>
    %cst_91 = arith.constant dense<0.000000e+00> : vector<64x8xf32>
    %155 = tpu.matmul %152, %154, %cst_91 {dimension_numbers = #tpu.dot_dimension_numbers<[1], [0], [0], [1], [0, 0, 1, 1], [], []>} : vector<64x4xf32>, vector<4x8xf32>, vector<64x8xf32> -> vector<64x8xf32>
    %156 = arith.addf %149, %155 : vector<64x8xf32>
    %c0_92 = arith.constant 0 : index
    %c0_93 = arith.constant 0 : index
    %c1_94 = arith.constant 1 : index
    %c0_95 = arith.constant 0 : index
    %157 = vector.load %arg11[%c0_92, %c0_93, %c1_94, %c0_95] : memref<4x9x9x4xf32, #tpu.memory_space<vmem>>, vector<1x8x8x4xf32>
    %158 = vector.shape_cast %157 : vector<1x8x8x4xf32> to vector<8x8x4xf32>
    %159 = vector.shape_cast %158 : vector<8x8x4xf32> to vector<64x4xf32>
    %c2_96 = arith.constant 2 : index
    %c0_97 = arith.constant 0 : index
    %c0_98 = arith.constant 0 : index
    %160 = vector.load %arg2[%c2_96, %c0_97, %c0_98] : memref<9x4x8xf32, #tpu.memory_space<vmem>>, vector<1x4x8xf32>
    %161 = vector.shape_cast %160 : vector<1x4x8xf32> to vector<4x8xf32>
    %cst_99 = arith.constant dense<0.000000e+00> : vector<64x8xf32>
    %162 = tpu.matmul %159, %161, %cst_99 {dimension_numbers = #tpu.dot_dimension_numbers<[1], [0], [0], [1], [0, 0, 1, 1], [], []>} : vector<64x4xf32>, vector<4x8xf32>, vector<64x8xf32> -> vector<64x8xf32>
    %163 = arith.addf %156, %162 : vector<64x8xf32>
    %c2_100 = arith.constant 2 : index
    %c0_101 = arith.constant 0 : index
    %c0_102 = arith.constant 0 : index
    %c0_103 = arith.constant 0 : index
    %164 = vector.load %arg11[%c2_100, %c0_101, %c0_102, %c0_103] : memref<4x9x9x4xf32, #tpu.memory_space<vmem>>, vector<1x8x8x4xf32>
    %165 = vector.shape_cast %164 : vector<1x8x8x4xf32> to vector<8x8x4xf32>
    %166 = vector.shape_cast %165 : vector<8x8x4xf32> to vector<64x4xf32>
    %c3_104 = arith.constant 3 : index
    %c0_105 = arith.constant 0 : index
    %c0_106 = arith.constant 0 : index
    %167 = vector.load %arg2[%c3_104, %c0_105, %c0_106] : memref<9x4x8xf32, #tpu.memory_space<vmem>>, vector<1x4x8xf32>
    %168 = vector.shape_cast %167 : vector<1x4x8xf32> to vector<4x8xf32>
    %cst_107 = arith.constant dense<0.000000e+00> : vector<64x8xf32>
    %169 = tpu.matmul %166, %168, %cst_107 {dimension_numbers = #tpu.dot_dimension_numbers<[1], [0], [0], [1], [0, 0, 1, 1], [], []>} : vector<64x4xf32>, vector<4x8xf32>, vector<64x8xf32> -> vector<64x8xf32>
    %170 = arith.addf %163, %169 : vector<64x8xf32>
    %c3_108 = arith.constant 3 : index
    %c0_109 = arith.constant 0 : index
    %c0_110 = arith.constant 0 : index
    %c0_111 = arith.constant 0 : index
    %171 = vector.load %arg11[%c3_108, %c0_109, %c0_110, %c0_111] : memref<4x9x9x4xf32, #tpu.memory_space<vmem>>, vector<1x8x8x4xf32>
    %172 = vector.shape_cast %171 : vector<1x8x8x4xf32> to vector<8x8x4xf32>
    %173 = vector.shape_cast %172 : vector<8x8x4xf32> to vector<64x4xf32>
    %c4 = arith.constant 4 : index
    %c0_112 = arith.constant 0 : index
    %c0_113 = arith.constant 0 : index
    %174 = vector.load %arg2[%c4, %c0_112, %c0_113] : memref<9x4x8xf32, #tpu.memory_space<vmem>>, vector<1x4x8xf32>
    %175 = vector.shape_cast %174 : vector<1x4x8xf32> to vector<4x8xf32>
    %cst_114 = arith.constant dense<0.000000e+00> : vector<64x8xf32>
    %176 = tpu.matmul %173, %175, %cst_114 {dimension_numbers = #tpu.dot_dimension_numbers<[1], [0], [0], [1], [0, 0, 1, 1], [], []>} : vector<64x4xf32>, vector<4x8xf32>, vector<64x8xf32> -> vector<64x8xf32>
    %177 = arith.addf %170, %176 : vector<64x8xf32>
    %c2_115 = arith.constant 2 : index
    %c0_116 = arith.constant 0 : index
    %c1_117 = arith.constant 1 : index
    %c0_118 = arith.constant 0 : index
    %178 = vector.load %arg11[%c2_115, %c0_116, %c1_117, %c0_118] : memref<4x9x9x4xf32, #tpu.memory_space<vmem>>, vector<1x8x8x4xf32>
    %179 = vector.shape_cast %178 : vector<1x8x8x4xf32> to vector<8x8x4xf32>
    %180 = vector.shape_cast %179 : vector<8x8x4xf32> to vector<64x4xf32>
    %c5 = arith.constant 5 : index
    %c0_119 = arith.constant 0 : index
    %c0_120 = arith.constant 0 : index
    %181 = vector.load %arg2[%c5, %c0_119, %c0_120] : memref<9x4x8xf32, #tpu.memory_space<vmem>>, vector<1x4x8xf32>
    %182 = vector.shape_cast %181 : vector<1x4x8xf32> to vector<4x8xf32>
    %cst_121 = arith.constant dense<0.000000e+00> : vector<64x8xf32>
    %183 = tpu.matmul %180, %182, %cst_121 {dimension_numbers = #tpu.dot_dimension_numbers<[1], [0], [0], [1], [0, 0, 1, 1], [], []>} : vector<64x4xf32>, vector<4x8xf32>, vector<64x8xf32> -> vector<64x8xf32>
    %184 = arith.addf %177, %183 : vector<64x8xf32>
    %c0_122 = arith.constant 0 : index
    %c1_123 = arith.constant 1 : index
    %c0_124 = arith.constant 0 : index
    %c0_125 = arith.constant 0 : index
    %185 = vector.load %arg11[%c0_122, %c1_123, %c0_124, %c0_125] : memref<4x9x9x4xf32, #tpu.memory_space<vmem>>, vector<1x8x8x4xf32>
    %186 = vector.shape_cast %185 : vector<1x8x8x4xf32> to vector<8x8x4xf32>
    %187 = vector.shape_cast %186 : vector<8x8x4xf32> to vector<64x4xf32>
    %c6 = arith.constant 6 : index
    %c0_126 = arith.constant 0 : index
    %c0_127 = arith.constant 0 : index
    %188 = vector.load %arg2[%c6, %c0_126, %c0_127] : memref<9x4x8xf32, #tpu.memory_space<vmem>>, vector<1x4x8xf32>
    %189 = vector.shape_cast %188 : vector<1x4x8xf32> to vector<4x8xf32>
    %cst_128 = arith.constant dense<0.000000e+00> : vector<64x8xf32>
    %190 = tpu.matmul %187, %189, %cst_128 {dimension_numbers = #tpu.dot_dimension_numbers<[1], [0], [0], [1], [0, 0, 1, 1], [], []>} : vector<64x4xf32>, vector<4x8xf32>, vector<64x8xf32> -> vector<64x8xf32>
    %191 = arith.addf %184, %190 : vector<64x8xf32>
    %c1_129 = arith.constant 1 : index
    %c1_130 = arith.constant 1 : index
    %c0_131 = arith.constant 0 : index
    %c0_132 = arith.constant 0 : index
    %192 = vector.load %arg11[%c1_129, %c1_130, %c0_131, %c0_132] : memref<4x9x9x4xf32, #tpu.memory_space<vmem>>, vector<1x8x8x4xf32>
    %193 = vector.shape_cast %192 : vector<1x8x8x4xf32> to vector<8x8x4xf32>
    %194 = vector.shape_cast %193 : vector<8x8x4xf32> to vector<64x4xf32>
    %c7 = arith.constant 7 : index
    %c0_133 = arith.constant 0 : index
    %c0_134 = arith.constant 0 : index
    %195 = vector.load %arg2[%c7, %c0_133, %c0_134] : memref<9x4x8xf32, #tpu.memory_space<vmem>>, vector<1x4x8xf32>
    %196 = vector.shape_cast %195 : vector<1x4x8xf32> to vector<4x8xf32>
    %cst_135 = arith.constant dense<0.000000e+00> : vector<64x8xf32>
    %197 = tpu.matmul %194, %196, %cst_135 {dimension_numbers = #tpu.dot_dimension_numbers<[1], [0], [0], [1], [0, 0, 1, 1], [], []>} : vector<64x4xf32>, vector<4x8xf32>, vector<64x8xf32> -> vector<64x8xf32>
    %198 = arith.addf %191, %197 : vector<64x8xf32>
    %c0_136 = arith.constant 0 : index
    %c1_137 = arith.constant 1 : index
    %c1_138 = arith.constant 1 : index
    %c0_139 = arith.constant 0 : index
    %199 = vector.load %arg11[%c0_136, %c1_137, %c1_138, %c0_139] : memref<4x9x9x4xf32, #tpu.memory_space<vmem>>, vector<1x8x8x4xf32>
    %200 = vector.shape_cast %199 : vector<1x8x8x4xf32> to vector<8x8x4xf32>
    %201 = vector.shape_cast %200 : vector<8x8x4xf32> to vector<64x4xf32>
    %c8 = arith.constant 8 : index
    %c0_140 = arith.constant 0 : index
    %c0_141 = arith.constant 0 : index
    %202 = vector.load %arg2[%c8, %c0_140, %c0_141] : memref<9x4x8xf32, #tpu.memory_space<vmem>>, vector<1x4x8xf32>
    %203 = vector.shape_cast %202 : vector<1x4x8xf32> to vector<4x8xf32>
    %cst_142 = arith.constant dense<0.000000e+00> : vector<64x8xf32>
    %204 = tpu.matmul %201, %203, %cst_142 {dimension_numbers = #tpu.dot_dimension_numbers<[1], [0], [0], [1], [0, 0, 1, 1], [], []>} : vector<64x4xf32>, vector<4x8xf32>, vector<64x8xf32> -> vector<64x8xf32>
    %205 = arith.addf %198, %204 : vector<64x8xf32>
    %c0_143 = arith.constant 0 : index
    %c0_144 = arith.constant 0 : index
    %206 = vector.load %arg7[%c0_143, %c0_144] : memref<1x8xf32, #tpu.memory_space<vmem>>, vector<1x8xf32>
    %207 = vector.broadcast %206 : vector<1x8xf32> to vector<64x8xf32>
    %208 = arith.mulf %205, %207 : vector<64x8xf32>
    %c0_145 = arith.constant 0 : index
    %c0_146 = arith.constant 0 : index
    %209 = vector.load %arg8[%c0_145, %c0_146] : memref<1x8xf32, #tpu.memory_space<vmem>>, vector<1x8xf32>
    %210 = vector.broadcast %209 : vector<1x8xf32> to vector<64x8xf32>
    %211 = arith.addf %208, %210 : vector<64x8xf32>
    %cst_147 = arith.constant 0.000000e+00 : f32
    %212 = vector.broadcast %cst_147 : f32 to vector<64x8xf32>
    %213 = arith.cmpf oge, %211, %212 : vector<64x8xf32>
    %cst_148 = arith.constant 1.000000e-01 : f32
    %214 = vector.broadcast %cst_148 : f32 to vector<64x8xf32>
    %215 = arith.mulf %214, %211 : vector<64x8xf32>
    %216 = arith.select %213, %211, %215 : vector<64x8xi1>, vector<64x8xf32>
    %217 = vector.shape_cast %216 : vector<64x8xf32> to vector<8x8x8xf32>
    %cst_149 = arith.constant 0.000000e+00 : f32
    %218 = vector.broadcast %cst_149 : f32 to vector<1x10x8xf32>
    %cst_150 = arith.constant 0.000000e+00 : f32
    %219 = vector.broadcast %cst_150 : f32 to vector<8x1x8xf32>
    %c0_151 = arith.constant 0 : index
    %c0_152 = arith.constant 0 : index
    %c0_153 = arith.constant 0 : index
    %220 = vector.load %arg10[%c0_151, %c0_152, %c0_153] : memref<10x10x8xf32, #tpu.memory_space<vmem>>, vector<1x10x8xf32>
    tpu.vector_store %arg10[%c0_151, %c0_152, %c0_153], %218 {strides = array<i32>} : memref<10x10x8xf32, #tpu.memory_space<vmem>>, vector<1x10x8xf32>,
    %c9 = arith.constant 9 : index
    %c0_154 = arith.constant 0 : index
    %c0_155 = arith.constant 0 : index
    %221 = vector.load %arg10[%c9, %c0_154, %c0_155] : memref<10x10x8xf32, #tpu.memory_space<vmem>>, vector<1x10x8xf32>
    tpu.vector_store %arg10[%c9, %c0_154, %c0_155], %218 {strides = array<i32>} : memref<10x10x8xf32, #tpu.memory_space<vmem>>, vector<1x10x8xf32>,
    %c1_156 = arith.constant 1 : index
    %c0_157 = arith.constant 0 : index
    %c0_158 = arith.constant 0 : index
    %222 = vector.load %arg10[%c1_156, %c0_157, %c0_158] : memref<10x10x8xf32, #tpu.memory_space<vmem>>, vector<8x1x8xf32>
    tpu.vector_store %arg10[%c1_156, %c0_157, %c0_158], %219 {strides = array<i32>} : memref<10x10x8xf32, #tpu.memory_space<vmem>>, vector<8x1x8xf32>,
    %c1_159 = arith.constant 1 : index
    %c9_160 = arith.constant 9 : index
    %c0_161 = arith.constant 0 : index
    %223 = vector.load %arg10[%c1_159, %c9_160, %c0_161] : memref<10x10x8xf32, #tpu.memory_space<vmem>>, vector<8x1x8xf32>
    tpu.vector_store %arg10[%c1_159, %c9_160, %c0_161], %219 {strides = array<i32>} : memref<10x10x8xf32, #tpu.memory_space<vmem>>, vector<8x1x8xf32>,
    %c1_162 = arith.constant 1 : index
    %c1_163 = arith.constant 1 : index
    %c0_164 = arith.constant 0 : index
    %224 = vector.load %arg10[%c1_162, %c1_163, %c0_164] : memref<10x10x8xf32, #tpu.memory_space<vmem>>, vector<8x8x8xf32>
    tpu.vector_store %arg10[%c1_162, %c1_163, %c0_164], %217 {strides = array<i32>} : memref<10x10x8xf32, #tpu.memory_space<vmem>>, vector<8x8x8xf32>,
    %c3_165 = arith.constant 3 : index
    %c0_166 = arith.constant 0 : index
    %c0_167 = arith.constant 0 : index
    %c0_168 = arith.constant 0 : index
    %225 = vector.load %arg11[%c3_165, %c0_166, %c0_167, %c0_168] : memref<4x9x9x4xf32, #tpu.memory_space<vmem>>, vector<1x8x8x4xf32>
    %226 = vector.shape_cast %225 : vector<1x8x8x4xf32> to vector<8x8x4xf32>
    %227 = vector.shape_cast %226 : vector<8x8x4xf32> to vector<64x4xf32>
    %c0_169 = arith.constant 0 : index
    %c0_170 = arith.constant 0 : index
    %228 = vector.load %arg4[%c0_169, %c0_170] : memref<4x8xf32, #tpu.memory_space<vmem>>, vector<4x8xf32>
    %cst_171 = arith.constant dense<0.000000e+00> : vector<64x8xf32>
    %229 = tpu.matmul %227, %228, %cst_171 {dimension_numbers = #tpu.dot_dimension_numbers<[1], [0], [0], [1], [0, 0, 1, 1], [], []>} : vector<64x4xf32>, vector<4x8xf32>, vector<64x8xf32> -> vector<64x8xf32>
    %c0_172 = arith.constant 0 : index
    %c0_173 = arith.constant 0 : index
    %c0_174 = arith.constant 0 : index
    %230 = vector.load %arg10[%c0_172, %c0_173, %c0_174] : memref<10x10x8xf32, #tpu.memory_space<vmem>>, vector<8x8x8xf32>
    %231 = vector.shape_cast %230 : vector<8x8x8xf32> to vector<64x8xf32>
    %c0_175 = arith.constant 0 : index
    %c0_176 = arith.constant 0 : index
    %c0_177 = arith.constant 0 : index
    %232 = vector.load %arg3[%c0_175, %c0_176, %c0_177] : memref<9x8x8xf32, #tpu.memory_space<vmem>>, vector<1x8x8xf32>
    %233 = vector.shape_cast %232 : vector<1x8x8xf32> to vector<8x8xf32>
    %cst_178 = arith.constant dense<0.000000e+00> : vector<64x8xf32>
    %234 = tpu.matmul %231, %233, %cst_178 {dimension_numbers = #tpu.dot_dimension_numbers<[1], [0], [0], [1], [0, 0, 1, 1], [], []>} : vector<64x8xf32>, vector<8x8xf32>, vector<64x8xf32> -> vector<64x8xf32>
    %235 = arith.addf %229, %234 : vector<64x8xf32>
    %c0_179 = arith.constant 0 : index
    %c1_180 = arith.constant 1 : index
    %c0_181 = arith.constant 0 : index
    %236 = vector.load %arg10[%c0_179, %c1_180, %c0_181] : memref<10x10x8xf32, #tpu.memory_space<vmem>>, vector<8x8x8xf32>
    %237 = vector.shape_cast %236 : vector<8x8x8xf32> to vector<64x8xf32>
    %c1_182 = arith.constant 1 : index
    %c0_183 = arith.constant 0 : index
    %c0_184 = arith.constant 0 : index
    %238 = vector.load %arg3[%c1_182, %c0_183, %c0_184] : memref<9x8x8xf32, #tpu.memory_space<vmem>>, vector<1x8x8xf32>
    %239 = vector.shape_cast %238 : vector<1x8x8xf32> to vector<8x8xf32>
    %cst_185 = arith.constant dense<0.000000e+00> : vector<64x8xf32>
    %240 = tpu.matmul %237, %239, %cst_185 {dimension_numbers = #tpu.dot_dimension_numbers<[1], [0], [0], [1], [0, 0, 1, 1], [], []>} : vector<64x8xf32>, vector<8x8xf32>, vector<64x8xf32> -> vector<64x8xf32>
    %241 = arith.addf %235, %240 : vector<64x8xf32>
    %c0_186 = arith.constant 0 : index
    %c2_187 = arith.constant 2 : index
    %c0_188 = arith.constant 0 : index
    %242 = vector.load %arg10[%c0_186, %c2_187, %c0_188] : memref<10x10x8xf32, #tpu.memory_space<vmem>>, vector<8x8x8xf32>
    %243 = vector.shape_cast %242 : vector<8x8x8xf32> to vector<64x8xf32>
    %c2_189 = arith.constant 2 : index
    %c0_190 = arith.constant 0 : index
    %c0_191 = arith.constant 0 : index
    %244 = vector.load %arg3[%c2_189, %c0_190, %c0_191] : memref<9x8x8xf32, #tpu.memory_space<vmem>>, vector<1x8x8xf32>
    %245 = vector.shape_cast %244 : vector<1x8x8xf32> to vector<8x8xf32>
    %cst_192 = arith.constant dense<0.000000e+00> : vector<64x8xf32>
    %246 = tpu.matmul %243, %245, %cst_192 {dimension_numbers = #tpu.dot_dimension_numbers<[1], [0], [0], [1], [0, 0, 1, 1], [], []>} : vector<64x8xf32>, vector<8x8xf32>, vector<64x8xf32> -> vector<64x8xf32>
    %247 = arith.addf %241, %246 : vector<64x8xf32>
    %c1_193 = arith.constant 1 : index
    %c0_194 = arith.constant 0 : index
    %c0_195 = arith.constant 0 : index
    %248 = vector.load %arg10[%c1_193, %c0_194, %c0_195] : memref<10x10x8xf32, #tpu.memory_space<vmem>>, vector<8x8x8xf32>
    %249 = vector.shape_cast %248 : vector<8x8x8xf32> to vector<64x8xf32>
    %c3_196 = arith.constant 3 : index
    %c0_197 = arith.constant 0 : index
    %c0_198 = arith.constant 0 : index
    %250 = vector.load %arg3[%c3_196, %c0_197, %c0_198] : memref<9x8x8xf32, #tpu.memory_space<vmem>>, vector<1x8x8xf32>
    %251 = vector.shape_cast %250 : vector<1x8x8xf32> to vector<8x8xf32>
    %cst_199 = arith.constant dense<0.000000e+00> : vector<64x8xf32>
    %252 = tpu.matmul %249, %251, %cst_199 {dimension_numbers = #tpu.dot_dimension_numbers<[1], [0], [0], [1], [0, 0, 1, 1], [], []>} : vector<64x8xf32>, vector<8x8xf32>, vector<64x8xf32> -> vector<64x8xf32>
    %253 = arith.addf %247, %252 : vector<64x8xf32>
    %c1_200 = arith.constant 1 : index
    %c1_201 = arith.constant 1 : index
    %c0_202 = arith.constant 0 : index
    %254 = vector.load %arg10[%c1_200, %c1_201, %c0_202] : memref<10x10x8xf32, #tpu.memory_space<vmem>>, vector<8x8x8xf32>
    %255 = vector.shape_cast %254 : vector<8x8x8xf32> to vector<64x8xf32>
    %c4_203 = arith.constant 4 : index
    %c0_204 = arith.constant 0 : index
    %c0_205 = arith.constant 0 : index
    %256 = vector.load %arg3[%c4_203, %c0_204, %c0_205] : memref<9x8x8xf32, #tpu.memory_space<vmem>>, vector<1x8x8xf32>
    %257 = vector.shape_cast %256 : vector<1x8x8xf32> to vector<8x8xf32>
    %cst_206 = arith.constant dense<0.000000e+00> : vector<64x8xf32>
    %258 = tpu.matmul %255, %257, %cst_206 {dimension_numbers = #tpu.dot_dimension_numbers<[1], [0], [0], [1], [0, 0, 1, 1], [], []>} : vector<64x8xf32>, vector<8x8xf32>, vector<64x8xf32> -> vector<64x8xf32>
    %259 = arith.addf %253, %258 : vector<64x8xf32>
    %c1_207 = arith.constant 1 : index
    %c2_208 = arith.constant 2 : index
    %c0_209 = arith.constant 0 : index
    %260 = vector.load %arg10[%c1_207, %c2_208, %c0_209] : memref<10x10x8xf32, #tpu.memory_space<vmem>>, vector<8x8x8xf32>
    %261 = vector.shape_cast %260 : vector<8x8x8xf32> to vector<64x8xf32>
    %c5_210 = arith.constant 5 : index
    %c0_211 = arith.constant 0 : index
    %c0_212 = arith.constant 0 : index
    %262 = vector.load %arg3[%c5_210, %c0_211, %c0_212] : memref<9x8x8xf32, #tpu.memory_space<vmem>>, vector<1x8x8xf32>
    %263 = vector.shape_cast %262 : vector<1x8x8xf32> to vector<8x8xf32>
    %cst_213 = arith.constant dense<0.000000e+00> : vector<64x8xf32>
    %264 = tpu.matmul %261, %263, %cst_213 {dimension_numbers = #tpu.dot_dimension_numbers<[1], [0], [0], [1], [0, 0, 1, 1], [], []>} : vector<64x8xf32>, vector<8x8xf32>, vector<64x8xf32> -> vector<64x8xf32>
    %265 = arith.addf %259, %264 : vector<64x8xf32>
    %c2_214 = arith.constant 2 : index
    %c0_215 = arith.constant 0 : index
    %c0_216 = arith.constant 0 : index
    %266 = vector.load %arg10[%c2_214, %c0_215, %c0_216] : memref<10x10x8xf32, #tpu.memory_space<vmem>>, vector<8x8x8xf32>
    %267 = vector.shape_cast %266 : vector<8x8x8xf32> to vector<64x8xf32>
    %c6_217 = arith.constant 6 : index
    %c0_218 = arith.constant 0 : index
    %c0_219 = arith.constant 0 : index
    %268 = vector.load %arg3[%c6_217, %c0_218, %c0_219] : memref<9x8x8xf32, #tpu.memory_space<vmem>>, vector<1x8x8xf32>
    %269 = vector.shape_cast %268 : vector<1x8x8xf32> to vector<8x8xf32>
    %cst_220 = arith.constant dense<0.000000e+00> : vector<64x8xf32>
    %270 = tpu.matmul %267, %269, %cst_220 {dimension_numbers = #tpu.dot_dimension_numbers<[1], [0], [0], [1], [0, 0, 1, 1], [], []>} : vector<64x8xf32>, vector<8x8xf32>, vector<64x8xf32> -> vector<64x8xf32>
    %271 = arith.addf %265, %270 : vector<64x8xf32>
    %c2_221 = arith.constant 2 : index
    %c1_222 = arith.constant 1 : index
    %c0_223 = arith.constant 0 : index
    %272 = vector.load %arg10[%c2_221, %c1_222, %c0_223] : memref<10x10x8xf32, #tpu.memory_space<vmem>>, vector<8x8x8xf32>
    %273 = vector.shape_cast %272 : vector<8x8x8xf32> to vector<64x8xf32>
    %c7_224 = arith.constant 7 : index
    %c0_225 = arith.constant 0 : index
    %c0_226 = arith.constant 0 : index
    %274 = vector.load %arg3[%c7_224, %c0_225, %c0_226] : memref<9x8x8xf32, #tpu.memory_space<vmem>>, vector<1x8x8xf32>
    %275 = vector.shape_cast %274 : vector<1x8x8xf32> to vector<8x8xf32>
    %cst_227 = arith.constant dense<0.000000e+00> : vector<64x8xf32>
    %276 = tpu.matmul %273, %275, %cst_227 {dimension_numbers = #tpu.dot_dimension_numbers<[1], [0], [0], [1], [0, 0, 1, 1], [], []>} : vector<64x8xf32>, vector<8x8xf32>, vector<64x8xf32> -> vector<64x8xf32>
    %277 = arith.addf %271, %276 : vector<64x8xf32>
    %c2_228 = arith.constant 2 : index
    %c2_229 = arith.constant 2 : index
    %c0_230 = arith.constant 0 : index
    %278 = vector.load %arg10[%c2_228, %c2_229, %c0_230] : memref<10x10x8xf32, #tpu.memory_space<vmem>>, vector<8x8x8xf32>
    %279 = vector.shape_cast %278 : vector<8x8x8xf32> to vector<64x8xf32>
    %c8_231 = arith.constant 8 : index
    %c0_232 = arith.constant 0 : index
    %c0_233 = arith.constant 0 : index
    %280 = vector.load %arg3[%c8_231, %c0_232, %c0_233] : memref<9x8x8xf32, #tpu.memory_space<vmem>>, vector<1x8x8xf32>
    %281 = vector.shape_cast %280 : vector<1x8x8xf32> to vector<8x8xf32>
    %cst_234 = arith.constant dense<0.000000e+00> : vector<64x8xf32>
    %282 = tpu.matmul %279, %281, %cst_234 {dimension_numbers = #tpu.dot_dimension_numbers<[1], [0], [0], [1], [0, 0, 1, 1], [], []>} : vector<64x8xf32>, vector<8x8xf32>, vector<64x8xf32> -> vector<64x8xf32>
    %283 = arith.addf %277, %282 : vector<64x8xf32>
    %c0_235 = arith.constant 0 : index
    %c0_236 = arith.constant 0 : index
    %c0_237 = arith.constant 0 : index
    %284 = vector.load %arg9[%c0_235, %c0_236, %c0_237] : memref<1x64x8xf32, #tpu.memory_space<vmem>>, vector<1x64x8xf32>
    %285 = vector.shape_cast %284 : vector<1x64x8xf32> to vector<64x8xf32>
    %286 = vector.shape_cast %283 : vector<64x8xf32> to vector<1x64x8xf32>
    tpu.vector_store %arg9[%c0_235, %c0_236, %c0_237], %286 {strides = array<i32>} : memref<1x64x8xf32, #tpu.memory_space<vmem>>, vector<1x64x8xf32>,
    return
  }
  func.func @transform_0(%arg0: i32) -> (i32, i32, i32, i32, i32) {
    %c0_i32 = arith.constant 0 : i32
    %c0_i32_0 = arith.constant 0 : i32
    %c0_i32_1 = arith.constant 0 : i32
    %c0_i32_2 = arith.constant 0 : i32
    %c0_i32_3 = arith.constant 0 : i32
    return %arg0, %c0_i32, %c0_i32_0, %c0_i32_1, %c0_i32_2 : i32, i32, i32, i32, i32
  }
  func.func @transform_1(%arg0: i32) -> (i32, i32, i32) {
    %c0_i32 = arith.constant 0 : i32
    %c0_i32_0 = arith.constant 0 : i32
    %c0_i32_1 = arith.constant 0 : i32
    %c0_i32_2 = arith.constant 0 : i32
    return %c0_i32, %c0_i32_0, %c0_i32_1 : i32, i32, i32
  }
  func.func @transform_2(%arg0: i32) -> (i32, i32, i32) {
    %c0_i32 = arith.constant 0 : i32
    %c0_i32_0 = arith.constant 0 : i32
    %c0_i32_1 = arith.constant 0 : i32
    %c0_i32_2 = arith.constant 0 : i32
    return %c0_i32, %c0_i32_0, %c0_i32_1 : i32, i32, i32
  }
  func.func @transform_3(%arg0: i32) -> (i32, i32) {
    %c0_i32 = arith.constant 0 : i32
    %c0_i32_0 = arith.constant 0 : i32
    %c0_i32_1 = arith.constant 0 : i32
    return %c0_i32, %c0_i32_0 : i32, i32
  }
  func.func @transform_4(%arg0: i32) -> (i32, i32) {
    %c0_i32 = arith.constant 0 : i32
    %c0_i32_0 = arith.constant 0 : i32
    %c0_i32_1 = arith.constant 0 : i32
    return %c0_i32, %c0_i32_0 : i32, i32
  }
  func.func @transform_5(%arg0: i32) -> (i32, i32) {
    %c0_i32 = arith.constant 0 : i32
    %c0_i32_0 = arith.constant 0 : i32
    %c0_i32_1 = arith.constant 0 : i32
    return %c0_i32, %c0_i32_0 : i32, i32
  }
  func.func @transform_6(%arg0: i32) -> (i32, i32) {
    %c0_i32 = arith.constant 0 : i32
    %c0_i32_0 = arith.constant 0 : i32
    %c0_i32_1 = arith.constant 0 : i32
    return %c0_i32, %c0_i32_0 : i32, i32
  }
  func.func @transform_7(%arg0: i32) -> (i32, i32) {
    %c0_i32 = arith.constant 0 : i32
    %c0_i32_0 = arith.constant 0 : i32
    %c0_i32_1 = arith.constant 0 : i32
    return %c0_i32, %c0_i32_0 : i32, i32
  }
  func.func @transform_8(%arg0: i32) -> (i32, i32, i32) {
    %c0_i32 = arith.constant 0 : i32
    %c0_i32_0 = arith.constant 0 : i32
    %c0_i32_1 = arith.constant 0 : i32
    return %arg0, %c0_i32, %c0_i32_0 : i32, i32, i32
  }
}

</mosaic_0001>

<llo_original>
// kernel: basic_block_forward.1
$region0: #{basic_block_forward.1}
  #allocation0 [shape = 'u32[]', space=smem, size = 0x4, offset = 0x4, fixed_abs, tag = 'smem constant byte address 0x4 - core index']
  #allocation1 [shape = 'u32[72,128]{1,0:T(1,128)}', space=vmem, size = 0x9000, scoped, tag = 'internal scratch']
  #allocation2 [shape = 'f32[10,10,8]{2,1,0:T(8,128)}', space=vmem, size = 0x14000, scoped, tag = 'scratch operand']
  #allocation3 [shape = 'f32[4,9,9,4]{3,2,1,0:T(8,128)}', space=vmem, size = 0x48000, scoped, tag = 'scratch operand']
  %s0 = inlined_call_operand.vmem [shape: f32[2,4,9,9,4], index: 0, kind: input, shape index: {}]
  %s1 = inlined_call_operand.vmem [shape: f32[9,4,8], index: 1, kind: input, shape index: {}]
  %s2 = inlined_call_operand.vmem [shape: f32[9,8,8], index: 2, kind: input, shape index: {}]
  %s3 = inlined_call_operand.vmem [shape: f32[4,8], index: 3, kind: input, shape index: {}]
  %s4 = inlined_call_operand.vmem [shape: f32[1,4], index: 4, kind: input, shape index: {}]
  %s5 = inlined_call_operand.vmem [shape: f32[1,4], index: 5, kind: input, shape index: {}]
  %s6 = inlined_call_operand.vmem [shape: f32[1,8], index: 6, kind: input, shape index: {}]
  %s7 = inlined_call_operand.vmem [shape: f32[1,8], index: 7, kind: input, shape index: {}]
  %s8 = inlined_call_operand.vmem [shape: f32[2,64,8], index: 8, kind: output, shape index: {}]
  %s9 = sld [smem:[#allocation0]]
  $region65: #{basic_block_forward.1} parent=0
    _
  %s11 = ssub.s32 1, %s9
  %s12 = scalar_select 0, %s11, %s9
  loop: start=0, step=1, limit=4
  $region2: #{basic_block_forward.1} parent=0 // loop_pre_header
    _
  $region3: #{basic_block_forward.1} parent=0 // loop_header
    %s14 = sphi 0, %s18
    %p15 = scmp.ge.s32.totalorder %s14, 4
    %s24 = sphi 0, %s26
    %s27 = sphi 0, %s24
    %s28 = sphi 0, %s27
    %s44 = sphi 0, %s28
    %s48 = sphi 0, %s48
    %s50 = sphi 0, %s48
    %s51 = sphi 0, %s50
    %s65 = sphi 0, %s51
    %s69 = sphi 0, %s69
    %s71 = sphi 0, %s69
    %s72 = sphi 0, %s71
    %s86 = sphi 0, %s72
    %s90 = sphi 0, %s90
    %s92 = sphi 0, %s90
    %s93 = sphi 0, %s92
    %s107 = sphi 0, %s93
    %s111 = sphi 0, %s111
    %s113 = sphi 0, %s111
    %s114 = sphi 0, %s113
    %s128 = sphi 0, %s114
    %s132 = sphi 0, %s132
    %s134 = sphi 0, %s132
    %s135 = sphi 0, %s134
    %s149 = sphi 0, %s135
    %s153 = sphi 0, %s153
    %s155 = sphi 0, %s153
    %s156 = sphi 0, %s155
    %s170 = sphi 0, %s156
    %s174 = sphi 0, %s174
    %s176 = sphi 0, %s174
    %s177 = sphi 0, %s176
    %s191 = sphi 0, %s177
    %s197 = sphi 0, %s199
    %s200 = sphi 0, %s197
    %s201 = sphi 0, %s200
    %s217 = sphi 0, %s201
  $region4: #{basic_block_forward.1} parent=0 // loop_header_branch
    %17 = sbr.rel (%p15) target = $region8
  $region5: #{basic_block_forward.1} parent=0 // loop_body
    %s19 = ssub.s32 %s14, 1
    %s20 = ssub.s32 %s14, 2
    %s21 = sadd.s32 %s14, 1
    %s22 = ssub.s32 %s14, %s21
    %p23 = scmp.eq.s32.totalorder %s22, 0
    %s25 = sadd.s32 %s24, 1
    %s26 = scalar_select %p23, %s24, %s25
    %p29 = pneg %p23
    %p30 = scmp.eq.s32.totalorder %s14, 1
    %p31 = por %p29, %p30
    %p32 = scmp.ne.s32.totalorder %s24, %s27
    %p33 = scmp.eq.s32.totalorder %s14, 0
    %p34 = por %p32, %p33
    %p35 = scmp.ne.s32.totalorder %s24, %s27
    %p36 = scmp.eq.s32.totalorder %s19, 1
    %p37 = por %p35, %p36
    %p38 = scmp.ne.s32.totalorder %s27, %s28
    %p39 = scmp.eq.s32.totalorder %s19, 0
    %p40 = por %p38, %p39
    %p41 = scmp.ne.s32.totalorder %s27, %s28
    %p42 = scmp.eq.s32.totalorder %s20, 1
    %p43 = por %p41, %p42
    %p45 = scmp.ne.s32.totalorder %s28, %s44
    %p46 = scmp.eq.s32.totalorder %s20, 0
    %p47 = por %p45, %p46
    %s49 = sadd.s32 %s48, 1
    %p52 = scmp.eq.s32.totalorder %s14, 1
    %p53 = scmp.ne.s32.totalorder %s48, %s50
    %p54 = scmp.eq.s32.totalorder %s14, 0
    %p55 = por %p53, %p54
    %p56 = scmp.ne.s32.totalorder %s48, %s50
    %p57 = scmp.eq.s32.totalorder %s19, 1
    %p58 = por %p56, %p57
    %p59 = scmp.ne.s32.totalorder %s50, %s51
    %p60 = scmp.eq.s32.totalorder %s19, 0
    %p61 = por %p59, %p60
    %p62 = scmp.ne.s32.totalorder %s50, %s51
    %p63 = scmp.eq.s32.totalorder %s20, 1
    %p64 = por %p62, %p63
    %p66 = scmp.ne.s32.totalorder %s51, %s65
    %p67 = scmp.eq.s32.totalorder %s20, 0
    %p68 = por %p66, %p67
    %s70 = sadd.s32 %s69, 1
    %p73 = scmp.eq.s32.totalorder %s14, 1
    %p74 = scmp.ne.s32.totalorder %s69, %s71
    %p75 = scmp.eq.s32.totalorder %s14, 0
    %p76 = por %p74, %p75
    %p77 = scmp.ne.s32.totalorder %s69, %s71
    %p78 = scmp.eq.s32.totalorder %s19, 1
    %p79 = por %p77, %p78
    %p80 = scmp.ne.s32.totalorder %s71, %s72
    %p81 = scmp.eq.s32.totalorder %s19, 0
    %p82 = por %p80, %p81
    %p83 = scmp.ne.s32.totalorder %s71, %s72
    %p84 = scmp.eq.s32.totalorder %s20, 1
    %p85 = por %p83, %p84
    %p87 = scmp.ne.s32.totalorder %s72, %s86
    %p88 = scmp.eq.s32.totalorder %s20, 0
    %p89 = por %p87, %p88
    %s91 = sadd.s32 %s90, 1
    %p94 = scmp.eq.s32.totalorder %s14, 1
    %p95 = scmp.ne.s32.totalorder %s90, %s92
    %p96 = scmp.eq.s32.totalorder %s14, 0
    %p97 = por %p95, %p96
    %p98 = scmp.ne.s32.totalorder %s90, %s92
    %p99 = scmp.eq.s32.totalorder %s19, 1
    %p100 = por %p98, %p99
    %p101 = scmp.ne.s32.totalorder %s92, %s93
    %p102 = scmp.eq.s32.totalorder %s19, 0
    %p103 = por %p101, %p102
    %p104 = scmp.ne.s32.totalorder %s92, %s93
    %p105 = scmp.eq.s32.totalorder %s20, 1
    %p106 = por %p104, %p105
    %p108 = scmp.ne.s32.totalorder %s93, %s107
    %p109 = scmp.eq.s32.totalorder %s20, 0
    %p110 = por %p108, %p109
    %s112 = sadd.s32 %s111, 1
    %p115 = scmp.eq.s32.totalorder %s14, 1
    %p116 = scmp.ne.s32.totalorder %s111, %s113
    %p117 = scmp.eq.s32.totalorder %s14, 0
    %p118 = por %p116, %p117
    %p119 = scmp.ne.s32.totalorder %s111, %s113
    %p120 = scmp.eq.s32.totalorder %s19, 1
    %p121 = por %p119, %p120
    %p122 = scmp.ne.s32.totalorder %s113, %s114
    %p123 = scmp.eq.s32.totalorder %s19, 0
    %p124 = por %p122, %p123
    %p125 = scmp.ne.s32.totalorder %s113, %s114
    %p126 = scmp.eq.s32.totalorder %s20, 1
    %p127 = por %p125, %p126
    %p129 = scmp.ne.s32.totalorder %s114, %s128
    %p130 = scmp.eq.s32.totalorder %s20, 0
    %p131 = por %p129, %p130
    %s133 = sadd.s32 %s132, 1
    %p136 = scmp.eq.s32.totalorder %s14, 1
    %p137 = scmp.ne.s32.totalorder %s132, %s134
    %p138 = scmp.eq.s32.totalorder %s14, 0
    %p139 = por %p137, %p138
    %p140 = scmp.ne.s32.totalorder %s132, %s134
    %p141 = scmp.eq.s32.totalorder %s19, 1
    %p142 = por %p140, %p141
    %p143 = scmp.ne.s32.totalorder %s134, %s135
    %p144 = scmp.eq.s32.totalorder %s19, 0
    %p145 = por %p143, %p144
    %p146 = scmp.ne.s32.totalorder %s134, %s135
    %p147 = scmp.eq.s32.totalorder %s20, 1
    %p148 = por %p146, %p147
    %p150 = scmp.ne.s32.totalorder %s135, %s149
    %p151 = scmp.eq.s32.totalorder %s20, 0
    %p152 = por %p150, %p151
    %s154 = sadd.s32 %s153, 1
    %p157 = scmp.eq.s32.totalorder %s14, 1
    %p158 = scmp.ne.s32.totalorder %s153, %s155
    %p159 = scmp.eq.s32.totalorder %s14, 0
    %p160 = por %p158, %p159
    %p161 = scmp.ne.s32.totalorder %s153, %s155
    %p162 = scmp.eq.s32.totalorder %s19, 1
    %p163 = por %p161, %p162
    %p164 = scmp.ne.s32.totalorder %s155, %s156
    %p165 = scmp.eq.s32.totalorder %s19, 0
    %p166 = por %p164, %p165
    %p167 = scmp.ne.s32.totalorder %s155, %s156
    %p168 = scmp.eq.s32.totalorder %s20, 1
    %p169 = por %p167, %p168
    %p171 = scmp.ne.s32.totalorder %s156, %s170
    %p172 = scmp.eq.s32.totalorder %s20, 0
    %p173 = por %p171, %p172
    %s175 = sadd.s32 %s174, 1
    %p178 = scmp.eq.s32.totalorder %s14, 1
    %p179 = scmp.ne.s32.totalorder %s174, %s176
    %p180 = scmp.eq.s32.totalorder %s14, 0
    %p181 = por %p179, %p180
    %p182 = scmp.ne.s32.totalorder %s174, %s176
    %p183 = scmp.eq.s32.totalorder %s19, 1
    %p184 = por %p182, %p183
    %p185 = scmp.ne.s32.totalorder %s176, %s177
    %p186 = scmp.eq.s32.totalorder %s19, 0
    %p187 = por %p185, %p186
    %p188 = scmp.ne.s32.totalorder %s176, %s177
    %p189 = scmp.eq.s32.totalorder %s20, 1
    %p190 = por %p188, %p189
    %p192 = scmp.ne.s32.totalorder %s177, %s191
    %p193 = scmp.eq.s32.totalorder %s20, 0
    %p194 = por %p192, %p193
    %s195 = ssub.s32 %s14, %s21
    %p196 = scmp.eq.s32.totalorder %s195, 0
    %s198 = sadd.s32 %s197, 1
    %s199 = scalar_select %p196, %s197, %s198
    %p202 = pneg %p196
    %p203 = scmp.eq.s32.totalorder %s14, 1
    %p204 = por %p202, %p203
    %p205 = scmp.ne.s32.totalorder %s197, %s200
    %p206 = scmp.eq.s32.totalorder %s14, 0
    %p207 = por %p205, %p206
    %p208 = scmp.ne.s32.totalorder %s197, %s200
    %p209 = scmp.eq.s32.totalorder %s19, 1
    %p210 = por %p208, %p209
    %p211 = scmp.ne.s32.totalorder %s200, %s201
    %p212 = scmp.eq.s32.totalorder %s19, 0
    %p213 = por %p211, %p212
    %p214 = scmp.ne.s32.totalorder %s200, %s201
    %p215 = scmp.eq.s32.totalorder %s20, 1
    %p216 = por %p214, %p215
    %p218 = scmp.ne.s32.totalorder %s201, %s217
    %p219 = scmp.eq.s32.totalorder %s20, 0
    %p220 = por %p218, %p219
    %p221 = scmp.le.s32.totalorder 1, %s14
    %p222 = scmp.lt.s32.totalorder %s14, 3
    %p223 = pnand %p221, %p222
    %p224 = pneg %p223
    // Predicated region
    $region9: #{basic_block_forward.1} parent=5 // pred_check
      _
    $region10: #{basic_block_forward.1} parent=5 // pred_check_branch
      %226 = sbr.rel (%p223) target = $region12
    $region11: #{basic_block_forward.1} parent=5 // pred_region
      %s227 = ssub.s32 %s14, 1
      // Predicated region
      $region13: #{basic_block_forward.1} parent=11 // pred_check
        %p228 = pneg %p61
      $region14: #{basic_block_forward.1} parent=11 // pred_check_branch
        %230 = sbr.rel (%p228) target = $region16
      $region15: #{basic_block_forward.1} parent=11 // pred_region
        _
      $region16: #{basic_block_forward.1} parent=11 // pred_fallthru
        _
      // Predicated region
      $region17: #{basic_block_forward.1} parent=11 // pred_check
        %p231 = pneg %p82
      $region18: #{basic_block_forward.1} parent=11 // pred_check_branch
        %233 = sbr.rel (%p231) target = $region20
      $region19: #{basic_block_forward.1} parent=11 // pred_region
        _
      $region20: #{basic_block_forward.1} parent=11 // pred_fallthru
        _
      // Predicated region
      $region21: #{basic_block_forward.1} parent=11 // pred_check
        %p234 = pneg %p103
      $region22: #{basic_block_forward.1} parent=11 // pred_check_branch
        %236 = sbr.rel (%p234) target = $region24
      $region23: #{basic_block_forward.1} parent=11 // pred_region
        _
      $region24: #{basic_block_forward.1} parent=11 // pred_fallthru
        _
      // Predicated region
      $region25: #{basic_block_forward.1} parent=11 // pred_check
        %p237 = pneg %p124
      $region26: #{basic_block_forward.1} parent=11 // pred_check_branch
        %239 = sbr.rel (%p237) target = $region28
      $region27: #{basic_block_forward.1} parent=11 // pred_region
        _
      $region28: #{basic_block_forward.1} parent=11 // pred_fallthru
        _
      // Predicated region
      $region29: #{basic_block_forward.1} parent=11 // pred_check
        %p240 = pneg %p145
      $region30: #{basic_block_forward.1} parent=11 // pred_check_branch
        %242 = sbr.rel (%p240) target = $region32
      $region31: #{basic_block_forward.1} parent=11 // pred_region
        _
      $region32: #{basic_block_forward.1} parent=11 // pred_fallthru
        _
      // Predicated region
      $region33: #{basic_block_forward.1} parent=11 // pred_check
        %p243 = pneg %p166
      $region34: #{basic_block_forward.1} parent=11 // pred_check_branch
        %245 = sbr.rel (%p243) target = $region36
      $region35: #{basic_block_forward.1} parent=11 // pred_region
        _
      $region36: #{basic_block_forward.1} parent=11 // pred_fallthru
        _
      // Predicated region
      $region37: #{basic_block_forward.1} parent=11 // pred_check
        %p246 = pneg %p187
      $region38: #{basic_block_forward.1} parent=11 // pred_check_branch
        %248 = sbr.rel (%p246) target = $region40
      $region39: #{basic_block_forward.1} parent=11 // pred_region
        _
      $region40: #{basic_block_forward.1} parent=11 // pred_fallthru
        _
    $region12: #{basic_block_forward.1} parent=5 // pred_fallthru
      _
    %p249 = scmp.lt.s32.totalorder %s14, 2
    // Predicated region
    $region41: #{basic_block_forward.1} parent=5 // pred_check
      %p250 = pneg %p249
    $region42: #{basic_block_forward.1} parent=5 // pred_check_branch
      %252 = sbr.rel (%p250) target = $region44
    $region43: #{basic_block_forward.1} parent=5 // pred_region
      // Predicated region
      $region45: #{basic_block_forward.1} parent=43 // pred_check
        %p253 = pneg %p34
      $region46: #{basic_block_forward.1} parent=43 // pred_check_branch
        %255 = sbr.rel (%p253) target = $region48
      $region47: #{basic_block_forward.1} parent=43 // pred_region
        %p256 = scmp.lt.s32.totalorder %s14, 1
        %s257 = scalar_select %p256, %s14, 1
        %s258 = smul.addr %s257, 72
        %s259 = smul.addr %s258, 8
        %s260 = scalar_lea.vmem %s0, %s259
      $region48: #{basic_block_forward.1} parent=43 // pred_fallthru
        _
    $region44: #{basic_block_forward.1} parent=5 // pred_fallthru
      _
    %p261 = scmp.le.s32.totalorder 1, %s14
    %p262 = scmp.lt.s32.totalorder %s14, 3
    %p263 = pnand %p261, %p262
    %p264 = pneg %p263
    // Predicated region
    $region49: #{basic_block_forward.1} parent=5 // pred_check
      _
    $region50: #{basic_block_forward.1} parent=5 // pred_check_branch
      %266 = sbr.rel (%p263) target = $region52
    $region51: #{basic_block_forward.1} parent=5 // pred_region
      %s267 = ssub.s32 %s14, 1
      %p268 = scmp.lt.s32.totalorder %s19, 1
      %s269 = scalar_select %p268, %s19, 1
      %s270 = smul.addr %s269, 72
      %s271 = smul.addr %s270, 8
      %s272 = scalar_lea.vmem %s0, %s271
      %p273 = pneg %p40
      %p274 = pneg %p37
      %p275 = pneg %p61
      %p276 = pneg %p58
      %p277 = pneg %p82
      %p278 = pneg %p79
      %p279 = pneg %p103
      %p280 = pneg %p100
      %p281 = pneg %p124
      %p282 = pneg %p121
      %p283 = pneg %p145
      %p284 = pneg %p142
      %p285 = pneg %p166
      %p286 = pneg %p163
      %p287 = pneg %p187
      %p288 = pneg %p184
      %p289 = pneg %p213
      %p290 = pneg %p210
      %p291 = scmp.lt.s32.totalorder %s19, 1
      %s292 = scalar_select %p291, %s19, 1
      %s293 = smul.addr %s292, 8
      %s294 = smul.addr %s293, 8
      %s295 = scalar_lea.vmem %s8, %s294
      %p296 = scmp.lt.s32.totalorder %s19, 1
      %s297 = scalar_select %p296, %s19, 1
      %s298 = smul.addr %s297, 72
      %s299 = smul.addr %s298, 8
      %s300 = scalar_lea.vmem %s0, %s299
      %p301 = scmp.lt.s32.totalorder %s19, 1
      %s302 = scalar_select %p301, %s19, 1
      %s303 = smul.addr %s302, 8
      %s304 = smul.addr %s303, 8
      %s305 = scalar_lea.vmem %s8, %s304
      %v306 = vld [vmem:[%s4] sm:$0x1]
      %v308 = vperm.slane %v306, 0
      %v310 = vld [vmem:[%s5] sm:$0x1]
      %v312 = vperm.slane %v310, 0
      %v314 = vlaneseq
      %v315 = vshrl.u32 %v314, 7
      %v316 = vadd.s32 %v315, 8
      %v317 = vmul.u32 %v315, 2
      %v318 = vmul.u32 %v316, 2
      %vm319 = vcmp.ge.s32.totalorder %v317, 1
      %vm320 = vcmp.ge.s32.totalorder %v318, 1
      %vm321 = vmand 0, %vm319
      %vm322 = vmand 0, %vm320
      %vm323 = vmand 1, %vm319
      %vm324 = vmand 1, %vm320
      %vm325 = vcmp.le.s32.totalorder %v317, 16
      %vm326 = vcmp.le.s32.totalorder %v318, 16
      %vm327 = vmand %vm321, %vm325
      %vm328 = vmand %vm322, %vm326
      %vm329 = vmand %vm323, %vm325
      %vm330 = vmand %vm324, %vm326
      %v331 = vld [vmem:[%s300] sm:$0xff]
      %v332 = vld [vmem:[%s300 + $0x8] sm:$0x1]
      %v333 = vld [vmem:[%s300 + $0x10] sm:$0xff]
      %v334 = vld [vmem:[%s300 + $0x18] sm:$0x1]
      %v335 = vld [vmem:[%s300 + $0x20] sm:$0xff]
      %v336 = vld [vmem:[%s300 + $0x28] sm:$0x1]
      %v337 = vld [vmem:[%s300 + $0x30] sm:$0xff]
      %v338 = vld [vmem:[%s300 + $0x38] sm:$0x1]
      %v339 = vld [vmem:[%s300 + $0x40] sm:$0xff]
      %v340 = vld [vmem:[%s300 + $0x48] sm:$0x1]
      %v341 = vld [vmem:[%s300 + $0x50] sm:$0xff]
      %v342 = vld [vmem:[%s300 + $0x58] sm:$0x1]
      %v343 = vld [vmem:[%s300 + $0x60] sm:$0xff]
      %v344 = vld [vmem:[%s300 + $0x68] sm:$0x1]
      %v345 = vld [vmem:[%s300 + $0x70] sm:$0xff]
      %v346 = vld [vmem:[%s300 + $0x78] sm:$0x1]
      %v347 = vld [vmem:[%s300 + $0x80] sm:$0xff]
      %v348 = vld [vmem:[%s300 + $0x88] sm:$0x1]
      %v349 = vmul.f32 %v331, %v308
      %v350 = vmul.f32 %v332, %v308
      %v351 = vmul.f32 %v333, %v308
      %v352 = vmul.f32 %v334, %v308
      %v353 = vmul.f32 %v335, %v308
      %v354 = vmul.f32 %v336, %v308
      %v355 = vmul.f32 %v337, %v308
      %v356 = vmul.f32 %v338, %v308
      %v357 = vmul.f32 %v339, %v308
      %v358 = vmul.f32 %v340, %v308
      %v359 = vmul.f32 %v341, %v308
      %v360 = vmul.f32 %v342, %v308
      %v361 = vmul.f32 %v343, %v308
      %v362 = vmul.f32 %v344, %v308
      %v363 = vmul.f32 %v345, %v308
      %v364 = vmul.f32 %v346, %v308
      %v365 = vmul.f32 %v347, %v308
      %v366 = vmul.f32 %v348, %v308
      %v367 = vadd.f32 %v349, %v312
      %v368 = vadd.f32 %v350, %v312
      %v369 = vadd.f32 %v351, %v312
      %v370 = vadd.f32 %v352, %v312
      %v371 = vadd.f32 %v353, %v312
      %v372 = vadd.f32 %v354, %v312
      %v373 = vadd.f32 %v355, %v312
      %v374 = vadd.f32 %v356, %v312
      %v375 = vadd.f32 %v357, %v312
      %v376 = vadd.f32 %v358, %v312
      %v377 = vadd.f32 %v359, %v312
      %v378 = vadd.f32 %v360, %v312
      %v379 = vadd.f32 %v361, %v312
      %v380 = vadd.f32 %v362, %v312
      %v381 = vadd.f32 %v363, %v312
      %v382 = vadd.f32 %v364, %v312
      %v383 = vadd.f32 %v365, %v312
      %v384 = vadd.f32 %v366, %v312
      %vm385 = vcmp.ge.f32.partialorder %v367, 0.0
      %vm386 = vcmp.ge.f32.partialorder %v368, 0.0
      %vm387 = vcmp.ge.f32.partialorder %v369, 0.0
      %vm388 = vcmp.ge.f32.partialorder %v370, 0.0
      %vm389 = vcmp.ge.f32.partialorder %v371, 0.0
      %vm390 = vcmp.ge.f32.partialorder %v372, 0.0
      %vm391 = vcmp.ge.f32.partialorder %v373, 0.0
      %vm392 = vcmp.ge.f32.partialorder %v374, 0.0
      %vm393 = vcmp.ge.f32.partialorder %v375, 0.0
      %vm394 = vcmp.ge.f32.partialorder %v376, 0.0
      %vm395 = vcmp.ge.f32.partialorder %v377, 0.0
      %vm396 = vcmp.ge.f32.partialorder %v378, 0.0
      %vm397 = vcmp.ge.f32.partialorder %v379, 0.0
      %vm398 = vcmp.ge.f32.partialorder %v380, 0.0
      %vm399 = vcmp.ge.f32.partialorder %v381, 0.0
      %vm400 = vcmp.ge.f32.partialorder %v382, 0.0
      %vm401 = vcmp.ge.f32.partialorder %v383, 0.0
      %vm402 = vcmp.ge.f32.partialorder %v384, 0.0
      %v403 = vmul.f32 %v367, 0.1
      %v404 = vmul.f32 %v368, 0.1
      %v405 = vmul.f32 %v369, 0.1
      %v406 = vmul.f32 %v370, 0.1
      %v407 = vmul.f32 %v371, 0.1
      %v408 = vmul.f32 %v372, 0.1
      %v409 = vmul.f32 %v373, 0.1
      %v410 = vmul.f32 %v374, 0.1
      %v411 = vmul.f32 %v375, 0.1
      %v412 = vmul.f32 %v376, 0.1
      %v413 = vmul.f32 %v377, 0.1
      %v414 = vmul.f32 %v378, 0.1
      %v415 = vmul.f32 %v379, 0.1
      %v416 = vmul.f32 %v380, 0.1
      %v417 = vmul.f32 %v381, 0.1
      %v418 = vmul.f32 %v382, 0.1
      %v419 = vmul.f32 %v383, 0.1
      %v420 = vmul.f32 %v384, 0.1
      %v421 = vsel %vm385, %v367, %v403
      %v422 = vsel %vm386, %v368, %v404
      %v423 = vsel %vm387, %v369, %v405
      %v424 = vsel %vm388, %v370, %v406
      %v425 = vsel %vm389, %v371, %v407
      %v426 = vsel %vm390, %v372, %v408
      %v427 = vsel %vm391, %v373, %v409
      %v428 = vsel %vm392, %v374, %v410
      %v429 = vsel %vm393, %v375, %v411
      %v430 = vsel %vm394, %v376, %v412
      %v431 = vsel %vm395, %v377, %v413
      %v432 = vsel %vm396, %v378, %v414
      %v433 = vsel %vm397, %v379, %v415
      %v434 = vsel %vm398, %v380, %v416
      %v435 = vsel %vm399, %v381, %v417
      %v436 = vsel %vm400, %v382, %v418
      %v437 = vsel %vm401, %v383, %v419
      %v438 = vsel %vm402, %v384, %v420
      %v439 = vsel %vm327, %v421, 0.0
      %v440 = vsel %vm328, %v422, 0.0
      %v441 = vsel %vm329, %v423, 0.0
      %v442 = vsel %vm330, %v424, 0.0
      %v443 = vsel %vm329, %v425, 0.0
      %v444 = vsel %vm330, %v426, 0.0
      %v445 = vsel %vm329, %v427, 0.0
      %v446 = vsel %vm330, %v428, 0.0
      %v447 = vsel %vm329, %v429, 0.0
      %v448 = vsel %vm330, %v430, 0.0
      %v449 = vsel %vm329, %v431, 0.0
      %v450 = vsel %vm330, %v432, 0.0
      %v451 = vsel %vm329, %v433, 0.0
      %v452 = vsel %vm330, %v434, 0.0
      %v453 = vsel %vm329, %v435, 0.0
      %v454 = vsel %vm330, %v436, 0.0
      %v455 = vsel %vm329, %v437, 0.0
      %v456 = vsel %vm330, %v438, 0.0
      %vm457 = vcmask 31744
      %458 = vst.msk [vmem:[#allocation3] sm:$0xff] %vm457, %v439
      %vm459 = vcmask 24576
      %460 = vst.msk [vmem:[#allocation3 + $0x8] sm:$0x1] %vm459, %v440
      %461 = vst.msk [vmem:[#allocation3 + $0x10] sm:$0xff] %vm457, %v441
      %462 = vst.msk [vmem:[#allocation3 + $0x18] sm:$0x1] %vm459, %v442
      %463 = vst.msk [vmem:[#allocation3 + $0x20] sm:$0xff] %vm457, %v443
      %464 = vst.msk [vmem:[#allocation3 + $0x28] sm:$0x1] %vm459, %v444
      %465 = vst.msk [vmem:[#allocation3 + $0x30] sm:$0xff] %vm457, %v445
      %466 = vst.msk [vmem:[#allocation3 + $0x38] sm:$0x1] %vm459, %v446
      %467 = vst.msk [vmem:[#allocation3 + $0x40] sm:$0xff] %vm457, %v447
      %468 = vst.msk [vmem:[#allocation3 + $0x48] sm:$0x1] %vm459, %v448
      %469 = vst.msk [vmem:[#allocation3 + $0x50] sm:$0xff] %vm457, %v449
      %470 = vst.msk [vmem:[#allocation3 + $0x58] sm:$0x1] %vm459, %v450
      %471 = vst.msk [vmem:[#allocation3 + $0x60] sm:$0xff] %vm457, %v451
      %472 = vst.msk [vmem:[#allocation3 + $0x68] sm:$0x1] %vm459, %v452
      %473 = vst.msk [vmem:[#allocation3 + $0x70] sm:$0xff] %vm457, %v453
      %474 = vst.msk [vmem:[#allocation3 + $0x78] sm:$0x1] %vm459, %v454
      %475 = vst.msk [vmem:[#allocation3 + $0x80] sm:$0xff] %vm457, %v455
      %476 = vst.msk [vmem:[#allocation3 + $0x88] sm:$0x1] %vm459, %v456
      %v477 = vadd.s32 %v317, 1
      %v478 = vadd.s32 %v318, 1
      %vm479 = vcmp.ge.s32.totalorder %v477, 1
      %vm480 = vcmp.ge.s32.totalorder %v478, 1
      %vm481 = vmand 0, %vm479
      %vm482 = vmand 0, %vm480
      %vm483 = vmand 1, %vm479
      %vm484 = vmand 1, %vm480
      %vm485 = vcmp.le.s32.totalorder %v477, 16
      %vm486 = vcmp.le.s32.totalorder %v478, 16
      %vm487 = vmand %vm481, %vm485
      %vm488 = vmand %vm482, %vm486
      %vm489 = vmand %vm483, %vm485
      %vm490 = vmand %vm484, %vm486
      %s491 = scalar_lea.vmem %s300, 144
      %v492 = vld [vmem:[%s491] sm:$0xff]
      %v493 = vld [vmem:[%s491 + $0x8] sm:$0x1]
      %v494 = vld [vmem:[%s491 + $0x10] sm:$0xff]
      %v495 = vld [vmem:[%s491 + $0x18] sm:$0x1]
      %v496 = vld [vmem:[%s491 + $0x20] sm:$0xff]
      %v497 = vld [vmem:[%s491 + $0x28] sm:$0x1]
      %v498 = vld [vmem:[%s491 + $0x30] sm:$0xff]
      %v499 = vld [vmem:[%s491 + $0x38] sm:$0x1]
      %v500 = vld [vmem:[%s491 + $0x40] sm:$0xff]
      %v501 = vld [vmem:[%s491 + $0x48] sm:$0x1]
      %v502 = vld [vmem:[%s491 + $0x50] sm:$0xff]
      %v503 = vld [vmem:[%s491 + $0x58] sm:$0x1]
      %v504 = vld [vmem:[%s491 + $0x60] sm:$0xff]
      %v505 = vld [vmem:[%s491 + $0x68] sm:$0x1]
      %v506 = vld [vmem:[%s491 + $0x70] sm:$0xff]
      %v507 = vld [vmem:[%s491 + $0x78] sm:$0x1]
      %v508 = vld [vmem:[%s491 + $0x80] sm:$0xff]
      %v509 = vld [vmem:[%s491 + $0x88] sm:$0x1]
      %v510 = vmul.f32 %v492, %v308
      %v511 = vmul.f32 %v493, %v308
      %v512 = vmul.f32 %v494, %v308
      %v513 = vmul.f32 %v495, %v308
      %v514 = vmul.f32 %v496, %v308
      %v515 = vmul.f32 %v497, %v308
      %v516 = vmul.f32 %v498, %v308
      %v517 = vmul.f32 %v499, %v308
      %v518 = vmul.f32 %v500, %v308
      %v519 = vmul.f32 %v501, %v308
      %v520 = vmul.f32 %v502, %v308
      %v521 = vmul.f32 %v503, %v308
      %v522 = vmul.f32 %v504, %v308
      %v523 = vmul.f32 %v505, %v308
      %v524 = vmul.f32 %v506, %v308
      %v525 = vmul.f32 %v507, %v308
      %v526 = vmul.f32 %v508, %v308
      %v527 = vmul.f32 %v509, %v308
      %v528 = vadd.f32 %v510, %v312
      %v529 = vadd.f32 %v511, %v312
      %v530 = vadd.f32 %v512, %v312
      %v531 = vadd.f32 %v513, %v312
      %v532 = vadd.f32 %v514, %v312
      %v533 = vadd.f32 %v515, %v312
      %v534 = vadd.f32 %v516, %v312
      %v535 = vadd.f32 %v517, %v312
      %v536 = vadd.f32 %v518, %v312
      %v537 = vadd.f32 %v519, %v312
      %v538 = vadd.f32 %v520, %v312
      %v539 = vadd.f32 %v521, %v312
      %v540 = vadd.f32 %v522, %v312
      %v541 = vadd.f32 %v523, %v312
      %v542 = vadd.f32 %v524, %v312
      %v543 = vadd.f32 %v525, %v312
      %v544 = vadd.f32 %v526, %v312
      %v545 = vadd.f32 %v527, %v312
      %vm546 = vcmp.ge.f32.partialorder %v528, 0.0
      %vm547 = vcmp.ge.f32.partialorder %v529, 0.0
      %vm548 = vcmp.ge.f32.partialorder %v530, 0.0
      %vm549 = vcmp.ge.f32.partialorder %v531, 0.0
      %vm550 = vcmp.ge.f32.partialorder %v532, 0.0
      %vm551 = vcmp.ge.f32.partialorder %v533, 0.0
      %vm552 = vcmp.ge.f32.partialorder %v534, 0.0
      %vm553 = vcmp.ge.f32.partialorder %v535, 0.0
      %vm554 = vcmp.ge.f32.partialorder %v536, 0.0
      %vm555 = vcmp.ge.f32.partialorder %v537, 0.0
      %vm556 = vcmp.ge.f32.partialorder %v538, 0.0
      %vm557 = vcmp.ge.f32.partialorder %v539, 0.0
      %vm558 = vcmp.ge.f32.partialorder %v540, 0.0
      %vm559 = vcmp.ge.f32.partialorder %v541, 0.0
      %vm560 = vcmp.ge.f32.partialorder %v542, 0.0
      %vm561 = vcmp.ge.f32.partialorder %v543, 0.0
      %vm562 = vcmp.ge.f32.partialorder %v544, 0.0
      %vm563 = vcmp.ge.f32.partialorder %v545, 0.0
      %v564 = vmul.f32 %v528, 0.1
      %v565 = vmul.f32 %v529, 0.1
      %v566 = vmul.f32 %v530, 0.1
      %v567 = vmul.f32 %v531, 0.1
      %v568 = vmul.f32 %v532, 0.1
      %v569 = vmul.f32 %v533, 0.1
      %v570 = vmul.f32 %v534, 0.1
      %v571 = vmul.f32 %v535, 0.1
      %v572 = vmul.f32 %v536, 0.1
      %v573 = vmul.f32 %v537, 0.1
      %v574 = vmul.f32 %v538, 0.1
      %v575 = vmul.f32 %v539, 0.1
      %v576 = vmul.f32 %v540, 0.1
      %v577 = vmul.f32 %v541, 0.1
      %v578 = vmul.f32 %v542, 0.1
      %v579 = vmul.f32 %v543, 0.1
      %v580 = vmul.f32 %v544, 0.1
      %v581 = vmul.f32 %v545, 0.1
      %v582 = vsel %vm546, %v528, %v564
      %v583 = vsel %vm547, %v529, %v565
      %v584 = vsel %vm548, %v530, %v566
      %v585 = vsel %vm549, %v531, %v567
      %v586 = vsel %vm550, %v532, %v568
      %v587 = vsel %vm551, %v533, %v569
      %v588 = vsel %vm552, %v534, %v570
      %v589 = vsel %vm553, %v535, %v571
      %v590 = vsel %vm554, %v536, %v572
      %v591 = vsel %vm555, %v537, %v573
      %v592 = vsel %vm556, %v538, %v574
      %v593 = vsel %vm557, %v539, %v575
      %v594 = vsel %vm558, %v540, %v576
      %v595 = vsel %vm559, %v541, %v577
      %v596 = vsel %vm560, %v542, %v578
      %v597 = vsel %vm561, %v543, %v579
      %v598 = vsel %vm562, %v544, %v580
      %v599 = vsel %vm563, %v545, %v581
      %v600 = vsel %vm487, %v582, 0.0
      %v601 = vsel %vm488, %v583, 0.0
      %v602 = vsel %vm489, %v584, 0.0
      %v603 = vsel %vm490, %v585, 0.0
      %v604 = vsel %vm489, %v586, 0.0
      %v605 = vsel %vm490, %v587, 0.0
      %v606 = vsel %vm489, %v588, 0.0
      %v607 = vsel %vm490, %v589, 0.0
      %v608 = vsel %vm489, %v590, 0.0
      %v609 = vsel %vm490, %v591, 0.0
      %v610 = vsel %vm489, %v592, 0.0
      %v611 = vsel %vm490, %v593, 0.0
      %v612 = vsel %vm489, %v594, 0.0
      %v613 = vsel %vm490, %v595, 0.0
      %v614 = vsel %vm489, %v596, 0.0
      %v615 = vsel %vm490, %v597, 0.0
      %v616 = vsel %vm489, %v598, 0.0
      %v617 = vsel %vm490, %v599, 0.0
      %s618 = scalar_lea.vmem [#allocation3], 144
      %619 = vst.msk [vmem:[%s618] sm:$0xff] %vm457, %v600
      %620 = vst.msk [vmem:[%s618 + $0x8] sm:$0x1] %vm459, %v601
      %621 = vst.msk [vmem:[%s618 + $0x10] sm:$0xff] %vm457, %v602
      %622 = vst.msk [vmem:[%s618 + $0x18] sm:$0x1] %vm459, %v603
      %623 = vst.msk [vmem:[%s618 + $0x20] sm:$0xff] %vm457, %v604
      %624 = vst.msk [vmem:[%s618 + $0x28] sm:$0x1] %vm459, %v605
      %625 = vst.msk [vmem:[%s618 + $0x30] sm:$0xff] %vm457, %v606
      %626 = vst.msk [vmem:[%s618 + $0x38] sm:$0x1] %vm459, %v607
      %627 = vst.msk [vmem:[%s618 + $0x40] sm:$0xff] %vm457, %v608
      %628 = vst.msk [vmem:[%s618 + $0x48] sm:$0x1] %vm459, %v609
      %629 = vst.msk [vmem:[%s618 + $0x50] sm:$0xff] %vm457, %v610
      %630 = vst.msk [vmem:[%s618 + $0x58] sm:$0x1] %vm459, %v611
      %631 = vst.msk [vmem:[%s618 + $0x60] sm:$0xff] %vm457, %v612
      %632 = vst.msk [vmem:[%s618 + $0x68] sm:$0x1] %vm459, %v613
      %633 = vst.msk [vmem:[%s618 + $0x70] sm:$0xff] %vm457, %v614
      %634 = vst.msk [vmem:[%s618 + $0x78] sm:$0x1] %vm459, %v615
      %635 = vst.msk [vmem:[%s618 + $0x80] sm:$0xff] %vm457, %v616
      %636 = vst.msk [vmem:[%s618 + $0x88] sm:$0x1] %vm459, %v617
      %s637 = scalar_lea.vmem %s300, 288
      %v638 = vld [vmem:[%s637] sm:$0xff]
      %v639 = vld [vmem:[%s637 + $0x8] sm:$0x1]
      %v640 = vld [vmem:[%s637 + $0x10] sm:$0xff]
      %v641 = vld [vmem:[%s637 + $0x18] sm:$0x1]
      %v642 = vld [vmem:[%s637 + $0x20] sm:$0xff]
      %v643 = vld [vmem:[%s637 + $0x28] sm:$0x1]
      %v644 = vld [vmem:[%s637 + $0x30] sm:$0xff]
      %v645 = vld [vmem:[%s637 + $0x38] sm:$0x1]
      %v646 = vld [vmem:[%s637 + $0x40] sm:$0xff]
      %v647 = vld [vmem:[%s637 + $0x48] sm:$0x1]
      %v648 = vld [vmem:[%s637 + $0x50] sm:$0xff]
      %v649 = vld [vmem:[%s637 + $0x58] sm:$0x1]
      %v650 = vld [vmem:[%s637 + $0x60] sm:$0xff]
      %v651 = vld [vmem:[%s637 + $0x68] sm:$0x1]
      %v652 = vld [vmem:[%s637 + $0x70] sm:$0xff]
      %v653 = vld [vmem:[%s637 + $0x78] sm:$0x1]
      %v654 = vld [vmem:[%s637 + $0x80] sm:$0xff]
      %v655 = vld [vmem:[%s637 + $0x88] sm:$0x1]
      %v656 = vmul.f32 %v638, %v308
      %v657 = vmul.f32 %v639, %v308
      %v658 = vmul.f32 %v640, %v308
      %v659 = vmul.f32 %v641, %v308
      %v660 = vmul.f32 %v642, %v308
      %v661 = vmul.f32 %v643, %v308
      %v662 = vmul.f32 %v644, %v308
      %v663 = vmul.f32 %v645, %v308
      %v664 = vmul.f32 %v646, %v308
      %v665 = vmul.f32 %v647, %v308
      %v666 = vmul.f32 %v648, %v308
      %v667 = vmul.f32 %v649, %v308
      %v668 = vmul.f32 %v650, %v308
      %v669 = vmul.f32 %v651, %v308
      %v670 = vmul.f32 %v652, %v308
      %v671 = vmul.f32 %v653, %v308
      %v672 = vmul.f32 %v654, %v308
      %v673 = vmul.f32 %v655, %v308
      %v674 = vadd.f32 %v656, %v312
      %v675 = vadd.f32 %v657, %v312
      %v676 = vadd.f32 %v658, %v312
      %v677 = vadd.f32 %v659, %v312
      %v678 = vadd.f32 %v660, %v312
      %v679 = vadd.f32 %v661, %v312
      %v680 = vadd.f32 %v662, %v312
      %v681 = vadd.f32 %v663, %v312
      %v682 = vadd.f32 %v664, %v312
      %v683 = vadd.f32 %v665, %v312
      %v684 = vadd.f32 %v666, %v312
      %v685 = vadd.f32 %v667, %v312
      %v686 = vadd.f32 %v668, %v312
      %v687 = vadd.f32 %v669, %v312
      %v688 = vadd.f32 %v670, %v312
      %v689 = vadd.f32 %v671, %v312
      %v690 = vadd.f32 %v672, %v312
      %v691 = vadd.f32 %v673, %v312
      %vm692 = vcmp.ge.f32.partialorder %v674, 0.0
      %vm693 = vcmp.ge.f32.partialorder %v675, 0.0
      %vm694 = vcmp.ge.f32.partialorder %v676, 0.0
      %vm695 = vcmp.ge.f32.partialorder %v677, 0.0
      %vm696 = vcmp.ge.f32.partialorder %v678, 0.0
      %vm697 = vcmp.ge.f32.partialorder %v679, 0.0
      %vm698 = vcmp.ge.f32.partialorder %v680, 0.0
      %vm699 = vcmp.ge.f32.partialorder %v681, 0.0
      %vm700 = vcmp.ge.f32.partialorder %v682, 0.0
      %vm701 = vcmp.ge.f32.partialorder %v683, 0.0
      %vm702 = vcmp.ge.f32.partialorder %v684, 0.0
      %vm703 = vcmp.ge.f32.partialorder %v685, 0.0
      %vm704 = vcmp.ge.f32.partialorder %v686, 0.0
      %vm705 = vcmp.ge.f32.partialorder %v687, 0.0
      %vm706 = vcmp.ge.f32.partialorder %v688, 0.0
      %vm707 = vcmp.ge.f32.partialorder %v689, 0.0
      %vm708 = vcmp.ge.f32.partialorder %v690, 0.0
      %vm709 = vcmp.ge.f32.partialorder %v691, 0.0
      %v710 = vmul.f32 %v674, 0.1
      %v711 = vmul.f32 %v675, 0.1
      %v712 = vmul.f32 %v676, 0.1
      %v713 = vmul.f32 %v677, 0.1
      %v714 = vmul.f32 %v678, 0.1
      %v715 = vmul.f32 %v679, 0.1
      %v716 = vmul.f32 %v680, 0.1
      %v717 = vmul.f32 %v681, 0.1
      %v718 = vmul.f32 %v682, 0.1
      %v719 = vmul.f32 %v683, 0.1
      %v720 = vmul.f32 %v684, 0.1
      %v721 = vmul.f32 %v685, 0.1
      %v722 = vmul.f32 %v686, 0.1
      %v723 = vmul.f32 %v687, 0.1
      %v724 = vmul.f32 %v688, 0.1
      %v725 = vmul.f32 %v689, 0.1
      %v726 = vmul.f32 %v690, 0.1
      %v727 = vmul.f32 %v691, 0.1
      %v728 = vsel %vm692, %v674, %v710
      %v729 = vsel %vm693, %v675, %v711
      %v730 = vsel %vm694, %v676, %v712
      %v731 = vsel %vm695, %v677, %v713
      %v732 = vsel %vm696, %v678, %v714
      %v733 = vsel %vm697, %v679, %v715
      %v734 = vsel %vm698, %v680, %v716
      %v735 = vsel %vm699, %v681, %v717
      %v736 = vsel %vm700, %v682, %v718
      %v737 = vsel %vm701, %v683, %v719
      %v738 = vsel %vm702, %v684, %v720
      %v739 = vsel %vm703, %v685, %v721
      %v740 = vsel %vm704, %v686, %v722
      %v741 = vsel %vm705, %v687, %v723
      %v742 = vsel %vm706, %v688, %v724
      %v743 = vsel %vm707, %v689, %v725
      %v744 = vsel %vm708, %v690, %v726
      %v745 = vsel %vm709, %v691, %v727
      %v746 = vsel %vm329, %v728, 0.0
      %v747 = vsel %vm330, %v729, 0.0
      %v748 = vsel %vm329, %v730, 0.0
      %v749 = vsel %vm330, %v731, 0.0
      %v750 = vsel %vm329, %v732, 0.0
      %v751 = vsel %vm330, %v733, 0.0
      %v752 = vsel %vm329, %v734, 0.0
      %v753 = vsel %vm330, %v735, 0.0
      %v754 = vsel %vm329, %v736, 0.0
      %v755 = vsel %vm330, %v737, 0.0
      %v756 = vsel %vm329, %v738, 0.0
      %v757 = vsel %vm330, %v739, 0.0
      %v758 = vsel %vm329, %v740, 0.0
      %v759 = vsel %vm330, %v741, 0.0
      %v760 = vsel %vm329, %v742, 0.0
      %v761 = vsel %vm330, %v743, 0.0
      %v762 = vsel %vm327, %v744, 0.0
      %v763 = vsel %vm328, %v745, 0.0
      %s764 = scalar_lea.vmem [#allocation3], 288
      %765 = vst.msk [vmem:[%s764] sm:$0xff] %vm457, %v746
      %766 = vst.msk [vmem:[%s764 + $0x8] sm:$0x1] %vm459, %v747
      %767 = vst.msk [vmem:[%s764 + $0x10] sm:$0xff] %vm457, %v748
      %768 = vst.msk [vmem:[%s764 + $0x18] sm:$0x1] %vm459, %v749
      %769 = vst.msk [vmem:[%s764 + $0x20] sm:$0xff] %vm457, %v750
      %770 = vst.msk [vmem:[%s764 + $0x28] sm:$0x1] %vm459, %v751
      %771 = vst.msk [vmem:[%s764 + $0x30] sm:$0xff] %vm457, %v752
      %772 = vst.msk [vmem:[%s764 + $0x38] sm:$0x1] %vm459, %v753
      %773 = vst.msk [vmem:[%s764 + $0x40] sm:$0xff] %vm457, %v754
      %774 = vst.msk [vmem:[%s764 + $0x48] sm:$0x1] %vm459, %v755
      %775 = vst.msk [vmem:[%s764 + $0x50] sm:$0xff] %vm457, %v756
      %776 = vst.msk [vmem:[%s764 + $0x58] sm:$0x1] %vm459, %v757
      %777 = vst.msk [vmem:[%s764 + $0x60] sm:$0xff] %vm457, %v758
      %778 = vst.msk [vmem:[%s764 + $0x68] sm:$0x1] %vm459, %v759
      %779 = vst.msk [vmem:[%s764 + $0x70] sm:$0xff] %vm457, %v760
      %780 = vst.msk [vmem:[%s764 + $0x78] sm:$0x1] %vm459, %v761
      %781 = vst.msk [vmem:[%s764 + $0x80] sm:$0xff] %vm457, %v762
      %782 = vst.msk [vmem:[%s764 + $0x88] sm:$0x1] %vm459, %v763
      %s783 = scalar_lea.vmem %s300, 432
      %v784 = vld [vmem:[%s783] sm:$0xff]
      %v785 = vld [vmem:[%s783 + $0x8] sm:$0x1]
      %v786 = vld [vmem:[%s783 + $0x10] sm:$0xff]
      %v787 = vld [vmem:[%s783 + $0x18] sm:$0x1]
      %v788 = vld [vmem:[%s783 + $0x20] sm:$0xff]
      %v789 = vld [vmem:[%s783 + $0x28] sm:$0x1]
      %v790 = vld [vmem:[%s783 + $0x30] sm:$0xff]
      %v791 = vld [vmem:[%s783 + $0x38] sm:$0x1]
      %v792 = vld [vmem:[%s783 + $0x40] sm:$0xff]
      %v793 = vld [vmem:[%s783 + $0x48] sm:$0x1]
      %v794 = vld [vmem:[%s783 + $0x50] sm:$0xff]
      %v795 = vld [vmem:[%s783 + $0x58] sm:$0x1]
      %v796 = vld [vmem:[%s783 + $0x60] sm:$0xff]
      %v797 = vld [vmem:[%s783 + $0x68] sm:$0x1]
      %v798 = vld [vmem:[%s783 + $0x70] sm:$0xff]
      %v799 = vld [vmem:[%s783 + $0x78] sm:$0x1]
      %v800 = vld [vmem:[%s783 + $0x80] sm:$0xff]
      %v801 = vld [vmem:[%s783 + $0x88] sm:$0x1]
      %v802 = vmul.f32 %v784, %v308
      %v803 = vmul.f32 %v785, %v308
      %v804 = vmul.f32 %v786, %v308
      %v805 = vmul.f32 %v787, %v308
      %v806 = vmul.f32 %v788, %v308
      %v807 = vmul.f32 %v789, %v308
      %v808 = vmul.f32 %v790, %v308
      %v809 = vmul.f32 %v791, %v308
      %v810 = vmul.f32 %v792, %v308
      %v811 = vmul.f32 %v793, %v308
      %v812 = vmul.f32 %v794, %v308
      %v813 = vmul.f32 %v795, %v308
      %v814 = vmul.f32 %v796, %v308
      %v815 = vmul.f32 %v797, %v308
      %v816 = vmul.f32 %v798, %v308
      %v817 = vmul.f32 %v799, %v308
      %v818 = vmul.f32 %v800, %v308
      %v819 = vmul.f32 %v801, %v308
      %v820 = vadd.f32 %v802, %v312
      %v821 = vadd.f32 %v803, %v312
      %v822 = vadd.f32 %v804, %v312
      %v823 = vadd.f32 %v805, %v312
      %v824 = vadd.f32 %v806, %v312
      %v825 = vadd.f32 %v807, %v312
      %v826 = vadd.f32 %v808, %v312
      %v827 = vadd.f32 %v809, %v312
      %v828 = vadd.f32 %v810, %v312
      %v829 = vadd.f32 %v811, %v312
      %v830 = vadd.f32 %v812, %v312
      %v831 = vadd.f32 %v813, %v312
      %v832 = vadd.f32 %v814, %v312
      %v833 = vadd.f32 %v815, %v312
      %v834 = vadd.f32 %v816, %v312
      %v835 = vadd.f32 %v817, %v312
      %v836 = vadd.f32 %v818, %v312
      %v837 = vadd.f32 %v819, %v312
      %vm838 = vcmp.ge.f32.partialorder %v820, 0.0
      %vm839 = vcmp.ge.f32.partialorder %v821, 0.0
      %vm840 = vcmp.ge.f32.partialorder %v822, 0.0
      %vm841 = vcmp.ge.f32.partialorder %v823, 0.0
      %vm842 = vcmp.ge.f32.partialorder %v824, 0.0
      %vm843 = vcmp.ge.f32.partialorder %v825, 0.0
      %vm844 = vcmp.ge.f32.partialorder %v826, 0.0
      %vm845 = vcmp.ge.f32.partialorder %v827, 0.0
      %vm846 = vcmp.ge.f32.partialorder %v828, 0.0
      %vm847 = vcmp.ge.f32.partialorder %v829, 0.0
      %vm848 = vcmp.ge.f32.partialorder %v830, 0.0
      %vm849 = vcmp.ge.f32.partialorder %v831, 0.0
      %vm850 = vcmp.ge.f32.partialorder %v832, 0.0
      %vm851 = vcmp.ge.f32.partialorder %v833, 0.0
      %vm852 = vcmp.ge.f32.partialorder %v834, 0.0
      %vm853 = vcmp.ge.f32.partialorder %v835, 0.0
      %vm854 = vcmp.ge.f32.partialorder %v836, 0.0
      %vm855 = vcmp.ge.f32.partialorder %v837, 0.0
      %v856 = vmul.f32 %v820, 0.1
      %v857 = vmul.f32 %v821, 0.1
      %v858 = vmul.f32 %v822, 0.1
      %v859 = vmul.f32 %v823, 0.1
      %v860 = vmul.f32 %v824, 0.1
      %v861 = vmul.f32 %v825, 0.1
      %v862 = vmul.f32 %v826, 0.1
      %v863 = vmul.f32 %v827, 0.1
      %v864 = vmul.f32 %v828, 0.1
      %v865 = vmul.f32 %v829, 0.1
      %v866 = vmul.f32 %v830, 0.1
      %v867 = vmul.f32 %v831, 0.1
      %v868 = vmul.f32 %v832, 0.1
      %v869 = vmul.f32 %v833, 0.1
      %v870 = vmul.f32 %v834, 0.1
      %v871 = vmul.f32 %v835, 0.1
      %v872 = vmul.f32 %v836, 0.1
      %v873 = vmul.f32 %v837, 0.1
      %v874 = vsel %vm838, %v820, %v856
      %v875 = vsel %vm839, %v821, %v857
      %v876 = vsel %vm840, %v822, %v858
      %v877 = vsel %vm841, %v823, %v859
      %v878 = vsel %vm842, %v824, %v860
      %v879 = vsel %vm843, %v825, %v861
      %v880 = vsel %vm844, %v826, %v862
      %v881 = vsel %vm845, %v827, %v863
      %v882 = vsel %vm846, %v828, %v864
      %v883 = vsel %vm847, %v829, %v865
      %v884 = vsel %vm848, %v830, %v866
      %v885 = vsel %vm849, %v831, %v867
      %v886 = vsel %vm850, %v832, %v868
      %v887 = vsel %vm851, %v833, %v869
      %v888 = vsel %vm852, %v834, %v870
      %v889 = vsel %vm853, %v835, %v871
      %v890 = vsel %vm854, %v836, %v872
      %v891 = vsel %vm855, %v837, %v873
      %v892 = vsel %vm489, %v874, 0.0
      %v893 = vsel %vm490, %v875, 0.0
      %v894 = vsel %vm489, %v876, 0.0
      %v895 = vsel %vm490, %v877, 0.0
      %v896 = vsel %vm489, %v878, 0.0
      %v897 = vsel %vm490, %v879, 0.0
      %v898 = vsel %vm489, %v880, 0.0
      %v899 = vsel %vm490, %v881, 0.0
      %v900 = vsel %vm489, %v882, 0.0
      %v901 = vsel %vm490, %v883, 0.0
      %v902 = vsel %vm489, %v884, 0.0
      %v903 = vsel %vm490, %v885, 0.0
      %v904 = vsel %vm489, %v886, 0.0
      %v905 = vsel %vm490, %v887, 0.0
      %v906 = vsel %vm489, %v888, 0.0
      %v907 = vsel %vm490, %v889, 0.0
      %v908 = vsel %vm487, %v890, 0.0
      %v909 = vsel %vm488, %v891, 0.0
      %s910 = scalar_lea.vmem [#allocation3], 432
      %911 = vst.msk [vmem:[%s910] sm:$0xff] %vm457, %v892
      %912 = vst.msk [vmem:[%s910 + $0x8] sm:$0x1] %vm459, %v893
      %913 = vst.msk [vmem:[%s910 + $0x10] sm:$0xff] %vm457, %v894
      %914 = vst.msk [vmem:[%s910 + $0x18] sm:$0x1] %vm459, %v895
      %915 = vst.msk [vmem:[%s910 + $0x20] sm:$0xff] %vm457, %v896
      %916 = vst.msk [vmem:[%s910 + $0x28] sm:$0x1] %vm459, %v897
      %917 = vst.msk [vmem:[%s910 + $0x30] sm:$0xff] %vm457, %v898
      %918 = vst.msk [vmem:[%s910 + $0x38] sm:$0x1] %vm459, %v899
      %919 = vst.msk [vmem:[%s910 + $0x40] sm:$0xff] %vm457, %v900
      %920 = vst.msk [vmem:[%s910 + $0x48] sm:$0x1] %vm459, %v901
      %921 = vst.msk [vmem:[%s910 + $0x50] sm:$0xff] %vm457, %v902
      %922 = vst.msk [vmem:[%s910 + $0x58] sm:$0x1] %vm459, %v903
      %923 = vst.msk [vmem:[%s910 + $0x60] sm:$0xff] %vm457, %v904
      %924 = vst.msk [vmem:[%s910 + $0x68] sm:$0x1] %vm459, %v905
      %925 = vst.msk [vmem:[%s910 + $0x70] sm:$0xff] %vm457, %v906
      %926 = vst.msk [vmem:[%s910 + $0x78] sm:$0x1] %vm459, %v907
      %927 = vst.msk [vmem:[%s910 + $0x80] sm:$0xff] %vm457, %v908
      %928 = vst.msk [vmem:[%s910 + $0x88] sm:$0x1] %vm459, %v909
      %v929 = vld [vmem:[#allocation3] sm:$0xff]
      %v930 = vld [vmem:[#allocation3 + $0x10] sm:$0xff]
      %v931 = vld [vmem:[#allocation3 + $0x20] sm:$0xff]
      %v932 = vld [vmem:[#allocation3 + $0x30] sm:$0xff]
      %v933 = vld [vmem:[#allocation3 + $0x40] sm:$0xff]
      %v934 = vld [vmem:[#allocation3 + $0x50] sm:$0xff]
      %v935 = vld [vmem:[#allocation3 + $0x60] sm:$0xff]
      %v936 = vld [vmem:[#allocation3 + $0x70] sm:$0xff]
      %v937 = vld [vmem:[%s1] sm:$0xf]
      %v938 = vld [vmem:[%s618] sm:$0xff]
      %v939 = vld [vmem:[%s618 + $0x10] sm:$0xff]
      %v940 = vld [vmem:[%s618 + $0x20] sm:$0xff]
      %v941 = vld [vmem:[%s618 + $0x30] sm:$0xff]
      %v942 = vld [vmem:[%s618 + $0x40] sm:$0xff]
      %v943 = vld [vmem:[%s618 + $0x50] sm:$0xff]
      %v944 = vld [vmem:[%s618 + $0x60] sm:$0xff]
      %v945 = vld [vmem:[%s618 + $0x70] sm:$0xff]
      %s946 = scalar_lea.vmem %s1, 4
      %v947 = vld [vmem:[%s946] sm:$0xf]
      %v949 = vsel %vm457, %v938, 0
      %v952 = vsel %vm457, %v939, 0
      %v955 = vsel %vm457, %v940, 0
      %v958 = vsel %vm457, %v941, 0
      %v961 = vsel %vm457, %v942, 0
      %v964 = vsel %vm457, %v943, 0
      %v967 = vsel %vm457, %v944, 0
      %v970 = vsel %vm457, %v945, 0
      %vm972 = vcmask 1043456
      %v974 = vsel %vm972, %v947, 0
      %976 = vmatpush.msra.mxu0 0.0
      %977 = vmatpush.msra.mxu0 0.0
      %978 = vmatpush.msra.mxu0 0.0
      %979 = vmatpush.msra.mxu0 0.0
      %980 = vmatpush.msra.mxu0 0.0
      %981 = vmatpush.msra.mxu0 0.0
      %982 = vmatpush.msra.mxu0 0.0
      %983 = vmatpush.msra.mxu0 0.0
      %984 = vmatpush.msra.mxu0 0.0
      %985 = vmatpush.msra.mxu0 0.0
      %986 = vmatpush.msra.mxu0 0.0
      %987 = vmatpush.msra.mxu0 0.0
      %988 = vmatpush.msra.mxu0 0.0
      %989 = vmatpush.msra.mxu0 0.0
      %990 = vmatpush.msra.mxu0 0.0
      %991 = vmatpush.msra.mxu0 %v974
      %992 = vmatmul.f32.gmra.mxu0 %v949
      %v993 = vpop.f32.mrf.mxu0
      %v994 = vadd.f32 0.0, %v993
      %995 = vmatmul.f32.gmra.mxu0 %v952
      %v996 = vpop.f32.mrf.mxu0
      %v997 = vadd.f32 0.0, %v996
      %998 = vmatmul.f32.gmra.mxu0 %v955
      %v999 = vpop.f32.mrf.mxu0
      %v1000 = vadd.f32 0.0, %v999
      %1001 = vmatmul.f32.gmra.mxu0 %v958
      %v1002 = vpop.f32.mrf.mxu0
      %v1003 = vadd.f32 0.0, %v1002
      %1004 = vmatmul.f32.gmra.mxu0 %v961
      %v1005 = vpop.f32.mrf.mxu0
      %v1006 = vadd.f32 0.0, %v1005
      %1007 = vmatmul.f32.gmra.mxu0 %v964
      %v1008 = vpop.f32.mrf.mxu0
      %v1009 = vadd.f32 0.0, %v1008
      %1010 = vmatmul.f32.gmra.mxu0 %v967
      %v1011 = vpop.f32.mrf.mxu0
      %v1012 = vadd.f32 0.0, %v1011
      %1013 = vmatmul.f32.gmra.mxu0 %v970
      %v1014 = vpop.f32.mrf.mxu0
      %v1015 = vadd.f32 0.0, %v1014
      %1016 = vdwg.mxu0
      %v1018 = vsel %vm457, %v929, 0
      %v1021 = vsel %vm457, %v930, 0
      %v1024 = vsel %vm457, %v931, 0
      %v1027 = vsel %vm457, %v932, 0
      %v1030 = vsel %vm457, %v933, 0
      %v1033 = vsel %vm457, %v934, 0
      %v1036 = vsel %vm457, %v935, 0
      %v1039 = vsel %vm457, %v936, 0
      %v1042 = vsel %vm972, %v937, 0
      %1044 = vmatpush.msra.mxu0 0.0
      %1045 = vmatpush.msra.mxu0 0.0
      %1046 = vmatpush.msra.mxu0 0.0
      %1047 = vmatpush.msra.mxu0 0.0
      %1048 = vmatpush.msra.mxu0 0.0
      %1049 = vmatpush.msra.mxu0 0.0
      %1050 = vmatpush.msra.mxu0 0.0
      %1051 = vmatpush.msra.mxu0 0.0
      %1052 = vmatpush.msra.mxu0 0.0
      %1053 = vmatpush.msra.mxu0 0.0
      %1054 = vmatpush.msra.mxu0 0.0
      %1055 = vmatpush.msra.mxu0 0.0
      %1056 = vmatpush.msra.mxu0 0.0
      %1057 = vmatpush.msra.mxu0 0.0
      %1058 = vmatpush.msra.mxu0 0.0
      %1059 = vmatpush.msra.mxu0 %v1042
      %1060 = vmatmul.f32.gmra.mxu0 %v1018
      %v1061 = vpop.f32.mrf.mxu0
      %v1062 = vadd.f32 %v994, %v1061
      %1063 = vmatmul.f32.gmra.mxu0 %v1021
      %v1064 = vpop.f32.mrf.mxu0
      %v1065 = vadd.f32 %v997, %v1064
      %1066 = vmatmul.f32.gmra.mxu0 %v1024
      %v1067 = vpop.f32.mrf.mxu0
      %v1068 = vadd.f32 %v1000, %v1067
      %1069 = vmatmul.f32.gmra.mxu0 %v1027
      %v1070 = vpop.f32.mrf.mxu0
      %v1071 = vadd.f32 %v1003, %v1070
      %1072 = vmatmul.f32.gmra.mxu0 %v1030
      %v1073 = vpop.f32.mrf.mxu0
      %v1074 = vadd.f32 %v1006, %v1073
      %1075 = vmatmul.f32.gmra.mxu0 %v1033
      %v1076 = vpop.f32.mrf.mxu0
      %v1077 = vadd.f32 %v1009, %v1076
      %1078 = vmatmul.f32.gmra.mxu0 %v1036
      %v1079 = vpop.f32.mrf.mxu0
      %v1080 = vadd.f32 %v1012, %v1079
      %1081 = vmatmul.f32.gmra.mxu0 %v1039
      %v1082 = vpop.f32.mrf.mxu0
      %v1083 = vadd.f32 %v1015, %v1082
      %1084 = vdwg.mxu0
      %v1085 = vld [vmem:[#allocation3 + $0x1] sm:$0xff]
      %v1086 = vld [vmem:[#allocation3 + $0x11] sm:$0xff]
      %v1087 = vld [vmem:[#allocation3 + $0x21] sm:$0xff]
      %v1088 = vld [vmem:[#allocation3 + $0x31] sm:$0xff]
      %v1089 = vld [vmem:[#allocation3 + $0x41] sm:$0xff]
      %v1090 = vld [vmem:[#allocation3 + $0x51] sm:$0xff]
      %v1091 = vld [vmem:[#allocation3 + $0x61] sm:$0xff]
      %v1092 = vld [vmem:[#allocation3 + $0x71] sm:$0xff]
      %s1093 = scalar_lea.vmem %s1, 8
      %v1094 = vld [vmem:[%s1093] sm:$0xf]
      %v1096 = vsel %vm457, %v1085, 0
      %v1099 = vsel %vm457, %v1086, 0
      %v1102 = vsel %vm457, %v1087, 0
      %v1105 = vsel %vm457, %v1088, 0
      %v1108 = vsel %vm457, %v1089, 0
      %v1111 = vsel %vm457, %v1090, 0
      %v1114 = vsel %vm457, %v1091, 0
      %v1117 = vsel %vm457, %v1092, 0
      %v1120 = vsel %vm972, %v1094, 0
      %1122 = vmatpush.msra.mxu0 0.0
      %1123 = vmatpush.msra.mxu0 0.0
      %1124 = vmatpush.msra.mxu0 0.0
      %1125 = vmatpush.msra.mxu0 0.0
      %1126 = vmatpush.msra.mxu0 0.0
      %1127 = vmatpush.msra.mxu0 0.0
      %1128 = vmatpush.msra.mxu0 0.0
      %1129 = vmatpush.msra.mxu0 0.0
      %1130 = vmatpush.msra.mxu0 0.0
      %1131 = vmatpush.msra.mxu0 0.0
      %1132 = vmatpush.msra.mxu0 0.0
      %1133 = vmatpush.msra.mxu0 0.0
      %1134 = vmatpush.msra.mxu0 0.0
      %1135 = vmatpush.msra.mxu0 0.0
      %1136 = vmatpush.msra.mxu0 0.0
      %1137 = vmatpush.msra.mxu0 %v1120
      %1138 = vmatmul.f32.gmra.mxu0 %v1096
      %v1139 = vpop.f32.mrf.mxu0
      %v1140 = vadd.f32 0.0, %v1139
      %1141 = vmatmul.f32.gmra.mxu0 %v1099
      %v1142 = vpop.f32.mrf.mxu0
      %v1143 = vadd.f32 0.0, %v1142
      %1144 = vmatmul.f32.gmra.mxu0 %v1102
      %v1145 = vpop.f32.mrf.mxu0
      %v1146 = vadd.f32 0.0, %v1145
      %1147 = vmatmul.f32.gmra.mxu0 %v1105
      %v1148 = vpop.f32.mrf.mxu0
      %v1149 = vadd.f32 0.0, %v1148
      %1150 = vmatmul.f32.gmra.mxu0 %v1108
      %v1151 = vpop.f32.mrf.mxu0
      %v1152 = vadd.f32 0.0, %v1151
      %1153 = vmatmul.f32.gmra.mxu0 %v1111
      %v1154 = vpop.f32.mrf.mxu0
      %v1155 = vadd.f32 0.0, %v1154
      %1156 = vmatmul.f32.gmra.mxu0 %v1114
      %v1157 = vpop.f32.mrf.mxu0
      %v1158 = vadd.f32 0.0, %v1157
      %1159 = vmatmul.f32.gmra.mxu0 %v1117
      %v1160 = vpop.f32.mrf.mxu0
      %v1161 = vadd.f32 0.0, %v1160
      %1162 = vdwg.mxu0
      %v1163 = vadd.f32 %v1062, %v1140
      %v1164 = vadd.f32 %v1065, %v1143
      %v1165 = vadd.f32 %v1068, %v1146
      %v1166 = vadd.f32 %v1071, %v1149
      %v1167 = vadd.f32 %v1074, %v1152
      %v1168 = vadd.f32 %v1077, %v1155
      %v1169 = vadd.f32 %v1080, %v1158
      %v1170 = vadd.f32 %v1083, %v1161
      %v1171 = vld [vmem:[%s764] sm:$0xff]
      %v1172 = vld [vmem:[%s764 + $0x10] sm:$0xff]
      %v1173 = vld [vmem:[%s764 + $0x20] sm:$0xff]
      %v1174 = vld [vmem:[%s764 + $0x30] sm:$0xff]
      %v1175 = vld [vmem:[%s764 + $0x40] sm:$0xff]
      %v1176 = vld [vmem:[%s764 + $0x50] sm:$0xff]
      %v1177 = vld [vmem:[%s764 + $0x60] sm:$0xff]
      %v1178 = vld [vmem:[%s764 + $0x70] sm:$0xff]
      %s1179 = scalar_lea.vmem %s1, 12
      %v1180 = vld [vmem:[%s1179] sm:$0xf]
      %v1182 = vsel %vm457, %v1171, 0
      %v1185 = vsel %vm457, %v1172, 0
      %v1188 = vsel %vm457, %v1173, 0
      %v1191 = vsel %vm457, %v1174, 0
      %v1194 = vsel %vm457, %v1175, 0
      %v1197 = vsel %vm457, %v1176, 0
      %v1200 = vsel %vm457, %v1177, 0
      %v1203 = vsel %vm457, %v1178, 0
      %v1206 = vsel %vm972, %v1180, 0
      %1208 = vmatpush.msra.mxu0 0.0
      %1209 = vmatpush.msra.mxu0 0.0
      %1210 = vmatpush.msra.mxu0 0.0
      %1211 = vmatpush.msra.mxu0 0.0
      %1212 = vmatpush.msra.mxu0 0.0
      %1213 = vmatpush.msra.mxu0 0.0
      %1214 = vmatpush.msra.mxu0 0.0
      %1215 = vmatpush.msra.mxu0 0.0
      %1216 = vmatpush.msra.mxu0 0.0
      %1217 = vmatpush.msra.mxu0 0.0
      %1218 = vmatpush.msra.mxu0 0.0
      %1219 = vmatpush.msra.mxu0 0.0
      %1220 = vmatpush.msra.mxu0 0.0
      %1221 = vmatpush.msra.mxu0 0.0
      %1222 = vmatpush.msra.mxu0 0.0
      %1223 = vmatpush.msra.mxu0 %v1206
      %1224 = vmatmul.f32.gmra.mxu0 %v1182
      %v1225 = vpop.f32.mrf.mxu0
      %v1226 = vadd.f32 0.0, %v1225
      %1227 = vmatmul.f32.gmra.mxu0 %v1185
      %v1228 = vpop.f32.mrf.mxu0
      %v1229 = vadd.f32 0.0, %v1228
      %1230 = vmatmul.f32.gmra.mxu0 %v1188
      %v1231 = vpop.f32.mrf.mxu0
      %v1232 = vadd.f32 0.0, %v1231
      %1233 = vmatmul.f32.gmra.mxu0 %v1191
      %v1234 = vpop.f32.mrf.mxu0
      %v1235 = vadd.f32 0.0, %v1234
      %1236 = vmatmul.f32.gmra.mxu0 %v1194
      %v1237 = vpop.f32.mrf.mxu0
      %v1238 = vadd.f32 0.0, %v1237
      %1239 = vmatmul.f32.gmra.mxu0 %v1197
      %v1240 = vpop.f32.mrf.mxu0
      %v1241 = vadd.f32 0.0, %v1240
      %1242 = vmatmul.f32.gmra.mxu0 %v1200
      %v1243 = vpop.f32.mrf.mxu0
      %v1244 = vadd.f32 0.0, %v1243
      %1245 = vmatmul.f32.gmra.mxu0 %v1203
      %v1246 = vpop.f32.mrf.mxu0
      %v1247 = vadd.f32 0.0, %v1246
      %1248 = vdwg.mxu0
      %v1249 = vadd.f32 %v1163, %v1226
      %v1250 = vadd.f32 %v1164, %v1229
      %v1251 = vadd.f32 %v1165, %v1232
      %v1252 = vadd.f32 %v1166, %v1235
      %v1253 = vadd.f32 %v1167, %v1238
      %v1254 = vadd.f32 %v1168, %v1241
      %v1255 = vadd.f32 %v1169, %v1244
      %v1256 = vadd.f32 %v1170, %v1247
      %v1257 = vld [vmem:[%s910] sm:$0xff]
      %v1258 = vld [vmem:[%s910 + $0x10] sm:$0xff]
      %v1259 = vld [vmem:[%s910 + $0x20] sm:$0xff]
      %v1260 = vld [vmem:[%s910 + $0x30] sm:$0xff]
      %v1261 = vld [vmem:[%s910 + $0x40] sm:$0xff]
      %v1262 = vld [vmem:[%s910 + $0x50] sm:$0xff]
      %v1263 = vld [vmem:[%s910 + $0x60] sm:$0xff]
      %v1264 = vld [vmem:[%s910 + $0x70] sm:$0xff]
      %s1265 = scalar_lea.vmem %s1, 16
      %v1266 = vld [vmem:[%s1265] sm:$0xf]
      %v1268 = vsel %vm457, %v1257, 0
      %v1271 = vsel %vm457, %v1258, 0
      %v1274 = vsel %vm457, %v1259, 0
      %v1277 = vsel %vm457, %v1260, 0
      %v1280 = vsel %vm457, %v1261, 0
      %v1283 = vsel %vm457, %v1262, 0
      %v1286 = vsel %vm457, %v1263, 0
      %v1289 = vsel %vm457, %v1264, 0
      %v1292 = vsel %vm972, %v1266, 0
      %1294 = vmatpush.msra.mxu0 0.0
      %1295 = vmatpush.msra.mxu0 0.0
      %1296 = vmatpush.msra.mxu0 0.0
      %1297 = vmatpush.msra.mxu0 0.0
      %1298 = vmatpush.msra.mxu0 0.0
      %1299 = vmatpush.msra.mxu0 0.0
      %1300 = vmatpush.msra.mxu0 0.0
      %1301 = vmatpush.msra.mxu0 0.0
      %1302 = vmatpush.msra.mxu0 0.0
      %1303 = vmatpush.msra.mxu0 0.0
      %1304 = vmatpush.msra.mxu0 0.0
      %1305 = vmatpush.msra.mxu0 0.0
      %1306 = vmatpush.msra.mxu0 0.0
      %1307 = vmatpush.msra.mxu0 0.0
      %1308 = vmatpush.msra.mxu0 0.0
      %1309 = vmatpush.msra.mxu0 %v1292
      %1310 = vmatmul.f32.gmra.mxu0 %v1268
      %v1311 = vpop.f32.mrf.mxu0
      %v1312 = vadd.f32 0.0, %v1311
      %1313 = vmatmul.f32.gmra.mxu0 %v1271
      %v1314 = vpop.f32.mrf.mxu0
      %v1315 = vadd.f32 0.0, %v1314
      %1316 = vmatmul.f32.gmra.mxu0 %v1274
      %v1317 = vpop.f32.mrf.mxu0
      %v1318 = vadd.f32 0.0, %v1317
      %1319 = vmatmul.f32.gmra.mxu0 %v1277
      %v1320 = vpop.f32.mrf.mxu0
      %v1321 = vadd.f32 0.0, %v1320
      %1322 = vmatmul.f32.gmra.mxu0 %v1280
      %v1323 = vpop.f32.mrf.mxu0
      %v1324 = vadd.f32 0.0, %v1323
      %1325 = vmatmul.f32.gmra.mxu0 %v1283
      %v1326 = vpop.f32.mrf.mxu0
      %v1327 = vadd.f32 0.0, %v1326
      %1328 = vmatmul.f32.gmra.mxu0 %v1286
      %v1329 = vpop.f32.mrf.mxu0
      %v1330 = vadd.f32 0.0, %v1329
      %1331 = vmatmul.f32.gmra.mxu0 %v1289
      %v1332 = vpop.f32.mrf.mxu0
      %v1333 = vadd.f32 0.0, %v1332
      %1334 = vdwg.mxu0
      %v1335 = vadd.f32 %v1249, %v1312
      %v1336 = vadd.f32 %v1250, %v1315
      %v1337 = vadd.f32 %v1251, %v1318
      %v1338 = vadd.f32 %v1252, %v1321
      %v1339 = vadd.f32 %v1253, %v1324
      %v1340 = vadd.f32 %v1254, %v1327
      %v1341 = vadd.f32 %v1255, %v1330
      %v1342 = vadd.f32 %v1256, %v1333
      %v1343 = vld [vmem:[%s764 + $0x1] sm:$0xff]
      %v1344 = vld [vmem:[%s764 + $0x11] sm:$0xff]
      %v1345 = vld [vmem:[%s764 + $0x21] sm:$0xff]
      %v1346 = vld [vmem:[%s764 + $0x31] sm:$0xff]
      %v1347 = vld [vmem:[%s764 + $0x41] sm:$0xff]
      %v1348 = vld [vmem:[%s764 + $0x51] sm:$0xff]
      %v1349 = vld [vmem:[%s764 + $0x61] sm:$0xff]
      %v1350 = vld [vmem:[%s764 + $0x71] sm:$0xff]
      %s1351 = scalar_lea.vmem %s1, 20
      %v1352 = vld [vmem:[%s1351] sm:$0xf]
      %v1354 = vsel %vm457, %v1343, 0
      %v1357 = vsel %vm457, %v1344, 0
      %v1360 = vsel %vm457, %v1345, 0
      %v1363 = vsel %vm457, %v1346, 0
      %v1366 = vsel %vm457, %v1347, 0
      %v1369 = vsel %vm457, %v1348, 0
      %v1372 = vsel %vm457, %v1349, 0
      %v1375 = vsel %vm457, %v1350, 0
      %v1378 = vsel %vm972, %v1352, 0
      %1380 = vmatpush.msra.mxu0 0.0
      %1381 = vmatpush.msra.mxu0 0.0
      %1382 = vmatpush.msra.mxu0 0.0
      %1383 = vmatpush.msra.mxu0 0.0
      %1384 = vmatpush.msra.mxu0 0.0
      %1385 = vmatpush.msra.mxu0 0.0
      %1386 = vmatpush.msra.mxu0 0.0
      %1387 = vmatpush.msra.mxu0 0.0
      %1388 = vmatpush.msra.mxu0 0.0
      %1389 = vmatpush.msra.mxu0 0.0
      %1390 = vmatpush.msra.mxu0 0.0
      %1391 = vmatpush.msra.mxu0 0.0
      %1392 = vmatpush.msra.mxu0 0.0
      %1393 = vmatpush.msra.mxu0 0.0
      %1394 = vmatpush.msra.mxu0 0.0
      %1395 = vmatpush.msra.mxu0 %v1378
      %1396 = vmatmul.f32.gmra.mxu0 %v1354
      %v1397 = vpop.f32.mrf.mxu0
      %v1398 = vadd.f32 0.0, %v1397
      %1399 = vmatmul.f32.gmra.mxu0 %v1357
      %v1400 = vpop.f32.mrf.mxu0
      %v1401 = vadd.f32 0.0, %v1400
      %1402 = vmatmul.f32.gmra.mxu0 %v1360
      %v1403 = vpop.f32.mrf.mxu0
      %v1404 = vadd.f32 0.0, %v1403
      %1405 = vmatmul.f32.gmra.mxu0 %v1363
      %v1406 = vpop.f32.mrf.mxu0
      %v1407 = vadd.f32 0.0, %v1406
      %1408 = vmatmul.f32.gmra.mxu0 %v1366
      %v1409 = vpop.f32.mrf.mxu0
      %v1410 = vadd.f32 0.0, %v1409
      %1411 = vmatmul.f32.gmra.mxu0 %v1369
      %v1412 = vpop.f32.mrf.mxu0
      %v1413 = vadd.f32 0.0, %v1412
      %1414 = vmatmul.f32.gmra.mxu0 %v1372
      %v1415 = vpop.f32.mrf.mxu0
      %v1416 = vadd.f32 0.0, %v1415
      %1417 = vmatmul.f32.gmra.mxu0 %v1375
      %v1418 = vpop.f32.mrf.mxu0
      %v1419 = vadd.f32 0.0, %v1418
      %1420 = vdwg.mxu0
      %v1421 = vadd.f32 %v1335, %v1398
      %v1422 = vadd.f32 %v1336, %v1401
      %v1423 = vadd.f32 %v1337, %v1404
      %v1424 = vadd.f32 %v1338, %v1407
      %v1425 = vadd.f32 %v1339, %v1410
      %v1426 = vadd.f32 %v1340, %v1413
      %v1427 = vadd.f32 %v1341, %v1416
      %v1428 = vadd.f32 %v1342, %v1419
      %s1429 = scalar_lea.vmem [#allocation3], 16
      %v1430 = vld [vmem:[%s1429] sm:$0xff]
      %v1431 = vld [vmem:[%s1429 + $0x10] sm:$0xff]
      %v1432 = vld [vmem:[%s1429 + $0x20] sm:$0xff]
      %v1433 = vld [vmem:[%s1429 + $0x30] sm:$0xff]
      %v1434 = vld [vmem:[%s1429 + $0x40] sm:$0xff]
      %v1435 = vld [vmem:[%s1429 + $0x50] sm:$0xff]
      %v1436 = vld [vmem:[%s1429 + $0x60] sm:$0xff]
      %v1437 = vld [vmem:[%s1429 + $0x70] sm:$0xff]
      %s1438 = scalar_lea.vmem %s1, 24
      %v1439 = vld [vmem:[%s1438] sm:$0xf]
      %v1441 = vsel %vm457, %v1430, 0
      %v1444 = vsel %vm457, %v1431, 0
      %v1447 = vsel %vm457, %v1432, 0
      %v1450 = vsel %vm457, %v1433, 0
      %v1453 = vsel %vm457, %v1434, 0
      %v1456 = vsel %vm457, %v1435, 0
      %v1459 = vsel %vm457, %v1436, 0
      %v1462 = vsel %vm457, %v1437, 0
      %v1465 = vsel %vm972, %v1439, 0
      %1467 = vmatpush.msra.mxu0 0.0
      %1468 = vmatpush.msra.mxu0 0.0
      %1469 = vmatpush.msra.mxu0 0.0
      %1470 = vmatpush.msra.mxu0 0.0
      %1471 = vmatpush.msra.mxu0 0.0
      %1472 = vmatpush.msra.mxu0 0.0
      %1473 = vmatpush.msra.mxu0 0.0
      %1474 = vmatpush.msra.mxu0 0.0
      %1475 = vmatpush.msra.mxu0 0.0
      %1476 = vmatpush.msra.mxu0 0.0
      %1477 = vmatpush.msra.mxu0 0.0
      %1478 = vmatpush.msra.mxu0 0.0
      %1479 = vmatpush.msra.mxu0 0.0
      %1480 = vmatpush.msra.mxu0 0.0
      %1481 = vmatpush.msra.mxu0 0.0
      %1482 = vmatpush.msra.mxu0 %v1465
      %1483 = vmatmul.f32.gmra.mxu0 %v1441
      %v1484 = vpop.f32.mrf.mxu0
      %v1485 = vadd.f32 0.0, %v1484
      %1486 = vmatmul.f32.gmra.mxu0 %v1444
      %v1487 = vpop.f32.mrf.mxu0
      %v1488 = vadd.f32 0.0, %v1487
      %1489 = vmatmul.f32.gmra.mxu0 %v1447
      %v1490 = vpop.f32.mrf.mxu0
      %v1491 = vadd.f32 0.0, %v1490
      %1492 = vmatmul.f32.gmra.mxu0 %v1450
      %v1493 = vpop.f32.mrf.mxu0
      %v1494 = vadd.f32 0.0, %v1493
      %1495 = vmatmul.f32.gmra.mxu0 %v1453
      %v1496 = vpop.f32.mrf.mxu0
      %v1497 = vadd.f32 0.0, %v1496
      %1498 = vmatmul.f32.gmra.mxu0 %v1456
      %v1499 = vpop.f32.mrf.mxu0
      %v1500 = vadd.f32 0.0, %v1499
      %1501 = vmatmul.f32.gmra.mxu0 %v1459
      %v1502 = vpop.f32.mrf.mxu0
      %v1503 = vadd.f32 0.0, %v1502
      %1504 = vmatmul.f32.gmra.mxu0 %v1462
      %v1505 = vpop.f32.mrf.mxu0
      %v1506 = vadd.f32 0.0, %v1505
      %1507 = vdwg.mxu0
      %v1508 = vadd.f32 %v1421, %v1485
      %v1509 = vadd.f32 %v1422, %v1488
      %v1510 = vadd.f32 %v1423, %v1491
      %v1511 = vadd.f32 %v1424, %v1494
      %v1512 = vadd.f32 %v1425, %v1497
      %v1513 = vadd.f32 %v1426, %v1500
      %v1514 = vadd.f32 %v1427, %v1503
      %v1515 = vadd.f32 %v1428, %v1506
      %s1516 = scalar_lea.vmem [#allocation3], 160
      %v1517 = vld [vmem:[%s1516] sm:$0xff]
      %v1518 = vld [vmem:[%s1516 + $0x10] sm:$0xff]
      %v1519 = vld [vmem:[%s1516 + $0x20] sm:$0xff]
      %v1520 = vld [vmem:[%s1516 + $0x30] sm:$0xff]
      %v1521 = vld [vmem:[%s1516 + $0x40] sm:$0xff]
      %v1522 = vld [vmem:[%s1516 + $0x50] sm:$0xff]
      %v1523 = vld [vmem:[%s1516 + $0x60] sm:$0xff]
      %v1524 = vld [vmem:[%s1516 + $0x70] sm:$0xff]
      %s1525 = scalar_lea.vmem %s1, 28
      %v1526 = vld [vmem:[%s1525] sm:$0xf]
      %v1528 = vsel %vm457, %v1517, 0
      %v1531 = vsel %vm457, %v1518, 0
      %v1534 = vsel %vm457, %v1519, 0
      %v1537 = vsel %vm457, %v1520, 0
      %v1540 = vsel %vm457, %v1521, 0
      %v1543 = vsel %vm457, %v1522, 0
      %v1546 = vsel %vm457, %v1523, 0
      %v1549 = vsel %vm457, %v1524, 0
      %v1552 = vsel %vm972, %v1526, 0
      %1554 = vmatpush.msra.mxu0 0.0
      %1555 = vmatpush.msra.mxu0 0.0
      %1556 = vmatpush.msra.mxu0 0.0
      %1557 = vmatpush.msra.mxu0 0.0
      %1558 = vmatpush.msra.mxu0 0.0
      %1559 = vmatpush.msra.mxu0 0.0
      %1560 = vmatpush.msra.mxu0 0.0
      %1561 = vmatpush.msra.mxu0 0.0
      %1562 = vmatpush.msra.mxu0 0.0
      %1563 = vmatpush.msra.mxu0 0.0
      %1564 = vmatpush.msra.mxu0 0.0
      %1565 = vmatpush.msra.mxu0 0.0
      %1566 = vmatpush.msra.mxu0 0.0
      %1567 = vmatpush.msra.mxu0 0.0
      %1568 = vmatpush.msra.mxu0 0.0
      %1569 = vmatpush.msra.mxu0 %v1552
      %1570 = vmatmul.f32.gmra.mxu0 %v1528
      %v1571 = vpop.f32.mrf.mxu0
      %v1572 = vadd.f32 0.0, %v1571
      %1573 = vmatmul.f32.gmra.mxu0 %v1531
      %v1574 = vpop.f32.mrf.mxu0
      %v1575 = vadd.f32 0.0, %v1574
      %1576 = vmatmul.f32.gmra.mxu0 %v1534
      %v1577 = vpop.f32.mrf.mxu0
      %v1578 = vadd.f32 0.0, %v1577
      %1579 = vmatmul.f32.gmra.mxu0 %v1537
      %v1580 = vpop.f32.mrf.mxu0
      %v1581 = vadd.f32 0.0, %v1580
      %1582 = vmatmul.f32.gmra.mxu0 %v1540
      %v1583 = vpop.f32.mrf.mxu0
      %v1584 = vadd.f32 0.0, %v1583
      %1585 = vmatmul.f32.gmra.mxu0 %v1543
      %v1586 = vpop.f32.mrf.mxu0
      %v1587 = vadd.f32 0.0, %v1586
      %1588 = vmatmul.f32.gmra.mxu0 %v1546
      %v1589 = vpop.f32.mrf.mxu0
      %v1590 = vadd.f32 0.0, %v1589
      %1591 = vmatmul.f32.gmra.mxu0 %v1549
      %v1592 = vpop.f32.mrf.mxu0
      %v1593 = vadd.f32 0.0, %v1592
      %1594 = vdwg.mxu0
      %v1595 = vadd.f32 %v1508, %v1572
      %v1596 = vadd.f32 %v1509, %v1575
      %v1597 = vadd.f32 %v1510, %v1578
      %v1598 = vadd.f32 %v1511, %v1581
      %v1599 = vadd.f32 %v1512, %v1584
      %v1600 = vadd.f32 %v1513, %v1587
      %v1601 = vadd.f32 %v1514, %v1590
      %v1602 = vadd.f32 %v1515, %v1593
      %v1603 = vld [vmem:[%s1429 + $0x1] sm:$0xff]
      %v1604 = vld [vmem:[%s1429 + $0x11] sm:$0xff]
      %v1605 = vld [vmem:[%s1429 + $0x21] sm:$0xff]
      %v1606 = vld [vmem:[%s1429 + $0x31] sm:$0xff]
      %v1607 = vld [vmem:[%s1429 + $0x41] sm:$0xff]
      %v1608 = vld [vmem:[%s1429 + $0x51] sm:$0xff]
      %v1609 = vld [vmem:[%s1429 + $0x61] sm:$0xff]
      %v1610 = vld [vmem:[%s1429 + $0x71] sm:$0xff]
      %s1611 = scalar_lea.vmem %s1, 32
      %v1612 = vld [vmem:[%s1611] sm:$0xf]
      %v1614 = vsel %vm457, %v1603, 0
      %v1617 = vsel %vm457, %v1604, 0
      %v1620 = vsel %vm457, %v1605, 0
      %v1623 = vsel %vm457, %v1606, 0
      %v1626 = vsel %vm457, %v1607, 0
      %v1629 = vsel %vm457, %v1608, 0
      %v1632 = vsel %vm457, %v1609, 0
      %v1635 = vsel %vm457, %v1610, 0
      %v1638 = vsel %vm972, %v1612, 0
      %1640 = vmatpush.msra.mxu0 0.0
      %1641 = vmatpush.msra.mxu0 0.0
      %1642 = vmatpush.msra.mxu0 0.0
      %1643 = vmatpush.msra.mxu0 0.0
      %1644 = vmatpush.msra.mxu0 0.0
      %1645 = vmatpush.msra.mxu0 0.0
      %1646 = vmatpush.msra.mxu0 0.0
      %1647 = vmatpush.msra.mxu0 0.0
      %1648 = vmatpush.msra.mxu0 0.0
      %1649 = vmatpush.msra.mxu0 0.0
      %1650 = vmatpush.msra.mxu0 0.0
      %1651 = vmatpush.msra.mxu0 0.0
      %1652 = vmatpush.msra.mxu0 0.0
      %1653 = vmatpush.msra.mxu0 0.0
      %1654 = vmatpush.msra.mxu0 0.0
      %1655 = vmatpush.msra.mxu0 %v1638
      %1656 = vmatmul.f32.gmra.mxu0 %v1614
      %v1657 = vpop.f32.mrf.mxu0
      %v1658 = vadd.f32 0.0, %v1657
      %1659 = vmatmul.f32.gmra.mxu0 %v1617
      %v1660 = vpop.f32.mrf.mxu0
      %v1661 = vadd.f32 0.0, %v1660
      %1662 = vmatmul.f32.gmra.mxu0 %v1620
      %v1663 = vpop.f32.mrf.mxu0
      %v1664 = vadd.f32 0.0, %v1663
      %1665 = vmatmul.f32.gmra.mxu0 %v1623
      %v1666 = vpop.f32.mrf.mxu0
      %v1667 = vadd.f32 0.0, %v1666
      %1668 = vmatmul.f32.gmra.mxu0 %v1626
      %v1669 = vpop.f32.mrf.mxu0
      %v1670 = vadd.f32 0.0, %v1669
      %1671 = vmatmul.f32.gmra.mxu0 %v1629
      %v1672 = vpop.f32.mrf.mxu0
      %v1673 = vadd.f32 0.0, %v1672
      %1674 = vmatmul.f32.gmra.mxu0 %v1632
      %v1675 = vpop.f32.mrf.mxu0
      %v1676 = vadd.f32 0.0, %v1675
      %1677 = vmatmul.f32.gmra.mxu0 %v1635
      %v1678 = vpop.f32.mrf.mxu0
      %v1679 = vadd.f32 0.0, %v1678
      %1680 = vdwg.mxu0
      %v1681 = vadd.f32 %v1595, %v1658
      %v1682 = vadd.f32 %v1596, %v1661
      %v1683 = vadd.f32 %v1597, %v1664
      %v1684 = vadd.f32 %v1598, %v1667
      %v1685 = vadd.f32 %v1599, %v1670
      %v1686 = vadd.f32 %v1600, %v1673
      %v1687 = vadd.f32 %v1601, %v1676
      %v1688 = vadd.f32 %v1602, %v1679
      %v1689 = vld [vmem:[%s6] sm:$0x1]
      %v1691 = vperm.slane %v1689, 0
      %v1693 = vmul.f32 %v1681, %v1691
      %v1694 = vmul.f32 %v1682, %v1691
      %v1695 = vmul.f32 %v1683, %v1691
      %v1696 = vmul.f32 %v1684, %v1691
      %v1697 = vmul.f32 %v1685, %v1691
      %v1698 = vmul.f32 %v1686, %v1691
      %v1699 = vmul.f32 %v1687, %v1691
      %v1700 = vmul.f32 %v1688, %v1691
      %v1701 = vld [vmem:[%s7] sm:$0x1]
      %v1703 = vperm.slane %v1701, 0
      %v1705 = vadd.f32 %v1693, %v1703
      %v1706 = vadd.f32 %v1694, %v1703
      %v1707 = vadd.f32 %v1695, %v1703
      %v1708 = vadd.f32 %v1696, %v1703
      %v1709 = vadd.f32 %v1697, %v1703
      %v1710 = vadd.f32 %v1698, %v1703
      %v1711 = vadd.f32 %v1699, %v1703
      %v1712 = vadd.f32 %v1700, %v1703
      %vm1713 = vcmp.ge.f32.partialorder %v1705, 0.0
      %vm1714 = vcmp.ge.f32.partialorder %v1706, 0.0
      %vm1715 = vcmp.ge.f32.partialorder %v1707, 0.0
      %vm1716 = vcmp.ge.f32.partialorder %v1708, 0.0
      %vm1717 = vcmp.ge.f32.partialorder %v1709, 0.0
      %vm1718 = vcmp.ge.f32.partialorder %v1710, 0.0
      %vm1719 = vcmp.ge.f32.partialorder %v1711, 0.0
      %vm1720 = vcmp.ge.f32.partialorder %v1712, 0.0
      %v1721 = vmul.f32 %v1705, 0.1
      %v1722 = vmul.f32 %v1706, 0.1
      %v1723 = vmul.f32 %v1707, 0.1
      %v1724 = vmul.f32 %v1708, 0.1
      %v1725 = vmul.f32 %v1709, 0.1
      %v1726 = vmul.f32 %v1710, 0.1
      %v1727 = vmul.f32 %v1711, 0.1
      %v1728 = vmul.f32 %v1712, 0.1
      %v1729 = vsel %vm1713, %v1705, %v1721
      %v1730 = vsel %vm1714, %v1706, %v1722
      %v1731 = vsel %vm1715, %v1707, %v1723
      %v1732 = vsel %vm1716, %v1708, %v1724
      %v1733 = vsel %vm1717, %v1709, %v1725
      %v1734 = vsel %vm1718, %v1710, %v1726
      %v1735 = vsel %vm1719, %v1711, %v1727
      %v1736 = vsel %vm1720, %v1712, %v1728
      %vm1737 = vcmask 64512
      %1738 = vst.msk [vmem:[#allocation2] sm:$0xff] %vm1737, 0.0
      %vm1739 = vcmask 58368
      %1740 = vst.msk [vmem:[#allocation2 + $0x8] sm:$0x3] %vm1739, 0.0
      %s1741 = scalar_lea.vmem [#allocation2], 144
      %1742 = vst.msk [vmem:[%s1741] sm:$0xff] %vm1737, 0.0
      %1743 = vst.msk [vmem:[%s1741 + $0x8] sm:$0x3] %vm1739, 0.0
      %s1744 = scalar_lea.vmem [#allocation2], 16
      %vm1745 = vcmask 57344
      %1746 = vst.msk [vmem:[%s1744] sm:$0x1] %vm1745, 0.0
      %1747 = vst.msk [vmem:[%s1744 + $0x10] sm:$0x1] %vm1745, 0.0
      %1748 = vst.msk [vmem:[%s1744 + $0x20] sm:$0x1] %vm1745, 0.0
      %1749 = vst.msk [vmem:[%s1744 + $0x30] sm:$0x1] %vm1745, 0.0
      %1750 = vst.msk [vmem:[%s1744 + $0x40] sm:$0x1] %vm1745, 0.0
      %1751 = vst.msk [vmem:[%s1744 + $0x50] sm:$0x1] %vm1745, 0.0
      %1752 = vst.msk [vmem:[%s1744 + $0x60] sm:$0x1] %vm1745, 0.0
      %1753 = vst.msk [vmem:[%s1744 + $0x70] sm:$0x1] %vm1745, 0.0
      %1754 = vst.msk [vmem:[%s1744 + $0x9] sm:$0x1] %vm1745, 0.0
      %1755 = vst.msk [vmem:[%s1744 + $0x19] sm:$0x1] %vm1745, 0.0
      %1756 = vst.msk [vmem:[%s1744 + $0x29] sm:$0x1] %vm1745, 0.0
      %1757 = vst.msk [vmem:[%s1744 + $0x39] sm:$0x1] %vm1745, 0.0
      %1758 = vst.msk [vmem:[%s1744 + $0x49] sm:$0x1] %vm1745, 0.0
      %1759 = vst.msk [vmem:[%s1744 + $0x59] sm:$0x1] %vm1745, 0.0
      %1760 = vst.msk [vmem:[%s1744 + $0x69] sm:$0x1] %vm1745, 0.0
      %1761 = vst.msk [vmem:[%s1744 + $0x79] sm:$0x1] %vm1745, 0.0
      %1762 = vst.msk [vmem:[%s1744 + $0x1] sm:$0xff] %vm1737, %v1729
      %1763 = vst.msk [vmem:[%s1744 + $0x11] sm:$0xff] %vm1737, %v1730
      %1764 = vst.msk [vmem:[%s1744 + $0x21] sm:$0xff] %vm1737, %v1731
      %1765 = vst.msk [vmem:[%s1744 + $0x31] sm:$0xff] %vm1737, %v1732
      %1766 = vst.msk [vmem:[%s1744 + $0x41] sm:$0xff] %vm1737, %v1733
      %1767 = vst.msk [vmem:[%s1744 + $0x51] sm:$0xff] %vm1737, %v1734
      %1768 = vst.msk [vmem:[%s1744 + $0x61] sm:$0xff] %vm1737, %v1735
      %1769 = vst.msk [vmem:[%s1744 + $0x71] sm:$0xff] %vm1737, %v1736
      %v1770 = vld [vmem:[%s910] sm:$0xff]
      %v1771 = vld [vmem:[%s910 + $0x10] sm:$0xff]
      %v1772 = vld [vmem:[%s910 + $0x20] sm:$0xff]
      %v1773 = vld [vmem:[%s910 + $0x30] sm:$0xff]
      %v1774 = vld [vmem:[%s910 + $0x40] sm:$0xff]
      %v1775 = vld [vmem:[%s910 + $0x50] sm:$0xff]
      %v1776 = vld [vmem:[%s910 + $0x60] sm:$0xff]
      %v1777 = vld [vmem:[%s910 + $0x70] sm:$0xff]
      %v1778 = vld [vmem:[%s3] sm:$0xf]
      %v1779 = vld [vmem:[#allocation2] sm:$0xff]
      %v1780 = vld [vmem:[#allocation2 + $0x10] sm:$0xff]
      %v1781 = vld [vmem:[#allocation2 + $0x20] sm:$0xff]
      %v1782 = vld [vmem:[#allocation2 + $0x30] sm:$0xff]
      %v1783 = vld [vmem:[#allocation2 + $0x40] sm:$0xff]
      %v1784 = vld [vmem:[#allocation2 + $0x50] sm:$0xff]
      %v1785 = vld [vmem:[#allocation2 + $0x60] sm:$0xff]
      %v1786 = vld [vmem:[#allocation2 + $0x70] sm:$0xff]
      %v1787 = vld [vmem:[%s2] sm:$0xff]
      %v1789 = vsel %vm1737, %v1779, 0
      %v1792 = vsel %vm1737, %v1780, 0
      %v1795 = vsel %vm1737, %v1781, 0
      %v1798 = vsel %vm1737, %v1782, 0
      %v1801 = vsel %vm1737, %v1783, 0
      %v1804 = vsel %vm1737, %v1784, 0
      %v1807 = vsel %vm1737, %v1785, 0
      %v1810 = vsel %vm1737, %v1786, 0
      %1812 = vmatpush.msra.mxu0 0.0
      %1813 = vmatpush.msra.mxu0 0.0
      %1814 = vmatpush.msra.mxu0 0.0
      %1815 = vmatpush.msra.mxu0 0.0
      %1816 = vmatpush.msra.mxu0 0.0
      %1817 = vmatpush.msra.mxu0 0.0
      %1818 = vmatpush.msra.mxu0 0.0
      %1819 = vmatpush.msra.mxu0 0.0
      %1820 = vmatpush.msra.mxu0 0.0
      %1821 = vmatpush.msra.mxu0 0.0
      %1822 = vmatpush.msra.mxu0 0.0
      %1823 = vmatpush.msra.mxu0 0.0
      %1824 = vmatpush.msra.mxu0 0.0
      %1825 = vmatpush.msra.mxu0 0.0
      %1826 = vmatpush.msra.mxu0 0.0
      %1827 = vmatpush.msra.mxu0 %v1787
      %1828 = vmatmul.f32.gmra.mxu0 %v1789
      %v1829 = vpop.f32.mrf.mxu0
      %v1830 = vadd.f32 0.0, %v1829
      %1831 = vmatmul.f32.gmra.mxu0 %v1792
      %v1832 = vpop.f32.mrf.mxu0
      %v1833 = vadd.f32 0.0, %v1832
      %1834 = vmatmul.f32.gmra.mxu0 %v1795
      %v1835 = vpop.f32.mrf.mxu0
      %v1836 = vadd.f32 0.0, %v1835
      %1837 = vmatmul.f32.gmra.mxu0 %v1798
      %v1838 = vpop.f32.mrf.mxu0
      %v1839 = vadd.f32 0.0, %v1838
      %1840 = vmatmul.f32.gmra.mxu0 %v1801
      %v1841 = vpop.f32.mrf.mxu0
      %v1842 = vadd.f32 0.0, %v1841
      %1843 = vmatmul.f32.gmra.mxu0 %v1804
      %v1844 = vpop.f32.mrf.mxu0
      %v1845 = vadd.f32 0.0, %v1844
      %1846 = vmatmul.f32.gmra.mxu0 %v1807
      %v1847 = vpop.f32.mrf.mxu0
      %v1848 = vadd.f32 0.0, %v1847
      %1849 = vmatmul.f32.gmra.mxu0 %v1810
      %v1850 = vpop.f32.mrf.mxu0
      %v1851 = vadd.f32 0.0, %v1850
      %1852 = vdwg.mxu0
      %v1854 = vsel %vm457, %v1770, 0
      %v1857 = vsel %vm457, %v1771, 0
      %v1860 = vsel %vm457, %v1772, 0
      %v1863 = vsel %vm457, %v1773, 0
      %v1866 = vsel %vm457, %v1774, 0
      %v1869 = vsel %vm457, %v1775, 0
      %v1872 = vsel %vm457, %v1776, 0
      %v1875 = vsel %vm457, %v1777, 0
      %v1878 = vsel %vm972, %v1778, 0
      %1880 = vmatpush.msra.mxu0 0.0
      %1881 = vmatpush.msra.mxu0 0.0
      %1882 = vmatpush.msra.mxu0 0.0
      %1883 = vmatpush.msra.mxu0 0.0
      %1884 = vmatpush.msra.mxu0 0.0
      %1885 = vmatpush.msra.mxu0 0.0
      %1886 = vmatpush.msra.mxu0 0.0
      %1887 = vmatpush.msra.mxu0 0.0
      %1888 = vmatpush.msra.mxu0 0.0
      %1889 = vmatpush.msra.mxu0 0.0
      %1890 = vmatpush.msra.mxu0 0.0
      %1891 = vmatpush.msra.mxu0 0.0
      %1892 = vmatpush.msra.mxu0 0.0
      %1893 = vmatpush.msra.mxu0 0.0
      %1894 = vmatpush.msra.mxu0 0.0
      %1895 = vmatpush.msra.mxu0 %v1878
      %1896 = vmatmul.f32.gmra.mxu0 %v1854
      %v1897 = vpop.f32.mrf.mxu0
      %v1898 = vadd.f32 %v1830, %v1897
      %1899 = vmatmul.f32.gmra.mxu0 %v1857
      %v1900 = vpop.f32.mrf.mxu0
      %v1901 = vadd.f32 %v1833, %v1900
      %1902 = vmatmul.f32.gmra.mxu0 %v1860
      %v1903 = vpop.f32.mrf.mxu0
      %v1904 = vadd.f32 %v1836, %v1903
      %1905 = vmatmul.f32.gmra.mxu0 %v1863
      %v1906 = vpop.f32.mrf.mxu0
      %v1907 = vadd.f32 %v1839, %v1906
      %1908 = vmatmul.f32.gmra.mxu0 %v1866
      %v1909 = vpop.f32.mrf.mxu0
      %v1910 = vadd.f32 %v1842, %v1909
      %1911 = vmatmul.f32.gmra.mxu0 %v1869
      %v1912 = vpop.f32.mrf.mxu0
      %v1913 = vadd.f32 %v1845, %v1912
      %1914 = vmatmul.f32.gmra.mxu0 %v1872
      %v1915 = vpop.f32.mrf.mxu0
      %v1916 = vadd.f32 %v1848, %v1915
      %1917 = vmatmul.f32.gmra.mxu0 %v1875
      %v1918 = vpop.f32.mrf.mxu0
      %v1919 = vadd.f32 %v1851, %v1918
      %1920 = vdwg.mxu0
      %v1921 = vld [vmem:[#allocation2 + $0x1] sm:$0xff]
      %v1922 = vld [vmem:[#allocation2 + $0x11] sm:$0xff]
      %v1923 = vld [vmem:[#allocation2 + $0x21] sm:$0xff]
      %v1924 = vld [vmem:[#allocation2 + $0x31] sm:$0xff]
      %v1925 = vld [vmem:[#allocation2 + $0x41] sm:$0xff]
      %v1926 = vld [vmem:[#allocation2 + $0x51] sm:$0xff]
      %v1927 = vld [vmem:[#allocation2 + $0x61] sm:$0xff]
      %v1928 = vld [vmem:[#allocation2 + $0x71] sm:$0xff]
      %s1929 = scalar_lea.vmem %s2, 8
      %v1930 = vld [vmem:[%s1929] sm:$0xff]
      %v1932 = vsel %vm1737, %v1921, 0
      %v1935 = vsel %vm1737, %v1922, 0
      %v1938 = vsel %vm1737, %v1923, 0
      %v1941 = vsel %vm1737, %v1924, 0
      %v1944 = vsel %vm1737, %v1925, 0
      %v1947 = vsel %vm1737, %v1926, 0
      %v1950 = vsel %vm1737, %v1927, 0
      %v1953 = vsel %vm1737, %v1928, 0
      %1955 = vmatpush.msra.mxu0 0.0
      %1956 = vmatpush.msra.mxu0 0.0
      %1957 = vmatpush.msra.mxu0 0.0
      %1958 = vmatpush.msra.mxu0 0.0
      %1959 = vmatpush.msra.mxu0 0.0
      %1960 = vmatpush.msra.mxu0 0.0
      %1961 = vmatpush.msra.mxu0 0.0
      %1962 = vmatpush.msra.mxu0 0.0
      %1963 = vmatpush.msra.mxu0 0.0
      %1964 = vmatpush.msra.mxu0 0.0
      %1965 = vmatpush.msra.mxu0 0.0
      %1966 = vmatpush.msra.mxu0 0.0
      %1967 = vmatpush.msra.mxu0 0.0
      %1968 = vmatpush.msra.mxu0 0.0
      %1969 = vmatpush.msra.mxu0 0.0
      %1970 = vmatpush.msra.mxu0 %v1930
      %1971 = vmatmul.f32.gmra.mxu0 %v1932
      %v1972 = vpop.f32.mrf.mxu0
      %v1973 = vadd.f32 0.0, %v1972
      %1974 = vmatmul.f32.gmra.mxu0 %v1935
      %v1975 = vpop.f32.mrf.mxu0
      %v1976 = vadd.f32 0.0, %v1975
      %1977 = vmatmul.f32.gmra.mxu0 %v1938
      %v1978 = vpop.f32.mrf.mxu0
      %v1979 = vadd.f32 0.0, %v1978
      %1980 = vmatmul.f32.gmra.mxu0 %v1941
      %v1981 = vpop.f32.mrf.mxu0
      %v1982 = vadd.f32 0.0, %v1981
      %1983 = vmatmul.f32.gmra.mxu0 %v1944
      %v1984 = vpop.f32.mrf.mxu0
      %v1985 = vadd.f32 0.0, %v1984
      %1986 = vmatmul.f32.gmra.mxu0 %v1947
      %v1987 = vpop.f32.mrf.mxu0
      %v1988 = vadd.f32 0.0, %v1987
      %1989 = vmatmul.f32.gmra.mxu0 %v1950
      %v1990 = vpop.f32.mrf.mxu0
      %v1991 = vadd.f32 0.0, %v1990
      %1992 = vmatmul.f32.gmra.mxu0 %v1953
      %v1993 = vpop.f32.mrf.mxu0
      %v1994 = vadd.f32 0.0, %v1993
      %1995 = vdwg.mxu0
      %v1996 = vadd.f32 %v1898, %v1973
      %v1997 = vadd.f32 %v1901, %v1976
      %v1998 = vadd.f32 %v1904, %v1979
      %v1999 = vadd.f32 %v1907, %v1982
      %v2000 = vadd.f32 %v1910, %v1985
      %v2001 = vadd.f32 %v1913, %v1988
      %v2002 = vadd.f32 %v1916, %v1991
      %v2003 = vadd.f32 %v1919, %v1994
      %v2004 = vld [vmem:[#allocation2 + $0x2] sm:$0xff]
      %v2005 = vld [vmem:[#allocation2 + $0x12] sm:$0xff]
      %v2006 = vld [vmem:[#allocation2 + $0x22] sm:$0xff]
      %v2007 = vld [vmem:[#allocation2 + $0x32] sm:$0xff]
      %v2008 = vld [vmem:[#allocation2 + $0x42] sm:$0xff]
      %v2009 = vld [vmem:[#allocation2 + $0x52] sm:$0xff]
      %v2010 = vld [vmem:[#allocation2 + $0x62] sm:$0xff]
      %v2011 = vld [vmem:[#allocation2 + $0x72] sm:$0xff]
      %s2012 = scalar_lea.vmem %s2, 16
      %v2013 = vld [vmem:[%s2012] sm:$0xff]
      %v2015 = vsel %vm1737, %v2004, 0
      %v2018 = vsel %vm1737, %v2005, 0
      %v2021 = vsel %vm1737, %v2006, 0
      %v2024 = vsel %vm1737, %v2007, 0
      %v2027 = vsel %vm1737, %v2008, 0
      %v2030 = vsel %vm1737, %v2009, 0
      %v2033 = vsel %vm1737, %v2010, 0
      %v2036 = vsel %vm1737, %v2011, 0
      %2038 = vmatpush.msra.mxu0 0.0
      %2039 = vmatpush.msra.mxu0 0.0
      %2040 = vmatpush.msra.mxu0 0.0
      %2041 = vmatpush.msra.mxu0 0.0
      %2042 = vmatpush.msra.mxu0 0.0
      %2043 = vmatpush.msra.mxu0 0.0
      %2044 = vmatpush.msra.mxu0 0.0
      %2045 = vmatpush.msra.mxu0 0.0
      %2046 = vmatpush.msra.mxu0 0.0
      %2047 = vmatpush.msra.mxu0 0.0
      %2048 = vmatpush.msra.mxu0 0.0
      %2049 = vmatpush.msra.mxu0 0.0
      %2050 = vmatpush.msra.mxu0 0.0
      %2051 = vmatpush.msra.mxu0 0.0
      %2052 = vmatpush.msra.mxu0 0.0
      %2053 = vmatpush.msra.mxu0 %v2013
      %2054 = vmatmul.f32.gmra.mxu0 %v2015
      %v2055 = vpop.f32.mrf.mxu0
      %v2056 = vadd.f32 0.0, %v2055
      %2057 = vmatmul.f32.gmra.mxu0 %v2018
      %v2058 = vpop.f32.mrf.mxu0
      %v2059 = vadd.f32 0.0, %v2058
      %2060 = vmatmul.f32.gmra.mxu0 %v2021
      %v2061 = vpop.f32.mrf.mxu0
      %v2062 = vadd.f32 0.0, %v2061
      %2063 = vmatmul.f32.gmra.mxu0 %v2024
      %v2064 = vpop.f32.mrf.mxu0
      %v2065 = vadd.f32 0.0, %v2064
      %2066 = vmatmul.f32.gmra.mxu0 %v2027
      %v2067 = vpop.f32.mrf.mxu0
      %v2068 = vadd.f32 0.0, %v2067
      %2069 = vmatmul.f32.gmra.mxu0 %v2030
      %v2070 = vpop.f32.mrf.mxu0
      %v2071 = vadd.f32 0.0, %v2070
      %2072 = vmatmul.f32.gmra.mxu0 %v2033
      %v2073 = vpop.f32.mrf.mxu0
      %v2074 = vadd.f32 0.0, %v2073
      %2075 = vmatmul.f32.gmra.mxu0 %v2036
      %v2076 = vpop.f32.mrf.mxu0
      %v2077 = vadd.f32 0.0, %v2076
      %2078 = vdwg.mxu0
      %v2079 = vadd.f32 %v1996, %v2056
      %v2080 = vadd.f32 %v1997, %v2059
      %v2081 = vadd.f32 %v1998, %v2062
      %v2082 = vadd.f32 %v1999, %v2065
      %v2083 = vadd.f32 %v2000, %v2068
      %v2084 = vadd.f32 %v2001, %v2071
      %v2085 = vadd.f32 %v2002, %v2074
      %v2086 = vadd.f32 %v2003, %v2077
      %v2087 = vld [vmem:[%s1744] sm:$0xff]
      %v2088 = vld [vmem:[%s1744 + $0x10] sm:$0xff]
      %v2089 = vld [vmem:[%s1744 + $0x20] sm:$0xff]
      %v2090 = vld [vmem:[%s1744 + $0x30] sm:$0xff]
      %v2091 = vld [vmem:[%s1744 + $0x40] sm:$0xff]
      %v2092 = vld [vmem:[%s1744 + $0x50] sm:$0xff]
      %v2093 = vld [vmem:[%s1744 + $0x60] sm:$0xff]
      %v2094 = vld [vmem:[%s1744 + $0x70] sm:$0xff]
      %s2095 = scalar_lea.vmem %s2, 24
      %v2096 = vld [vmem:[%s2095] sm:$0xff]
      %v2098 = vsel %vm1737, %v2087, 0
      %v2101 = vsel %vm1737, %v2088, 0
      %v2104 = vsel %vm1737, %v2089, 0
      %v2107 = vsel %vm1737, %v2090, 0
      %v2110 = vsel %vm1737, %v2091, 0
      %v2113 = vsel %vm1737, %v2092, 0
      %v2116 = vsel %vm1737, %v2093, 0
      %v2119 = vsel %vm1737, %v2094, 0
      %2121 = vmatpush.msra.mxu0 0.0
      %2122 = vmatpush.msra.mxu0 0.0
      %2123 = vmatpush.msra.mxu0 0.0
      %2124 = vmatpush.msra.mxu0 0.0
      %2125 = vmatpush.msra.mxu0 0.0
      %2126 = vmatpush.msra.mxu0 0.0
      %2127 = vmatpush.msra.mxu0 0.0
      %2128 = vmatpush.msra.mxu0 0.0
      %2129 = vmatpush.msra.mxu0 0.0
      %2130 = vmatpush.msra.mxu0 0.0
      %2131 = vmatpush.msra.mxu0 0.0
      %2132 = vmatpush.msra.mxu0 0.0
      %2133 = vmatpush.msra.mxu0 0.0
      %2134 = vmatpush.msra.mxu0 0.0
      %2135 = vmatpush.msra.mxu0 0.0
      %2136 = vmatpush.msra.mxu0 %v2096
      %2137 = vmatmul.f32.gmra.mxu0 %v2098
      %v2138 = vpop.f32.mrf.mxu0
      %v2139 = vadd.f32 0.0, %v2138
      %2140 = vmatmul.f32.gmra.mxu0 %v2101
      %v2141 = vpop.f32.mrf.mxu0
      %v2142 = vadd.f32 0.0, %v2141
      %2143 = vmatmul.f32.gmra.mxu0 %v2104
      %v2144 = vpop.f32.mrf.mxu0
      %v2145 = vadd.f32 0.0, %v2144
      %2146 = vmatmul.f32.gmra.mxu0 %v2107
      %v2147 = vpop.f32.mrf.mxu0
      %v2148 = vadd.f32 0.0, %v2147
      %2149 = vmatmul.f32.gmra.mxu0 %v2110
      %v2150 = vpop.f32.mrf.mxu0
      %v2151 = vadd.f32 0.0, %v2150
      %2152 = vmatmul.f32.gmra.mxu0 %v2113
      %v2153 = vpop.f32.mrf.mxu0
      %v2154 = vadd.f32 0.0, %v2153
      %2155 = vmatmul.f32.gmra.mxu0 %v2116
      %v2156 = vpop.f32.mrf.mxu0
      %v2157 = vadd.f32 0.0, %v2156
      %2158 = vmatmul.f32.gmra.mxu0 %v2119
      %v2159 = vpop.f32.mrf.mxu0
      %v2160 = vadd.f32 0.0, %v2159
      %2161 = vdwg.mxu0
      %v2162 = vadd.f32 %v2079, %v2139
      %v2163 = vadd.f32 %v2080, %v2142
      %v2164 = vadd.f32 %v2081, %v2145
      %v2165 = vadd.f32 %v2082, %v2148
      %v2166 = vadd.f32 %v2083, %v2151
      %v2167 = vadd.f32 %v2084, %v2154
      %v2168 = vadd.f32 %v2085, %v2157
      %v2169 = vadd.f32 %v2086, %v2160
      %v2170 = vld [vmem:[%s1744 + $0x1] sm:$0xff]
      %v2171 = vld [vmem:[%s1744 + $0x11] sm:$0xff]
      %v2172 = vld [vmem:[%s1744 + $0x21] sm:$0xff]
      %v2173 = vld [vmem:[%s1744 + $0x31] sm:$0xff]
      %v2174 = vld [vmem:[%s1744 + $0x41] sm:$0xff]
      %v2175 = vld [vmem:[%s1744 + $0x51] sm:$0xff]
      %v2176 = vld [vmem:[%s1744 + $0x61] sm:$0xff]
      %v2177 = vld [vmem:[%s1744 + $0x71] sm:$0xff]
      %s2178 = scalar_lea.vmem %s2, 32
      %v2179 = vld [vmem:[%s2178] sm:$0xff]
      %v2181 = vsel %vm1737, %v2170, 0
      %v2184 = vsel %vm1737, %v2171, 0
      %v2187 = vsel %vm1737, %v2172, 0
      %v2190 = vsel %vm1737, %v2173, 0
      %v2193 = vsel %vm1737, %v2174, 0
      %v2196 = vsel %vm1737, %v2175, 0
      %v2199 = vsel %vm1737, %v2176, 0
      %v2202 = vsel %vm1737, %v2177, 0
      %2204 = vmatpush.msra.mxu0 0.0
      %2205 = vmatpush.msra.mxu0 0.0
      %2206 = vmatpush.msra.mxu0 0.0
      %2207 = vmatpush.msra.mxu0 0.0
      %2208 = vmatpush.msra.mxu0 0.0
      %2209 = vmatpush.msra.mxu0 0.0
      %2210 = vmatpush.msra.mxu0 0.0
      %2211 = vmatpush.msra.mxu0 0.0
      %2212 = vmatpush.msra.mxu0 0.0
      %2213 = vmatpush.msra.mxu0 0.0
      %2214 = vmatpush.msra.mxu0 0.0
      %2215 = vmatpush.msra.mxu0 0.0
      %2216 = vmatpush.msra.mxu0 0.0
      %2217 = vmatpush.msra.mxu0 0.0
      %2218 = vmatpush.msra.mxu0 0.0
      %2219 = vmatpush.msra.mxu0 %v2179
      %2220 = vmatmul.f32.gmra.mxu0 %v2181
      %v2221 = vpop.f32.mrf.mxu0
      %v2222 = vadd.f32 0.0, %v2221
      %2223 = vmatmul.f32.gmra.mxu0 %v2184
      %v2224 = vpop.f32.mrf.mxu0
      %v2225 = vadd.f32 0.0, %v2224
      %2226 = vmatmul.f32.gmra.mxu0 %v2187
      %v2227 = vpop.f32.mrf.mxu0
      %v2228 = vadd.f32 0.0, %v2227
      %2229 = vmatmul.f32.gmra.mxu0 %v2190
      %v2230 = vpop.f32.mrf.mxu0
      %v2231 = vadd.f32 0.0, %v2230
      %2232 = vmatmul.f32.gmra.mxu0 %v2193
      %v2233 = vpop.f32.mrf.mxu0
      %v2234 = vadd.f32 0.0, %v2233
      %2235 = vmatmul.f32.gmra.mxu0 %v2196
      %v2236 = vpop.f32.mrf.mxu0
      %v2237 = vadd.f32 0.0, %v2236
      %2238 = vmatmul.f32.gmra.mxu0 %v2199
      %v2239 = vpop.f32.mrf.mxu0
      %v2240 = vadd.f32 0.0, %v2239
      %2241 = vmatmul.f32.gmra.mxu0 %v2202
      %v2242 = vpop.f32.mrf.mxu0
      %v2243 = vadd.f32 0.0, %v2242
      %2244 = vdwg.mxu0
      %v2245 = vadd.f32 %v2162, %v2222
      %v2246 = vadd.f32 %v2163, %v2225
      %v2247 = vadd.f32 %v2164, %v2228
      %v2248 = vadd.f32 %v2165, %v2231
      %v2249 = vadd.f32 %v2166, %v2234
      %v2250 = vadd.f32 %v2167, %v2237
      %v2251 = vadd.f32 %v2168, %v2240
      %v2252 = vadd.f32 %v2169, %v2243
      %v2253 = vld [vmem:[%s1744 + $0x2] sm:$0xff]
      %v2254 = vld [vmem:[%s1744 + $0x12] sm:$0xff]
      %v2255 = vld [vmem:[%s1744 + $0x22] sm:$0xff]
      %v2256 = vld [vmem:[%s1744 + $0x32] sm:$0xff]
      %v2257 = vld [vmem:[%s1744 + $0x42] sm:$0xff]
      %v2258 = vld [vmem:[%s1744 + $0x52] sm:$0xff]
      %v2259 = vld [vmem:[%s1744 + $0x62] sm:$0xff]
      %v2260 = vld [vmem:[%s1744 + $0x72] sm:$0xff]
      %s2261 = scalar_lea.vmem %s2, 40
      %v2262 = vld [vmem:[%s2261] sm:$0xff]
      %v2264 = vsel %vm1737, %v2253, 0
      %v2267 = vsel %vm1737, %v2254, 0
      %v2270 = vsel %vm1737, %v2255, 0
      %v2273 = vsel %vm1737, %v2256, 0
      %v2276 = vsel %vm1737, %v2257, 0
      %v2279 = vsel %vm1737, %v2258, 0
      %v2282 = vsel %vm1737, %v2259, 0
      %v2285 = vsel %vm1737, %v2260, 0
      %2287 = vmatpush.msra.mxu0 0.0
      %2288 = vmatpush.msra.mxu0 0.0
      %2289 = vmatpush.msra.mxu0 0.0
      %2290 = vmatpush.msra.mxu0 0.0
      %2291 = vmatpush.msra.mxu0 0.0
      %2292 = vmatpush.msra.mxu0 0.0
      %2293 = vmatpush.msra.mxu0 0.0
      %2294 = vmatpush.msra.mxu0 0.0
      %2295 = vmatpush.msra.mxu0 0.0
      %2296 = vmatpush.msra.mxu0 0.0
      %2297 = vmatpush.msra.mxu0 0.0
      %2298 = vmatpush.msra.mxu0 0.0
      %2299 = vmatpush.msra.mxu0 0.0
      %2300 = vmatpush.msra.mxu0 0.0
      %2301 = vmatpush.msra.mxu0 0.0
      %2302 = vmatpush.msra.mxu0 %v2262
      %2303 = vmatmul.f32.gmra.mxu0 %v2264
      %v2304 = vpop.f32.mrf.mxu0
      %v2305 = vadd.f32 0.0, %v2304
      %2306 = vmatmul.f32.gmra.mxu0 %v2267
      %v2307 = vpop.f32.mrf.mxu0
      %v2308 = vadd.f32 0.0, %v2307
      %2309 = vmatmul.f32.gmra.mxu0 %v2270
      %v2310 = vpop.f32.mrf.mxu0
      %v2311 = vadd.f32 0.0, %v2310
      %2312 = vmatmul.f32.gmra.mxu0 %v2273
      %v2313 = vpop.f32.mrf.mxu0
      %v2314 = vadd.f32 0.0, %v2313
      %2315 = vmatmul.f32.gmra.mxu0 %v2276
      %v2316 = vpop.f32.mrf.mxu0
      %v2317 = vadd.f32 0.0, %v2316
      %2318 = vmatmul.f32.gmra.mxu0 %v2279
      %v2319 = vpop.f32.mrf.mxu0
      %v2320 = vadd.f32 0.0, %v2319
      %2321 = vmatmul.f32.gmra.mxu0 %v2282
      %v2322 = vpop.f32.mrf.mxu0
      %v2323 = vadd.f32 0.0, %v2322
      %2324 = vmatmul.f32.gmra.mxu0 %v2285
      %v2325 = vpop.f32.mrf.mxu0
      %v2326 = vadd.f32 0.0, %v2325
      %2327 = vdwg.mxu0
      %v2328 = vadd.f32 %v2245, %v2305
      %v2329 = vadd.f32 %v2246, %v2308
      %v2330 = vadd.f32 %v2247, %v2311
      %v2331 = vadd.f32 %v2248, %v2314
      %v2332 = vadd.f32 %v2249, %v2317
      %v2333 = vadd.f32 %v2250, %v2320
      %v2334 = vadd.f32 %v2251, %v2323
      %v2335 = vadd.f32 %v2252, %v2326
      %s2336 = scalar_lea.vmem [#allocation2], 32
      %v2337 = vld [vmem:[%s2336] sm:$0xff]
      %v2338 = vld [vmem:[%s2336 + $0x10] sm:$0xff]
      %v2339 = vld [vmem:[%s2336 + $0x20] sm:$0xff]
      %v2340 = vld [vmem:[%s2336 + $0x30] sm:$0xff]
      %v2341 = vld [vmem:[%s2336 + $0x40] sm:$0xff]
      %v2342 = vld [vmem:[%s2336 + $0x50] sm:$0xff]
      %v2343 = vld [vmem:[%s2336 + $0x60] sm:$0xff]
      %v2344 = vld [vmem:[%s2336 + $0x70] sm:$0xff]
      %s2345 = scalar_lea.vmem %s2, 48
      %v2346 = vld [vmem:[%s2345] sm:$0xff]
      %v2348 = vsel %vm1737, %v2337, 0
      %v2351 = vsel %vm1737, %v2338, 0
      %v2354 = vsel %vm1737, %v2339, 0
      %v2357 = vsel %vm1737, %v2340, 0
      %v2360 = vsel %vm1737, %v2341, 0
      %v2363 = vsel %vm1737, %v2342, 0
      %v2366 = vsel %vm1737, %v2343, 0
      %v2369 = vsel %vm1737, %v2344, 0
      %2371 = vmatpush.msra.mxu0 0.0
      %2372 = vmatpush.msra.mxu0 0.0
      %2373 = vmatpush.msra.mxu0 0.0
      %2374 = vmatpush.msra.mxu0 0.0
      %2375 = vmatpush.msra.mxu0 0.0
      %2376 = vmatpush.msra.mxu0 0.0
      %2377 = vmatpush.msra.mxu0 0.0
      %2378 = vmatpush.msra.mxu0 0.0
      %2379 = vmatpush.msra.mxu0 0.0
      %2380 = vmatpush.msra.mxu0 0.0
      %2381 = vmatpush.msra.mxu0 0.0
      %2382 = vmatpush.msra.mxu0 0.0
      %2383 = vmatpush.msra.mxu0 0.0
      %2384 = vmatpush.msra.mxu0 0.0
      %2385 = vmatpush.msra.mxu0 0.0
      %2386 = vmatpush.msra.mxu0 %v2346
      %2387 = vmatmul.f32.gmra.mxu0 %v2348
      %v2388 = vpop.f32.mrf.mxu0
      %v2389 = vadd.f32 0.0, %v2388
      %2390 = vmatmul.f32.gmra.mxu0 %v2351
      %v2391 = vpop.f32.mrf.mxu0
      %v2392 = vadd.f32 0.0, %v2391
      %2393 = vmatmul.f32.gmra.mxu0 %v2354
      %v2394 = vpop.f32.mrf.mxu0
      %v2395 = vadd.f32 0.0, %v2394
      %2396 = vmatmul.f32.gmra.mxu0 %v2357
      %v2397 = vpop.f32.mrf.mxu0
      %v2398 = vadd.f32 0.0, %v2397
      %2399 = vmatmul.f32.gmra.mxu0 %v2360
      %v2400 = vpop.f32.mrf.mxu0
      %v2401 = vadd.f32 0.0, %v2400
      %2402 = vmatmul.f32.gmra.mxu0 %v2363
      %v2403 = vpop.f32.mrf.mxu0
      %v2404 = vadd.f32 0.0, %v2403
      %2405 = vmatmul.f32.gmra.mxu0 %v2366
      %v2406 = vpop.f32.mrf.mxu0
      %v2407 = vadd.f32 0.0, %v2406
      %2408 = vmatmul.f32.gmra.mxu0 %v2369
      %v2409 = vpop.f32.mrf.mxu0
      %v2410 = vadd.f32 0.0, %v2409
      %2411 = vdwg.mxu0
      %v2412 = vadd.f32 %v2328, %v2389
      %v2413 = vadd.f32 %v2329, %v2392
      %v2414 = vadd.f32 %v2330, %v2395
      %v2415 = vadd.f32 %v2331, %v2398
      %v2416 = vadd.f32 %v2332, %v2401
      %v2417 = vadd.f32 %v2333, %v2404
      %v2418 = vadd.f32 %v2334, %v2407
      %v2419 = vadd.f32 %v2335, %v2410
      %v2420 = vld [vmem:[%s2336 + $0x1] sm:$0xff]
      %v2421 = vld [vmem:[%s2336 + $0x11] sm:$0xff]
      %v2422 = vld [vmem:[%s2336 + $0x21] sm:$0xff]
      %v2423 = vld [vmem:[%s2336 + $0x31] sm:$0xff]
      %v2424 = vld [vmem:[%s2336 + $0x41] sm:$0xff]
      %v2425 = vld [vmem:[%s2336 + $0x51] sm:$0xff]
      %v2426 = vld [vmem:[%s2336 + $0x61] sm:$0xff]
      %v2427 = vld [vmem:[%s2336 + $0x71] sm:$0xff]
      %s2428 = scalar_lea.vmem %s2, 56
      %v2429 = vld [vmem:[%s2428] sm:$0xff]
      %v2431 = vsel %vm1737, %v2420, 0
      %v2434 = vsel %vm1737, %v2421, 0
      %v2437 = vsel %vm1737, %v2422, 0
      %v2440 = vsel %vm1737, %v2423, 0
      %v2443 = vsel %vm1737, %v2424, 0
      %v2446 = vsel %vm1737, %v2425, 0
      %v2449 = vsel %vm1737, %v2426, 0
      %v2452 = vsel %vm1737, %v2427, 0
      %2454 = vmatpush.msra.mxu0 0.0
      %2455 = vmatpush.msra.mxu0 0.0
      %2456 = vmatpush.msra.mxu0 0.0
      %2457 = vmatpush.msra.mxu0 0.0
      %2458 = vmatpush.msra.mxu0 0.0
      %2459 = vmatpush.msra.mxu0 0.0
      %2460 = vmatpush.msra.mxu0 0.0
      %2461 = vmatpush.msra.mxu0 0.0
      %2462 = vmatpush.msra.mxu0 0.0
      %2463 = vmatpush.msra.mxu0 0.0
      %2464 = vmatpush.msra.mxu0 0.0
      %2465 = vmatpush.msra.mxu0 0.0
      %2466 = vmatpush.msra.mxu0 0.0
      %2467 = vmatpush.msra.mxu0 0.0
      %2468 = vmatpush.msra.mxu0 0.0
      %2469 = vmatpush.msra.mxu0 %v2429
      %2470 = vmatmul.f32.gmra.mxu0 %v2431
      %v2471 = vpop.f32.mrf.mxu0
      %v2472 = vadd.f32 0.0, %v2471
      %2473 = vmatmul.f32.gmra.mxu0 %v2434
      %v2474 = vpop.f32.mrf.mxu0
      %v2475 = vadd.f32 0.0, %v2474
      %2476 = vmatmul.f32.gmra.mxu0 %v2437
      %v2477 = vpop.f32.mrf.mxu0
      %v2478 = vadd.f32 0.0, %v2477
      %2479 = vmatmul.f32.gmra.mxu0 %v2440
      %v2480 = vpop.f32.mrf.mxu0
      %v2481 = vadd.f32 0.0, %v2480
      %2482 = vmatmul.f32.gmra.mxu0 %v2443
      %v2483 = vpop.f32.mrf.mxu0
      %v2484 = vadd.f32 0.0, %v2483
      %2485 = vmatmul.f32.gmra.mxu0 %v2446
      %v2486 = vpop.f32.mrf.mxu0
      %v2487 = vadd.f32 0.0, %v2486
      %2488 = vmatmul.f32.gmra.mxu0 %v2449
      %v2489 = vpop.f32.mrf.mxu0
      %v2490 = vadd.f32 0.0, %v2489
      %2491 = vmatmul.f32.gmra.mxu0 %v2452
      %v2492 = vpop.f32.mrf.mxu0
      %v2493 = vadd.f32 0.0, %v2492
      %2494 = vdwg.mxu0
      %v2495 = vadd.f32 %v2412, %v2472
      %v2496 = vadd.f32 %v2413, %v2475
      %v2497 = vadd.f32 %v2414, %v2478
      %v2498 = vadd.f32 %v2415, %v2481
      %v2499 = vadd.f32 %v2416, %v2484
      %v2500 = vadd.f32 %v2417, %v2487
      %v2501 = vadd.f32 %v2418, %v2490
      %v2502 = vadd.f32 %v2419, %v2493
      %v2503 = vld [vmem:[%s2336 + $0x2] sm:$0xff]
      %v2504 = vld [vmem:[%s2336 + $0x12] sm:$0xff]
      %v2505 = vld [vmem:[%s2336 + $0x22] sm:$0xff]
      %v2506 = vld [vmem:[%s2336 + $0x32] sm:$0xff]
      %v2507 = vld [vmem:[%s2336 + $0x42] sm:$0xff]
      %v2508 = vld [vmem:[%s2336 + $0x52] sm:$0xff]
      %v2509 = vld [vmem:[%s2336 + $0x62] sm:$0xff]
      %v2510 = vld [vmem:[%s2336 + $0x72] sm:$0xff]
      %s2511 = scalar_lea.vmem %s2, 64
      %v2512 = vld [vmem:[%s2511] sm:$0xff]
      %v2514 = vsel %vm1737, %v2503, 0
      %v2517 = vsel %vm1737, %v2504, 0
      %v2520 = vsel %vm1737, %v2505, 0
      %v2523 = vsel %vm1737, %v2506, 0
      %v2526 = vsel %vm1737, %v2507, 0
      %v2529 = vsel %vm1737, %v2508, 0
      %v2532 = vsel %vm1737, %v2509, 0
      %v2535 = vsel %vm1737, %v2510, 0
      %2537 = vmatpush.msra.mxu0 0.0
      %2538 = vmatpush.msra.mxu0 0.0
      %2539 = vmatpush.msra.mxu0 0.0
      %2540 = vmatpush.msra.mxu0 0.0
      %2541 = vmatpush.msra.mxu0 0.0
      %2542 = vmatpush.msra.mxu0 0.0
      %2543 = vmatpush.msra.mxu0 0.0
      %2544 = vmatpush.msra.mxu0 0.0
      %2545 = vmatpush.msra.mxu0 0.0
      %2546 = vmatpush.msra.mxu0 0.0
      %2547 = vmatpush.msra.mxu0 0.0
      %2548 = vmatpush.msra.mxu0 0.0
      %2549 = vmatpush.msra.mxu0 0.0
      %2550 = vmatpush.msra.mxu0 0.0
      %2551 = vmatpush.msra.mxu0 0.0
      %2552 = vmatpush.msra.mxu0 %v2512
      %2553 = vmatmul.f32.gmra.mxu0 %v2514
      %v2554 = vpop.f32.mrf.mxu0
      %v2555 = vadd.f32 0.0, %v2554
      %2556 = vmatmul.f32.gmra.mxu0 %v2517
      %v2557 = vpop.f32.mrf.mxu0
      %v2558 = vadd.f32 0.0, %v2557
      %2559 = vmatmul.f32.gmra.mxu0 %v2520
      %v2560 = vpop.f32.mrf.mxu0
      %v2561 = vadd.f32 0.0, %v2560
      %2562 = vmatmul.f32.gmra.mxu0 %v2523
      %v2563 = vpop.f32.mrf.mxu0
      %v2564 = vadd.f32 0.0, %v2563
      %2565 = vmatmul.f32.gmra.mxu0 %v2526
      %v2566 = vpop.f32.mrf.mxu0
      %v2567 = vadd.f32 0.0, %v2566
      %2568 = vmatmul.f32.gmra.mxu0 %v2529
      %v2569 = vpop.f32.mrf.mxu0
      %v2570 = vadd.f32 0.0, %v2569
      %2571 = vmatmul.f32.gmra.mxu0 %v2532
      %v2572 = vpop.f32.mrf.mxu0
      %v2573 = vadd.f32 0.0, %v2572
      %2574 = vmatmul.f32.gmra.mxu0 %v2535
      %v2575 = vpop.f32.mrf.mxu0
      %v2576 = vadd.f32 0.0, %v2575
      %2577 = vdwg.mxu0
      %v2578 = vadd.f32 %v2495, %v2555
      %v2579 = vadd.f32 %v2496, %v2558
      %v2580 = vadd.f32 %v2497, %v2561
      %v2581 = vadd.f32 %v2498, %v2564
      %v2582 = vadd.f32 %v2499, %v2567
      %v2583 = vadd.f32 %v2500, %v2570
      %v2584 = vadd.f32 %v2501, %v2573
      %v2585 = vadd.f32 %v2502, %v2576
      %2586 = vst.msk [vmem:[%s305] sm:$0xff] %vm1737, %v2578
      %2587 = vst.msk [vmem:[%s305 + $0x8] sm:$0xff] %vm1737, %v2579
      %2588 = vst.msk [vmem:[%s305 + $0x10] sm:$0xff] %vm1737, %v2580
      %2589 = vst.msk [vmem:[%s305 + $0x18] sm:$0xff] %vm1737, %v2581
      %2590 = vst.msk [vmem:[%s305 + $0x20] sm:$0xff] %vm1737, %v2582
      %2591 = vst.msk [vmem:[%s305 + $0x28] sm:$0xff] %vm1737, %v2583
      %2592 = vst.msk [vmem:[%s305 + $0x30] sm:$0xff] %vm1737, %v2584
      %2593 = vst.msk [vmem:[%s305 + $0x38] sm:$0xff] %vm1737, %v2585
      %p2594 = scmp.lt.s32.totalorder %s19, 1
      %s2595 = scalar_select %p2594, %s19, 1
      %s2596 = smul.addr %s2595, 8
      %s2597 = smul.addr %s2596, 8
      %s2598 = scalar_lea.vmem %s8, %s2597
      // Predicated region
      $region53: #{basic_block_forward.1} parent=51 // pred_check
        %p2599 = pneg %p210
      $region54: #{basic_block_forward.1} parent=51 // pred_check_branch
        %2601 = sbr.rel (%p2599) target = $region56
      $region55: #{basic_block_forward.1} parent=51 // pred_region
        _
      $region56: #{basic_block_forward.1} parent=51 // pred_fallthru
        _
    $region52: #{basic_block_forward.1} parent=5 // pred_fallthru
      _
    %p2602 = scmp.le.s32.totalorder 2, %s14
    // Predicated region
    $region57: #{basic_block_forward.1} parent=5 // pred_check
      %p2603 = pneg %p2602
    $region58: #{basic_block_forward.1} parent=5 // pred_check_branch
      %2605 = sbr.rel (%p2603) target = $region60
    $region59: #{basic_block_forward.1} parent=5 // pred_region
      %s2606 = ssub.s32 %s14, 2
      // Predicated region
      $region61: #{basic_block_forward.1} parent=59 // pred_check
        %p2607 = pneg %p216
      $region62: #{basic_block_forward.1} parent=59 // pred_check_branch
        %2609 = sbr.rel (%p2607) target = $region64
      $region63: #{basic_block_forward.1} parent=59 // pred_region
        %p2610 = scmp.lt.s32.totalorder %s20, 1
        %s2611 = scalar_select %p2610, %s20, 1
        %s2612 = smul.addr %s2611, 8
        %s2613 = smul.addr %s2612, 8
        %s2614 = scalar_lea.vmem %s8, %s2613
      $region64: #{basic_block_forward.1} parent=59 // pred_fallthru
        _
    $region60: #{basic_block_forward.1} parent=5 // pred_fallthru
      _
  $region6: #{basic_block_forward.1} parent=0 // loop_footer
    %s18 = sadd.s32 1, %s14
  $region7: #{basic_block_forward.1} parent=0 // loop_footer_branch
    %13 = sbr.rel target = $region3
  $region8: #{basic_block_forward.1} parent=0 // loop_exit
    _

</llo_original>
